<compile_context>
chip_gen: v6e
topology: v6e:2x2x1
jax: 0.10.0
libtpu: 0.0.40
codegen_flags: <defaults>
</compile_context>

<pallas_src>
import functools

import jax
import jax.numpy as jnp
from jax.experimental import pallas as pl
from jax.experimental.pallas import tpu as pltpu

_VMEM = pltpu.MemorySpace.VMEM
_EPS = 1e-5


# ------------------------------ in-kernel helpers ------------------------------

def _mm(x, w):
    """(M,K)x(K,N) matmul: bf16 operands, f32 accumulation."""
    return jnp.dot(x.astype(jnp.bfloat16), w.astype(jnp.bfloat16),
                   preferred_element_type=jnp.float32)


def _softmax_rows(s):
    """Row-wise softmax in f32; reciprocal on the EUP."""
    s = s - jnp.max(s, axis=-1, keepdims=True)
    p = jnp.exp(s)
    return p * pl.reciprocal(jnp.sum(p, axis=-1, keepdims=True), approx=True)


def _mha_2d(q, k, v, num_heads, scale):
    """q,k,v: (S, D) f32.  Contiguous-channel head split (matches both
    nn.MultiheadAttention and myMHA).  Returns (S, D) f32 (concat of heads)."""
    hd = q.shape[-1] // num_heads
    outs = []
    for h in range(num_heads):
        lo = h * hd
        qh = q[:, lo:lo + hd].astype(jnp.bfloat16)
        kh = k[:, lo:lo + hd].astype(jnp.bfloat16)
        vh = v[:, lo:lo + hd].astype(jnp.bfloat16)
        # q @ k^T via dot_general (no materialized transpose)
        s = jax.lax.dot_general(qh, kh, (((1,), (1,)), ((), ())),
                                preferred_element_type=jnp.float32) * scale
        p = _softmax_rows(s)
        outs.append(jnp.dot(p.astype(jnp.bfloat16), vh,
                            preferred_element_type=jnp.float32))
    if num_heads == 1:
        return outs[0]
    return jnp.concatenate(outs, axis=-1)


# ------------------------------ Pallas kernels ------------------------------

def _embed_kernel(x_ref, w_ref, o_ref):
    """Node embedding: (B, N, num_input) @ (num_input, D) -> (B, N, D)."""
    B = x_ref.shape[0]
    w = w_ref[...]
    for b in range(B):
        o_ref[b] = jnp.dot(x_ref[b], w, preferred_element_type=jnp.float32)


def _encoder_layer_kernel(h_ref, wqkvo_ref, bqkvo_ref, w1_ref, b1_ref,
                          w2_ref, b2_ref, bn_ref, o_ref, *, num_heads, eps):
    """Fused encoder layer: MHA block + BN1 + FF block + BN2.

    wqkvo: (4, D, D) bf16   rows = Wq, Wk, Wv, Wout   (pre-transposed (in,out))
    bqkvo: (4, D)  f32      rows = bq, bk, bv, bout
    bn:    (4, D)  f32      rows = bn1_gamma, bn1_beta, bn2_gamma, bn2_beta
    BatchNorm uses training-mode (biased) batch statistics over all B*S rows,
    matching the PyTorch module's default training behaviour.
    """
    B, S, D = h_ref.shape
    hd = D // num_heads
    scale = 1.0 / float(hd) ** 0.5
    inv_count = 1.0 / float(B * S)

    bqkvo = bqkvo_ref[...]
    bn = bn_ref[...]
    w1 = w1_ref[...]
    b1 = b1_ref[...]
    w2 = w2_ref[...]
    b2 = b2_ref[...]

    # ---- attention block (+ residual), accumulate BN1 statistics ----
    resid = []
    s1 = jnp.zeros((1, D), jnp.float32)
    q1 = jnp.zeros((1, D), jnp.float32)
    for b in range(B):
        hb = h_ref[b]                                    # (S, D) f32
        q = _mm(hb, wqkvo_ref[0]) + bqkvo[0:1]
        k = _mm(hb, wqkvo_ref[1]) + bqkvo[1:2]
        v = _mm(hb, wqkvo_ref[2]) + bqkvo[2:3]
        attn = _mha_2d(q, k, v, num_heads, scale)
        rb = hb + _mm(attn, wqkvo_ref[3]) + bqkvo[3:4]
        resid.append(rb)
        s1 = s1 + jnp.sum(rb, axis=0, keepdims=True)
        q1 = q1 + jnp.sum(rb * rb, axis=0, keepdims=True)
    mean1 = s1 * inv_count
    var1 = jnp.maximum(q1 * inv_count - mean1 * mean1, 0.0)
    g1 = bn[0:1] * jax.lax.rsqrt(var1 + eps)
    sh1 = bn[1:2] - mean1 * g1

    # ---- FF block (+ residual), accumulate BN2 statistics ----
    ffs = []
    s2 = jnp.zeros((1, D), jnp.float32)
    q2 = jnp.zeros((1, D), jnp.float32)
    for b in range(B):
        hb = resid[b] * g1 + sh1                         # BN1 applied
        fb = hb + _mm(jnp.maximum(_mm(hb, w1) + b1, 0.0), w2) + b2
        ffs.append(fb)
        s2 = s2 + jnp.sum(fb, axis=0, keepdims=True)
        q2 = q2 + jnp.sum(fb * fb, axis=0, keepdims=True)
    mean2 = s2 * inv_count
    var2 = jnp.maximum(q2 * inv_count - mean2 * mean2, 0.0)
    g2 = bn[2:3] * jax.lax.rsqrt(var2 + eps)
    sh2 = bn[3:4] - mean2 * g2

    for b in range(B):
        o_ref[b] = ffs[b] * g2 + sh2


def _decoder_layer_kernel(ht_ref, henc_ref, w_ref, b_ref, lng_ref, lnb_ref,
                          o_ref, *, num_heads, eps):
    """Fused decoder layer (one batch element per grid step).

    w_ref: (10, D, D) bf16, b_ref: (10, D) f32; row order:
      0: WK_att_l   1: WV_att_l   2: Wq_self  3: Wk_self  4: Wv_self
      5: W0_self    6: Wq_att     7: W0_att   8: W1_MLP   9: W2_MLP
    The original module reuses BN_self_att (a LayerNorm) for all three norms.
    """
    ht = ht_ref[0]                                       # (S, D) f32
    henc = henc_ref[0]
    D = ht.shape[-1]
    hd = D // num_heads
    scale = 1.0 / float(hd) ** 0.5
    biases = b_ref[...]
    lng = lng_ref[...]
    lnb = lnb_ref[...]

    def lin(x, i):
        return _mm(x, w_ref[i]) + biases[i:i + 1, :]

    def ln(x):
        mu = jnp.mean(x, axis=-1, keepdims=True)
        var = jnp.mean((x - mu) ** 2, axis=-1, keepdims=True)
        return (x - mu) * jax.lax.rsqrt(var + eps) * lng + lnb

    # per-layer K/V projections of the encoder output, computed in-kernel
    k_att = lin(henc, 0)
    v_att = lin(henc, 1)

    # self-attention block
    attn_self = _mha_2d(lin(ht, 2), lin(ht, 3), lin(ht, 4), num_heads, scale)
    ht = ht + lin(attn_self, 5)
    ht = ln(ht)
    # cross-attention block
    attn_cross = _mha_2d(lin(ht, 6), k_att, v_att, num_heads, scale)
    ht = ht + lin(attn_cross, 7)
    ht = ln(ht)
    # MLP block
    ht = ht + lin(jnp.maximum(lin(ht, 8), 0.0), 9)
    ht = ln(ht)
    o_ref[0] = ht


def _final_kernel(ht_ref, henc_ref, wk_ref, bk_ref, wq_ref, bq_ref, o_ref,
                  *, inv_sqrt_d):
    """Final decoder step: q_final = Wq_final(h_t), K = WK_last(h_enc),
    out = 10 * tanh(q_final @ K^T / sqrt(D))."""
    ht = ht_ref[0]
    henc = henc_ref[0]
    k_last = _mm(henc, wk_ref[...]) + bk_ref[...]
    q_final = _mm(ht, wq_ref[...]) + bq_ref[...]
    s = jax.lax.dot_general(q_final.astype(jnp.bfloat16),
                            k_last.astype(jnp.bfloat16),
                            (((1,), (1,)), ((), ())),
                            preferred_element_type=jnp.float32) * inv_sqrt_d
    o_ref[0] = 10.0 * jnp.tanh(s)


# ------------------------------ wrappers ------------------------------

def _embed(x, emb_w):
    B, N, _ = x.shape
    D = emb_w.shape[1]
    return pl.pallas_call(
        _embed_kernel,
        out_shape=jax.ShapeDtypeStruct((B, N, D), jnp.float32),
        in_specs=[pl.BlockSpec(memory_space=_VMEM)] * 2,
        out_specs=pl.BlockSpec(memory_space=_VMEM),
    )(x, emb_w)


def _encoder_layer(h, p, num_heads):
    B, S, D = h.shape
    return pl.pallas_call(
        functools.partial(_encoder_layer_kernel, num_heads=num_heads, eps=_EPS),
        out_shape=jax.ShapeDtypeStruct((B, S, D), jnp.float32),
        in_specs=[pl.BlockSpec(memory_space=_VMEM)] * 8,
        out_specs=pl.BlockSpec(memory_space=_VMEM),
    )(h, p["wqkvo"], p["bqkvo"], p["w1"], p["b1"], p["w2"], p["b2"], p["bn"])


def _decoder_layer(h_t, h_enc, p, num_heads):
    B, S, D = h_t.shape
    return pl.pallas_call(
        functools.partial(_decoder_layer_kernel, num_heads=num_heads, eps=_EPS),
        out_shape=jax.ShapeDtypeStruct((B, S, D), jnp.float32),
        grid=(B,),
        in_specs=[
            pl.BlockSpec((1, S, D), lambda b: (b, 0, 0)),
            pl.BlockSpec((1, S, D), lambda b: (b, 0, 0)),
            pl.BlockSpec(p["wstack"].shape, lambda b: (0, 0, 0)),
            pl.BlockSpec(p["bstack"].shape, lambda b: (0, 0)),
            pl.BlockSpec((1, D), lambda b: (0, 0)),
            pl.BlockSpec((1, D), lambda b: (0, 0)),
        ],
        out_specs=pl.BlockSpec((1, S, D), lambda b: (b, 0, 0)),
        compiler_params=pltpu.CompilerParams(
            dimension_semantics=("parallel",)),
    )(h_t, h_enc, p["wstack"], p["bstack"], p["ln_g"], p["ln_b"])


def _final_layer(h_t, h_enc, p, num_dim):
    B, S, D = h_t.shape
    return pl.pallas_call(
        functools.partial(_final_kernel, inv_sqrt_d=1.0 / float(num_dim) ** 0.5),
        out_shape=jax.ShapeDtypeStruct((B, S, S), jnp.float32),
        grid=(B,),
        in_specs=[
            pl.BlockSpec((1, S, D), lambda b: (b, 0, 0)),
            pl.BlockSpec((1, S, D), lambda b: (b, 0, 0)),
            pl.BlockSpec((D, D), lambda b: (0, 0)),
            pl.BlockSpec((1, D), lambda b: (0, 0)),
            pl.BlockSpec((D, D), lambda b: (0, 0)),
            pl.BlockSpec((1, D), lambda b: (0, 0)),
        ],
        out_specs=pl.BlockSpec((1, S, S), lambda b: (b, 0, 0)),
        compiler_params=pltpu.CompilerParams(
            dimension_semantics=("parallel",)),
    )(h_t, h_enc, p["wk_last"], p["bk_last"], p["wq_final"], p["bq_final"])


def nar_tsp_net_forward(params, x, *, num_heads):
    """x: (B, node, num_input) -> attn_weight_all: (B, node+1, node+1)."""
    B = x.shape[0]
    D = params["start"].shape[-1]

    h_nodes = _embed(x.astype(jnp.float32), params["emb_w"])       # (B, N, D)
    # start-placeholder concat is pure layout plumbing -> left to XLA.
    start = jnp.broadcast_to(params["start"].reshape(1, 1, D), (B, 1, D))
    h = jnp.concatenate([h_nodes, start], axis=1)                  # (B, N+1, D)

    for lp in params["encoder"]:
        h = _encoder_layer(h, lp, num_heads)

    h_enc = h
    h_t = h
    for lp in params["decoder"]:
        h_t = _decoder_layer(h_t, h_enc, lp, num_heads)

    return _final_layer(h_t, h_enc, params["final"], D)


# ------------------------------ param init ------------------------------

def _rand_linear(key, din, dout, scale=0.1):
    """Returns pre-transposed weight (din, dout) and bias (dout,), both f32."""
    kw, kb = jax.random.split(key)
    w = jax.random.normal(kw, (din, dout), jnp.float32) * scale
    b = jax.random.normal(kb, (dout,), jnp.float32) * scale
    return w, b


def init_params(key, num_input, num_dim, num_ff, num_enc, num_dec, num_heads):
    assert num_dim % num_heads == 0
    keys = iter(jax.random.split(key, 1024))
    params = {}
    params["emb_w"] = (jax.random.normal(next(keys), (num_input, num_dim),
                                         jnp.float32) * 0.1)
    params["start"] = jax.random.normal(next(keys), (num_dim,), jnp.float32)

    enc = []
    for _ in range(num_enc):
        wq, bq = _rand_linear(next(keys), num_dim, num_dim)
        wk, bk = _rand_linear(next(keys), num_dim, num_dim)
        wv, bv = _rand_linear(next(keys), num_dim, num_dim)
        wo, bo = _rand_linear(next(keys), num_dim, num_dim)
        w1, b1 = _rand_linear(next(keys), num_dim, num_ff)
        w2, b2 = _rand_linear(next(keys), num_ff, num_dim)
        enc.append(dict(
            wqkvo=jnp.stack([wq, wk, wv, wo]).astype(jnp.bfloat16),
            bqkvo=jnp.stack([bq, bk, bv, bo]).astype(jnp.float32),
            w1=w1.astype(jnp.bfloat16), b1=b1.reshape(1, num_ff),
            w2=w2.astype(jnp.bfloat16), b2=b2.reshape(1, num_dim),
            bn=jnp.stack([jnp.ones((num_dim,), jnp.float32),
                          jnp.zeros((num_dim,), jnp.float32),
                          jnp.ones((num_dim,), jnp.float32),
                          jnp.zeros((num_dim,), jnp.float32)]),
        ))
    params["encoder"] = enc

    # WK_att_decoder: D -> L*D ;  WV_att_decoder: D -> (L-1)*D
    wk_full, bk_full = _rand_linear(next(keys), num_dim, num_dec * num_dim)
    if num_dec > 1:
        wv_full, bv_full = _rand_linear(next(keys), num_dim,
                                        (num_dec - 1) * num_dim)

    dec = []
    for l in range(num_dec - 1):
        sl = slice(l * num_dim, (l + 1) * num_dim)
        ws = [wk_full[:, sl], wv_full[:, sl]]
        bs = [bk_full[sl], bv_full[sl]]
        for _ in ("wq_self", "wk_self", "wv_self", "w0_self",
                  "wq_att", "w0_att", "w1_mlp", "w2_mlp"):
            w, bb = _rand_linear(next(keys), num_dim, num_dim)
            ws.append(w)
            bs.append(bb)
        dec.append(dict(
            wstack=jnp.stack(ws).astype(jnp.bfloat16),      # (10, D, D)
            bstack=jnp.stack(bs).astype(jnp.float32),       # (10, D)
            ln_g=jnp.ones((1, num_dim), jnp.float32),
            ln_b=jnp.zeros((1, num_dim), jnp.float32),
        ))
    params["decoder"] = dec

    last = slice((num_dec - 1) * num_dim, num_dec * num_dim)
    wqf, bqf = _rand_linear(next(keys), num_dim, num_dim)
    params["final"] = dict(
        wk_last=wk_full[:, last].astype(jnp.bfloat16),
        bk_last=bk_full[last].reshape(1, num_dim),
        wq_final=wqf.astype(jnp.bfloat16),
        bq_final=bqf.reshape(1, num_dim),
    )
    return params


# ------------------------------ main ------------------------------

if __name__ == "__main__":
    # Small config: num_input=2 (TSP coordinates), batch=2, nodes=8 -> seq=9
    B, NODES = 2, 8
    NUM_INPUT, NUM_DIM, NUM_FF = 2, 32, 64
    NUM_ENC_LAYERS, NUM_DEC_LAYERS, NUM_HEADS = 2, 2, 4

    params = init_params(jax.random.PRNGKey(42), NUM_INPUT, NUM_DIM, NUM_FF,
                         NUM_ENC_LAYERS, NUM_DEC_LAYERS, NUM_HEADS)
    x = jax.random.uniform(jax.random.PRNGKey(0), (B, NODES, NUM_INPUT),
                           jnp.float32)

    fwd = jax.jit(functools.partial(nar_tsp_net_forward, num_heads=NUM_HEADS))
    out = jax.block_until_ready(fwd(params, x))

    assert out.shape == (B, NODES + 1, NODES + 1), out.shape
    assert bool(jnp.all(jnp.isfinite(out)))
    # output is 10*tanh(.), so bounded by 10
    assert bool(jnp.all(jnp.abs(out) <= 10.0 + 1e-4))
    print("KERNEL_OK")
</pallas_src>

<mosaic_0001>
module attributes {stable_mosaic.version = 11 : i64} {
  func.func @_decoder_layer_kernel(%arg0: i32, %arg1: memref<1x9x32xf32, #tpu.memory_space<vmem>>, %arg2: memref<1x9x32xf32, #tpu.memory_space<vmem>>, %arg3: memref<10x32x32xbf16, #tpu.memory_space<vmem>>, %arg4: memref<10x32xf32, #tpu.memory_space<vmem>>, %arg5: memref<1x32xf32, #tpu.memory_space<vmem>>, %arg6: memref<1x32xf32, #tpu.memory_space<vmem>>, %arg7: memref<1x9x32xf32, #tpu.memory_space<vmem>>) attributes {dimension_semantics = [#tpu.dimension_semantics<parallel>], iteration_bounds = array<i64: 2>, scalar_prefetch = 0 : i64, scratch_operands = 0 : i64, tpu.core_type = #tpu.core_type<tc>, window_params = [{transform_indices = @transform_0, window_bounds = array<i64: 1, 9, 32>}, {transform_indices = @transform_1, window_bounds = array<i64: 1, 9, 32>}, {pipeline_mode = #tpu.pipeline_mode<synchronous>, transform_indices = @transform_2, window_bounds = array<i64: 10, 32, 32>}, {pipeline_mode = #tpu.pipeline_mode<synchronous>, transform_indices = @transform_3, window_bounds = array<i64: 10, 32>}, {pipeline_mode = #tpu.pipeline_mode<synchronous>, transform_indices = @transform_4, window_bounds = array<i64: 1, 32>}, {pipeline_mode = #tpu.pipeline_mode<synchronous>, transform_indices = @transform_5, window_bounds = array<i64: 1, 32>}, {transform_indices = @transform_6, window_bounds = array<i64: 1, 9, 32>}]} {
    %c0 = arith.constant 0 : index
    %c0_0 = arith.constant 0 : index
    %c0_1 = arith.constant 0 : index
    %0 = vector.load %arg1[%c0, %c0_0, %c0_1] : memref<1x9x32xf32, #tpu.memory_space<vmem>>, vector<1x9x32xf32>
    %1 = vector.shape_cast %0 : vector<1x9x32xf32> to vector<9x32xf32>
    %c0_2 = arith.constant 0 : index
    %c0_3 = arith.constant 0 : index
    %c0_4 = arith.constant 0 : index
    %2 = vector.load %arg2[%c0_2, %c0_3, %c0_4] : memref<1x9x32xf32, #tpu.memory_space<vmem>>, vector<1x9x32xf32>
    %3 = vector.shape_cast %2 : vector<1x9x32xf32> to vector<9x32xf32>
    %c0_5 = arith.constant 0 : index
    %c0_6 = arith.constant 0 : index
    %4 = vector.load %arg4[%c0_5, %c0_6] : memref<10x32xf32, #tpu.memory_space<vmem>>, vector<10x32xf32>
    %c0_7 = arith.constant 0 : index
    %c0_8 = arith.constant 0 : index
    %5 = vector.load %arg5[%c0_7, %c0_8] : memref<1x32xf32, #tpu.memory_space<vmem>>, vector<1x32xf32>
    %c0_9 = arith.constant 0 : index
    %c0_10 = arith.constant 0 : index
    %6 = vector.load %arg6[%c0_9, %c0_10] : memref<1x32xf32, #tpu.memory_space<vmem>>, vector<1x32xf32>
    %c0_11 = arith.constant 0 : index
    %c0_12 = arith.constant 0 : index
    %c0_13 = arith.constant 0 : index
    %7 = vector.load %arg3[%c0_11, %c0_12, %c0_13] : memref<10x32x32xbf16, #tpu.memory_space<vmem>>, vector<1x32x32xbf16>
    %8 = vector.shape_cast %7 : vector<1x32x32xbf16> to vector<32x32xbf16>
    %9 = arith.truncf %3 : vector<9x32xf32> to vector<9x32xbf16>
    %cst = arith.constant dense<0.000000e+00> : vector<9x32xf32>
    %10 = tpu.matmul %9, %8, %cst {dimension_numbers = #tpu.dot_dimension_numbers<[1], [0], [0], [1], [0, 0, 1, 1], [], []>} : vector<9x32xbf16>, vector<32x32xbf16>, vector<9x32xf32> -> vector<9x32xf32>
    %11 = vector.extract_strided_slice %4 {offsets = [0, 0], sizes = [1, 32], strides = [1, 1]} : vector<10x32xf32> to vector<1x32xf32>
    %12 = vector.broadcast %11 : vector<1x32xf32> to vector<9x32xf32>
    %13 = arith.addf %10, %12 : vector<9x32xf32>
    %c1 = arith.constant 1 : index
    %c0_14 = arith.constant 0 : index
    %c0_15 = arith.constant 0 : index
    %14 = vector.load %arg3[%c1, %c0_14, %c0_15] : memref<10x32x32xbf16, #tpu.memory_space<vmem>>, vector<1x32x32xbf16>
    %15 = vector.shape_cast %14 : vector<1x32x32xbf16> to vector<32x32xbf16>
    %16 = arith.truncf %3 : vector<9x32xf32> to vector<9x32xbf16>
    %cst_16 = arith.constant dense<0.000000e+00> : vector<9x32xf32>
    %17 = tpu.matmul %16, %15, %cst_16 {dimension_numbers = #tpu.dot_dimension_numbers<[1], [0], [0], [1], [0, 0, 1, 1], [], []>} : vector<9x32xbf16>, vector<32x32xbf16>, vector<9x32xf32> -> vector<9x32xf32>
    %18 = vector.extract_strided_slice %4 {offsets = [1, 0], sizes = [1, 32], strides = [1, 1]} : vector<10x32xf32> to vector<1x32xf32>
    %19 = vector.broadcast %18 : vector<1x32xf32> to vector<9x32xf32>
    %20 = arith.addf %17, %19 : vector<9x32xf32>
    %c2 = arith.constant 2 : index
    %c0_17 = arith.constant 0 : index
    %c0_18 = arith.constant 0 : index
    %21 = vector.load %arg3[%c2, %c0_17, %c0_18] : memref<10x32x32xbf16, #tpu.memory_space<vmem>>, vector<1x32x32xbf16>
    %22 = vector.shape_cast %21 : vector<1x32x32xbf16> to vector<32x32xbf16>
    %23 = arith.truncf %1 : vector<9x32xf32> to vector<9x32xbf16>
    %cst_19 = arith.constant dense<0.000000e+00> : vector<9x32xf32>
    %24 = tpu.matmul %23, %22, %cst_19 {dimension_numbers = #tpu.dot_dimension_numbers<[1], [0], [0], [1], [0, 0, 1, 1], [], []>} : vector<9x32xbf16>, vector<32x32xbf16>, vector<9x32xf32> -> vector<9x32xf32>
    %25 = vector.extract_strided_slice %4 {offsets = [2, 0], sizes = [1, 32], strides = [1, 1]} : vector<10x32xf32> to vector<1x32xf32>
    %26 = vector.broadcast %25 : vector<1x32xf32> to vector<9x32xf32>
    %27 = arith.addf %24, %26 : vector<9x32xf32>
    %c3 = arith.constant 3 : index
    %c0_20 = arith.constant 0 : index
    %c0_21 = arith.constant 0 : index
    %28 = vector.load %arg3[%c3, %c0_20, %c0_21] : memref<10x32x32xbf16, #tpu.memory_space<vmem>>, vector<1x32x32xbf16>
    %29 = vector.shape_cast %28 : vector<1x32x32xbf16> to vector<32x32xbf16>
    %30 = arith.truncf %1 : vector<9x32xf32> to vector<9x32xbf16>
    %cst_22 = arith.constant dense<0.000000e+00> : vector<9x32xf32>
    %31 = tpu.matmul %30, %29, %cst_22 {dimension_numbers = #tpu.dot_dimension_numbers<[1], [0], [0], [1], [0, 0, 1, 1], [], []>} : vector<9x32xbf16>, vector<32x32xbf16>, vector<9x32xf32> -> vector<9x32xf32>
    %32 = vector.extract_strided_slice %4 {offsets = [3, 0], sizes = [1, 32], strides = [1, 1]} : vector<10x32xf32> to vector<1x32xf32>
    %33 = vector.broadcast %32 : vector<1x32xf32> to vector<9x32xf32>
    %34 = arith.addf %31, %33 : vector<9x32xf32>
    %c4 = arith.constant 4 : index
    %c0_23 = arith.constant 0 : index
    %c0_24 = arith.constant 0 : index
    %35 = vector.load %arg3[%c4, %c0_23, %c0_24] : memref<10x32x32xbf16, #tpu.memory_space<vmem>>, vector<1x32x32xbf16>
    %36 = vector.shape_cast %35 : vector<1x32x32xbf16> to vector<32x32xbf16>
    %37 = arith.truncf %1 : vector<9x32xf32> to vector<9x32xbf16>
    %cst_25 = arith.constant dense<0.000000e+00> : vector<9x32xf32>
    %38 = tpu.matmul %37, %36, %cst_25 {dimension_numbers = #tpu.dot_dimension_numbers<[1], [0], [0], [1], [0, 0, 1, 1], [], []>} : vector<9x32xbf16>, vector<32x32xbf16>, vector<9x32xf32> -> vector<9x32xf32>
    %39 = vector.extract_strided_slice %4 {offsets = [4, 0], sizes = [1, 32], strides = [1, 1]} : vector<10x32xf32> to vector<1x32xf32>
    %40 = vector.broadcast %39 : vector<1x32xf32> to vector<9x32xf32>
    %41 = arith.addf %38, %40 : vector<9x32xf32>
    %42 = vector.extract_strided_slice %27 {offsets = [0, 0], sizes = [9, 8], strides = [1, 1]} : vector<9x32xf32> to vector<9x8xf32>
    %43 = arith.truncf %42 : vector<9x8xf32> to vector<9x8xbf16>
    %44 = vector.extract_strided_slice %34 {offsets = [0, 0], sizes = [9, 8], strides = [1, 1]} : vector<9x32xf32> to vector<9x8xf32>
    %45 = arith.truncf %44 : vector<9x8xf32> to vector<9x8xbf16>
    %46 = vector.extract_strided_slice %41 {offsets = [0, 0], sizes = [9, 8], strides = [1, 1]} : vector<9x32xf32> to vector<9x8xf32>
    %47 = arith.truncf %46 : vector<9x8xf32> to vector<9x8xbf16>
    %cst_26 = arith.constant dense<0.000000e+00> : vector<9x9xf32>
    %48 = tpu.matmul %43, %45, %cst_26 {dimension_numbers = #tpu.dot_dimension_numbers<[1], [1], [0], [0], [0, 0, 1, 0], [], []>} : vector<9x8xbf16>, vector<9x8xbf16>, vector<9x9xf32> -> vector<9x9xf32>
    %cst_27 = arith.constant 0.353553385 : f32
    %49 = vector.broadcast %cst_27 : f32 to vector<9x9xf32>
    %50 = arith.mulf %48, %49 : vector<9x9xf32>
    %cst_28 = arith.constant dense<0xFF800000> : vector<9xf32>
    %51 = vector.multi_reduction <maximumf>, %50, %cst_28 [1] : vector<9x9xf32> to vector<9xf32>
    %52 = vector.shape_cast %51 : vector<9xf32> to vector<9x1xf32>
    %53 = vector.broadcast %52 : vector<9x1xf32> to vector<9x9xf32>
    %54 = arith.subf %50, %53 : vector<9x9xf32>
    %55 = math.exp %54 : vector<9x9xf32>
    %cst_29 = arith.constant dense<0.000000e+00> : vector<9xf32>
    %56 = vector.multi_reduction <add>, %55, %cst_29 [1] : vector<9x9xf32> to vector<9xf32>
    %57 = vector.shape_cast %56 : vector<9xf32> to vector<9x1xf32>
    %58 = tpu.reciprocal %57 {approx = true} : vector<9x1xf32> -> vector<9x1xf32>
    %59 = vector.broadcast %58 : vector<9x1xf32> to vector<9x9xf32>
    %60 = arith.mulf %55, %59 : vector<9x9xf32>
    %61 = arith.truncf %60 : vector<9x9xf32> to vector<9x9xbf16>
    %cst_30 = arith.constant dense<0.000000e+00> : vector<9x8xf32>
    %62 = tpu.matmul %61, %47, %cst_30 {dimension_numbers = #tpu.dot_dimension_numbers<[1], [0], [0], [1], [0, 0, 1, 1], [], []>} : vector<9x9xbf16>, vector<9x8xbf16>, vector<9x8xf32> -> vector<9x8xf32>
    %63 = vector.extract_strided_slice %27 {offsets = [0, 8], sizes = [9, 8], strides = [1, 1]} : vector<9x32xf32> to vector<9x8xf32>
    %64 = arith.truncf %63 : vector<9x8xf32> to vector<9x8xbf16>
    %65 = vector.extract_strided_slice %34 {offsets = [0, 8], sizes = [9, 8], strides = [1, 1]} : vector<9x32xf32> to vector<9x8xf32>
    %66 = arith.truncf %65 : vector<9x8xf32> to vector<9x8xbf16>
    %67 = vector.extract_strided_slice %41 {offsets = [0, 8], sizes = [9, 8], strides = [1, 1]} : vector<9x32xf32> to vector<9x8xf32>
    %68 = arith.truncf %67 : vector<9x8xf32> to vector<9x8xbf16>
    %cst_31 = arith.constant dense<0.000000e+00> : vector<9x9xf32>
    %69 = tpu.matmul %64, %66, %cst_31 {dimension_numbers = #tpu.dot_dimension_numbers<[1], [1], [0], [0], [0, 0, 1, 0], [], []>} : vector<9x8xbf16>, vector<9x8xbf16>, vector<9x9xf32> -> vector<9x9xf32>
    %cst_32 = arith.constant 0.353553385 : f32
    %70 = vector.broadcast %cst_32 : f32 to vector<9x9xf32>
    %71 = arith.mulf %69, %70 : vector<9x9xf32>
    %cst_33 = arith.constant dense<0xFF800000> : vector<9xf32>
    %72 = vector.multi_reduction <maximumf>, %71, %cst_33 [1] : vector<9x9xf32> to vector<9xf32>
    %73 = vector.shape_cast %72 : vector<9xf32> to vector<9x1xf32>
    %74 = vector.broadcast %73 : vector<9x1xf32> to vector<9x9xf32>
    %75 = arith.subf %71, %74 : vector<9x9xf32>
    %76 = math.exp %75 : vector<9x9xf32>
    %cst_34 = arith.constant dense<0.000000e+00> : vector<9xf32>
    %77 = vector.multi_reduction <add>, %76, %cst_34 [1] : vector<9x9xf32> to vector<9xf32>
    %78 = vector.shape_cast %77 : vector<9xf32> to vector<9x1xf32>
    %79 = tpu.reciprocal %78 {approx = true} : vector<9x1xf32> -> vector<9x1xf32>
    %80 = vector.broadcast %79 : vector<9x1xf32> to vector<9x9xf32>
    %81 = arith.mulf %76, %80 : vector<9x9xf32>
    %82 = arith.truncf %81 : vector<9x9xf32> to vector<9x9xbf16>
    %cst_35 = arith.constant dense<0.000000e+00> : vector<9x8xf32>
    %83 = tpu.matmul %82, %68, %cst_35 {dimension_numbers = #tpu.dot_dimension_numbers<[1], [0], [0], [1], [0, 0, 1, 1], [], []>} : vector<9x9xbf16>, vector<9x8xbf16>, vector<9x8xf32> -> vector<9x8xf32>
    %84 = vector.extract_strided_slice %27 {offsets = [0, 16], sizes = [9, 8], strides = [1, 1]} : vector<9x32xf32> to vector<9x8xf32>
    %85 = arith.truncf %84 : vector<9x8xf32> to vector<9x8xbf16>
    %86 = vector.extract_strided_slice %34 {offsets = [0, 16], sizes = [9, 8], strides = [1, 1]} : vector<9x32xf32> to vector<9x8xf32>
    %87 = arith.truncf %86 : vector<9x8xf32> to vector<9x8xbf16>
    %88 = vector.extract_strided_slice %41 {offsets = [0, 16], sizes = [9, 8], strides = [1, 1]} : vector<9x32xf32> to vector<9x8xf32>
    %89 = arith.truncf %88 : vector<9x8xf32> to vector<9x8xbf16>
    %cst_36 = arith.constant dense<0.000000e+00> : vector<9x9xf32>
    %90 = tpu.matmul %85, %87, %cst_36 {dimension_numbers = #tpu.dot_dimension_numbers<[1], [1], [0], [0], [0, 0, 1, 0], [], []>} : vector<9x8xbf16>, vector<9x8xbf16>, vector<9x9xf32> -> vector<9x9xf32>
    %cst_37 = arith.constant 0.353553385 : f32
    %91 = vector.broadcast %cst_37 : f32 to vector<9x9xf32>
    %92 = arith.mulf %90, %91 : vector<9x9xf32>
    %cst_38 = arith.constant dense<0xFF800000> : vector<9xf32>
    %93 = vector.multi_reduction <maximumf>, %92, %cst_38 [1] : vector<9x9xf32> to vector<9xf32>
    %94 = vector.shape_cast %93 : vector<9xf32> to vector<9x1xf32>
    %95 = vector.broadcast %94 : vector<9x1xf32> to vector<9x9xf32>
    %96 = arith.subf %92, %95 : vector<9x9xf32>
    %97 = math.exp %96 : vector<9x9xf32>
    %cst_39 = arith.constant dense<0.000000e+00> : vector<9xf32>
    %98 = vector.multi_reduction <add>, %97, %cst_39 [1] : vector<9x9xf32> to vector<9xf32>
    %99 = vector.shape_cast %98 : vector<9xf32> to vector<9x1xf32>
    %100 = tpu.reciprocal %99 {approx = true} : vector<9x1xf32> -> vector<9x1xf32>
    %101 = vector.broadcast %100 : vector<9x1xf32> to vector<9x9xf32>
    %102 = arith.mulf %97, %101 : vector<9x9xf32>
    %103 = arith.truncf %102 : vector<9x9xf32> to vector<9x9xbf16>
    %cst_40 = arith.constant dense<0.000000e+00> : vector<9x8xf32>
    %104 = tpu.matmul %103, %89, %cst_40 {dimension_numbers = #tpu.dot_dimension_numbers<[1], [0], [0], [1], [0, 0, 1, 1], [], []>} : vector<9x9xbf16>, vector<9x8xbf16>, vector<9x8xf32> -> vector<9x8xf32>
    %105 = vector.extract_strided_slice %27 {offsets = [0, 24], sizes = [9, 8], strides = [1, 1]} : vector<9x32xf32> to vector<9x8xf32>
    %106 = arith.truncf %105 : vector<9x8xf32> to vector<9x8xbf16>
    %107 = vector.extract_strided_slice %34 {offsets = [0, 24], sizes = [9, 8], strides = [1, 1]} : vector<9x32xf32> to vector<9x8xf32>
    %108 = arith.truncf %107 : vector<9x8xf32> to vector<9x8xbf16>
    %109 = vector.extract_strided_slice %41 {offsets = [0, 24], sizes = [9, 8], strides = [1, 1]} : vector<9x32xf32> to vector<9x8xf32>
    %110 = arith.truncf %109 : vector<9x8xf32> to vector<9x8xbf16>
    %cst_41 = arith.constant dense<0.000000e+00> : vector<9x9xf32>
    %111 = tpu.matmul %106, %108, %cst_41 {dimension_numbers = #tpu.dot_dimension_numbers<[1], [1], [0], [0], [0, 0, 1, 0], [], []>} : vector<9x8xbf16>, vector<9x8xbf16>, vector<9x9xf32> -> vector<9x9xf32>
    %cst_42 = arith.constant 0.353553385 : f32
    %112 = vector.broadcast %cst_42 : f32 to vector<9x9xf32>
    %113 = arith.mulf %111, %112 : vector<9x9xf32>
    %cst_43 = arith.constant dense<0xFF800000> : vector<9xf32>
    %114 = vector.multi_reduction <maximumf>, %113, %cst_43 [1] : vector<9x9xf32> to vector<9xf32>
    %115 = vector.shape_cast %114 : vector<9xf32> to vector<9x1xf32>
    %116 = vector.broadcast %115 : vector<9x1xf32> to vector<9x9xf32>
    %117 = arith.subf %113, %116 : vector<9x9xf32>
    %118 = math.exp %117 : vector<9x9xf32>
    %cst_44 = arith.constant dense<0.000000e+00> : vector<9xf32>
    %119 = vector.multi_reduction <add>, %118, %cst_44 [1] : vector<9x9xf32> to vector<9xf32>
    %120 = vector.shape_cast %119 : vector<9xf32> to vector<9x1xf32>
    %121 = tpu.reciprocal %120 {approx = true} : vector<9x1xf32> -> vector<9x1xf32>
    %122 = vector.broadcast %121 : vector<9x1xf32> to vector<9x9xf32>
    %123 = arith.mulf %118, %122 : vector<9x9xf32>
    %124 = arith.truncf %123 : vector<9x9xf32> to vector<9x9xbf16>
    %cst_45 = arith.constant dense<0.000000e+00> : vector<9x8xf32>
    %125 = tpu.matmul %124, %110, %cst_45 {dimension_numbers = #tpu.dot_dimension_numbers<[1], [0], [0], [1], [0, 0, 1, 1], [], []>} : vector<9x9xbf16>, vector<9x8xbf16>, vector<9x8xf32> -> vector<9x8xf32>
    %126 = tpu.concatenate %62, %83, %104, %125 in 1 : vector<9x8xf32>, vector<9x8xf32>, vector<9x8xf32>, vector<9x8xf32> -> vector<9x32xf32>
    %c5 = arith.constant 5 : index
    %c0_46 = arith.constant 0 : index
    %c0_47 = arith.constant 0 : index
    %127 = vector.load %arg3[%c5, %c0_46, %c0_47] : memref<10x32x32xbf16, #tpu.memory_space<vmem>>, vector<1x32x32xbf16>
    %128 = vector.shape_cast %127 : vector<1x32x32xbf16> to vector<32x32xbf16>
    %129 = arith.truncf %126 : vector<9x32xf32> to vector<9x32xbf16>
    %cst_48 = arith.constant dense<0.000000e+00> : vector<9x32xf32>
    %130 = tpu.matmul %129, %128, %cst_48 {dimension_numbers = #tpu.dot_dimension_numbers<[1], [0], [0], [1], [0, 0, 1, 1], [], []>} : vector<9x32xbf16>, vector<32x32xbf16>, vector<9x32xf32> -> vector<9x32xf32>
    %131 = vector.extract_strided_slice %4 {offsets = [5, 0], sizes = [1, 32], strides = [1, 1]} : vector<10x32xf32> to vector<1x32xf32>
    %132 = vector.broadcast %131 : vector<1x32xf32> to vector<9x32xf32>
    %133 = arith.addf %130, %132 : vector<9x32xf32>
    %134 = arith.addf %1, %133 : vector<9x32xf32>
    %cst_49 = arith.constant dense<0.000000e+00> : vector<9xf32>
    %135 = vector.multi_reduction <add>, %134, %cst_49 [1] : vector<9x32xf32> to vector<9xf32>
    %136 = vector.shape_cast %135 : vector<9xf32> to vector<9x1xf32>
    %cst_50 = arith.constant 3.200000e+01 : f32
    %137 = vector.broadcast %cst_50 : f32 to vector<9x1xf32>
    %138 = arith.divf %136, %137 : vector<9x1xf32>
    %139 = vector.broadcast %138 : vector<9x1xf32> to vector<9x32xf32>
    %140 = arith.subf %134, %139 : vector<9x32xf32>
    %141 = arith.mulf %140, %140 : vector<9x32xf32>
    %cst_51 = arith.constant dense<0.000000e+00> : vector<9xf32>
    %142 = vector.multi_reduction <add>, %141, %cst_51 [1] : vector<9x32xf32> to vector<9xf32>
    %143 = vector.shape_cast %142 : vector<9xf32> to vector<9x1xf32>
    %cst_52 = arith.constant 3.200000e+01 : f32
    %144 = vector.broadcast %cst_52 : f32 to vector<9x1xf32>
    %145 = arith.divf %143, %144 : vector<9x1xf32>
    %146 = vector.broadcast %138 : vector<9x1xf32> to vector<9x32xf32>
    %147 = arith.subf %134, %146 : vector<9x32xf32>
    %cst_53 = arith.constant 9.99999974E-6 : f32
    %148 = vector.broadcast %cst_53 : f32 to vector<9x1xf32>
    %149 = arith.addf %145, %148 : vector<9x1xf32>
    %150 = math.rsqrt %149 : vector<9x1xf32>
    %151 = vector.broadcast %150 : vector<9x1xf32> to vector<9x32xf32>
    %152 = arith.mulf %147, %151 : vector<9x32xf32>
    %153 = vector.broadcast %5 : vector<1x32xf32> to vector<9x32xf32>
    %154 = arith.mulf %152, %153 : vector<9x32xf32>
    %155 = vector.broadcast %6 : vector<1x32xf32> to vector<9x32xf32>
    %156 = arith.addf %154, %155 : vector<9x32xf32>
    %c6 = arith.constant 6 : index
    %c0_54 = arith.constant 0 : index
    %c0_55 = arith.constant 0 : index
    %157 = vector.load %arg3[%c6, %c0_54, %c0_55] : memref<10x32x32xbf16, #tpu.memory_space<vmem>>, vector<1x32x32xbf16>
    %158 = vector.shape_cast %157 : vector<1x32x32xbf16> to vector<32x32xbf16>
    %159 = arith.truncf %156 : vector<9x32xf32> to vector<9x32xbf16>
    %cst_56 = arith.constant dense<0.000000e+00> : vector<9x32xf32>
    %160 = tpu.matmul %159, %158, %cst_56 {dimension_numbers = #tpu.dot_dimension_numbers<[1], [0], [0], [1], [0, 0, 1, 1], [], []>} : vector<9x32xbf16>, vector<32x32xbf16>, vector<9x32xf32> -> vector<9x32xf32>
    %161 = vector.extract_strided_slice %4 {offsets = [6, 0], sizes = [1, 32], strides = [1, 1]} : vector<10x32xf32> to vector<1x32xf32>
    %162 = vector.broadcast %161 : vector<1x32xf32> to vector<9x32xf32>
    %163 = arith.addf %160, %162 : vector<9x32xf32>
    %164 = vector.extract_strided_slice %163 {offsets = [0, 0], sizes = [9, 8], strides = [1, 1]} : vector<9x32xf32> to vector<9x8xf32>
    %165 = arith.truncf %164 : vector<9x8xf32> to vector<9x8xbf16>
    %166 = vector.extract_strided_slice %13 {offsets = [0, 0], sizes = [9, 8], strides = [1, 1]} : vector<9x32xf32> to vector<9x8xf32>
    %167 = arith.truncf %166 : vector<9x8xf32> to vector<9x8xbf16>
    %168 = vector.extract_strided_slice %20 {offsets = [0, 0], sizes = [9, 8], strides = [1, 1]} : vector<9x32xf32> to vector<9x8xf32>
    %169 = arith.truncf %168 : vector<9x8xf32> to vector<9x8xbf16>
    %cst_57 = arith.constant dense<0.000000e+00> : vector<9x9xf32>
    %170 = tpu.matmul %165, %167, %cst_57 {dimension_numbers = #tpu.dot_dimension_numbers<[1], [1], [0], [0], [0, 0, 1, 0], [], []>} : vector<9x8xbf16>, vector<9x8xbf16>, vector<9x9xf32> -> vector<9x9xf32>
    %cst_58 = arith.constant 0.353553385 : f32
    %171 = vector.broadcast %cst_58 : f32 to vector<9x9xf32>
    %172 = arith.mulf %170, %171 : vector<9x9xf32>
    %cst_59 = arith.constant dense<0xFF800000> : vector<9xf32>
    %173 = vector.multi_reduction <maximumf>, %172, %cst_59 [1] : vector<9x9xf32> to vector<9xf32>
    %174 = vector.shape_cast %173 : vector<9xf32> to vector<9x1xf32>
    %175 = vector.broadcast %174 : vector<9x1xf32> to vector<9x9xf32>
    %176 = arith.subf %172, %175 : vector<9x9xf32>
    %177 = math.exp %176 : vector<9x9xf32>
    %cst_60 = arith.constant dense<0.000000e+00> : vector<9xf32>
    %178 = vector.multi_reduction <add>, %177, %cst_60 [1] : vector<9x9xf32> to vector<9xf32>
    %179 = vector.shape_cast %178 : vector<9xf32> to vector<9x1xf32>
    %180 = tpu.reciprocal %179 {approx = true} : vector<9x1xf32> -> vector<9x1xf32>
    %181 = vector.broadcast %180 : vector<9x1xf32> to vector<9x9xf32>
    %182 = arith.mulf %177, %181 : vector<9x9xf32>
    %183 = arith.truncf %182 : vector<9x9xf32> to vector<9x9xbf16>
    %cst_61 = arith.constant dense<0.000000e+00> : vector<9x8xf32>
    %184 = tpu.matmul %183, %169, %cst_61 {dimension_numbers = #tpu.dot_dimension_numbers<[1], [0], [0], [1], [0, 0, 1, 1], [], []>} : vector<9x9xbf16>, vector<9x8xbf16>, vector<9x8xf32> -> vector<9x8xf32>
    %185 = vector.extract_strided_slice %163 {offsets = [0, 8], sizes = [9, 8], strides = [1, 1]} : vector<9x32xf32> to vector<9x8xf32>
    %186 = arith.truncf %185 : vector<9x8xf32> to vector<9x8xbf16>
    %187 = vector.extract_strided_slice %13 {offsets = [0, 8], sizes = [9, 8], strides = [1, 1]} : vector<9x32xf32> to vector<9x8xf32>
    %188 = arith.truncf %187 : vector<9x8xf32> to vector<9x8xbf16>
    %189 = vector.extract_strided_slice %20 {offsets = [0, 8], sizes = [9, 8], strides = [1, 1]} : vector<9x32xf32> to vector<9x8xf32>
    %190 = arith.truncf %189 : vector<9x8xf32> to vector<9x8xbf16>
    %cst_62 = arith.constant dense<0.000000e+00> : vector<9x9xf32>
    %191 = tpu.matmul %186, %188, %cst_62 {dimension_numbers = #tpu.dot_dimension_numbers<[1], [1], [0], [0], [0, 0, 1, 0], [], []>} : vector<9x8xbf16>, vector<9x8xbf16>, vector<9x9xf32> -> vector<9x9xf32>
    %cst_63 = arith.constant 0.353553385 : f32
    %192 = vector.broadcast %cst_63 : f32 to vector<9x9xf32>
    %193 = arith.mulf %191, %192 : vector<9x9xf32>
    %cst_64 = arith.constant dense<0xFF800000> : vector<9xf32>
    %194 = vector.multi_reduction <maximumf>, %193, %cst_64 [1] : vector<9x9xf32> to vector<9xf32>
    %195 = vector.shape_cast %194 : vector<9xf32> to vector<9x1xf32>
    %196 = vector.broadcast %195 : vector<9x1xf32> to vector<9x9xf32>
    %197 = arith.subf %193, %196 : vector<9x9xf32>
    %198 = math.exp %197 : vector<9x9xf32>
    %cst_65 = arith.constant dense<0.000000e+00> : vector<9xf32>
    %199 = vector.multi_reduction <add>, %198, %cst_65 [1] : vector<9x9xf32> to vector<9xf32>
    %200 = vector.shape_cast %199 : vector<9xf32> to vector<9x1xf32>
    %201 = tpu.reciprocal %200 {approx = true} : vector<9x1xf32> -> vector<9x1xf32>
    %202 = vector.broadcast %201 : vector<9x1xf32> to vector<9x9xf32>
    %203 = arith.mulf %198, %202 : vector<9x9xf32>
    %204 = arith.truncf %203 : vector<9x9xf32> to vector<9x9xbf16>
    %cst_66 = arith.constant dense<0.000000e+00> : vector<9x8xf32>
    %205 = tpu.matmul %204, %190, %cst_66 {dimension_numbers = #tpu.dot_dimension_numbers<[1], [0], [0], [1], [0, 0, 1, 1], [], []>} : vector<9x9xbf16>, vector<9x8xbf16>, vector<9x8xf32> -> vector<9x8xf32>
    %206 = vector.extract_strided_slice %163 {offsets = [0, 16], sizes = [9, 8], strides = [1, 1]} : vector<9x32xf32> to vector<9x8xf32>
    %207 = arith.truncf %206 : vector<9x8xf32> to vector<9x8xbf16>
    %208 = vector.extract_strided_slice %13 {offsets = [0, 16], sizes = [9, 8], strides = [1, 1]} : vector<9x32xf32> to vector<9x8xf32>
    %209 = arith.truncf %208 : vector<9x8xf32> to vector<9x8xbf16>
    %210 = vector.extract_strided_slice %20 {offsets = [0, 16], sizes = [9, 8], strides = [1, 1]} : vector<9x32xf32> to vector<9x8xf32>
    %211 = arith.truncf %210 : vector<9x8xf32> to vector<9x8xbf16>
    %cst_67 = arith.constant dense<0.000000e+00> : vector<9x9xf32>
    %212 = tpu.matmul %207, %209, %cst_67 {dimension_numbers = #tpu.dot_dimension_numbers<[1], [1], [0], [0], [0, 0, 1, 0], [], []>} : vector<9x8xbf16>, vector<9x8xbf16>, vector<9x9xf32> -> vector<9x9xf32>
    %cst_68 = arith.constant 0.353553385 : f32
    %213 = vector.broadcast %cst_68 : f32 to vector<9x9xf32>
    %214 = arith.mulf %212, %213 : vector<9x9xf32>
    %cst_69 = arith.constant dense<0xFF800000> : vector<9xf32>
    %215 = vector.multi_reduction <maximumf>, %214, %cst_69 [1] : vector<9x9xf32> to vector<9xf32>
    %216 = vector.shape_cast %215 : vector<9xf32> to vector<9x1xf32>
    %217 = vector.broadcast %216 : vector<9x1xf32> to vector<9x9xf32>
    %218 = arith.subf %214, %217 : vector<9x9xf32>
    %219 = math.exp %218 : vector<9x9xf32>
    %cst_70 = arith.constant dense<0.000000e+00> : vector<9xf32>
    %220 = vector.multi_reduction <add>, %219, %cst_70 [1] : vector<9x9xf32> to vector<9xf32>
    %221 = vector.shape_cast %220 : vector<9xf32> to vector<9x1xf32>
    %222 = tpu.reciprocal %221 {approx = true} : vector<9x1xf32> -> vector<9x1xf32>
    %223 = vector.broadcast %222 : vector<9x1xf32> to vector<9x9xf32>
    %224 = arith.mulf %219, %223 : vector<9x9xf32>
    %225 = arith.truncf %224 : vector<9x9xf32> to vector<9x9xbf16>
    %cst_71 = arith.constant dense<0.000000e+00> : vector<9x8xf32>
    %226 = tpu.matmul %225, %211, %cst_71 {dimension_numbers = #tpu.dot_dimension_numbers<[1], [0], [0], [1], [0, 0, 1, 1], [], []>} : vector<9x9xbf16>, vector<9x8xbf16>, vector<9x8xf32> -> vector<9x8xf32>
    %227 = vector.extract_strided_slice %163 {offsets = [0, 24], sizes = [9, 8], strides = [1, 1]} : vector<9x32xf32> to vector<9x8xf32>
    %228 = arith.truncf %227 : vector<9x8xf32> to vector<9x8xbf16>
    %229 = vector.extract_strided_slice %13 {offsets = [0, 24], sizes = [9, 8], strides = [1, 1]} : vector<9x32xf32> to vector<9x8xf32>
    %230 = arith.truncf %229 : vector<9x8xf32> to vector<9x8xbf16>
    %231 = vector.extract_strided_slice %20 {offsets = [0, 24], sizes = [9, 8], strides = [1, 1]} : vector<9x32xf32> to vector<9x8xf32>
    %232 = arith.truncf %231 : vector<9x8xf32> to vector<9x8xbf16>
    %cst_72 = arith.constant dense<0.000000e+00> : vector<9x9xf32>
    %233 = tpu.matmul %228, %230, %cst_72 {dimension_numbers = #tpu.dot_dimension_numbers<[1], [1], [0], [0], [0, 0, 1, 0], [], []>} : vector<9x8xbf16>, vector<9x8xbf16>, vector<9x9xf32> -> vector<9x9xf32>
    %cst_73 = arith.constant 0.353553385 : f32
    %234 = vector.broadcast %cst_73 : f32 to vector<9x9xf32>
    %235 = arith.mulf %233, %234 : vector<9x9xf32>
    %cst_74 = arith.constant dense<0xFF800000> : vector<9xf32>
    %236 = vector.multi_reduction <maximumf>, %235, %cst_74 [1] : vector<9x9xf32> to vector<9xf32>
    %237 = vector.shape_cast %236 : vector<9xf32> to vector<9x1xf32>
    %238 = vector.broadcast %237 : vector<9x1xf32> to vector<9x9xf32>
    %239 = arith.subf %235, %238 : vector<9x9xf32>
    %240 = math.exp %239 : vector<9x9xf32>
    %cst_75 = arith.constant dense<0.000000e+00> : vector<9xf32>
    %241 = vector.multi_reduction <add>, %240, %cst_75 [1] : vector<9x9xf32> to vector<9xf32>
    %242 = vector.shape_cast %241 : vector<9xf32> to vector<9x1xf32>
    %243 = tpu.reciprocal %242 {approx = true} : vector<9x1xf32> -> vector<9x1xf32>
    %244 = vector.broadcast %243 : vector<9x1xf32> to vector<9x9xf32>
    %245 = arith.mulf %240, %244 : vector<9x9xf32>
    %246 = arith.truncf %245 : vector<9x9xf32> to vector<9x9xbf16>
    %cst_76 = arith.constant dense<0.000000e+00> : vector<9x8xf32>
    %247 = tpu.matmul %246, %232, %cst_76 {dimension_numbers = #tpu.dot_dimension_numbers<[1], [0], [0], [1], [0, 0, 1, 1], [], []>} : vector<9x9xbf16>, vector<9x8xbf16>, vector<9x8xf32> -> vector<9x8xf32>
    %248 = tpu.concatenate %184, %205, %226, %247 in 1 : vector<9x8xf32>, vector<9x8xf32>, vector<9x8xf32>, vector<9x8xf32> -> vector<9x32xf32>
    %c7 = arith.constant 7 : index
    %c0_77 = arith.constant 0 : index
    %c0_78 = arith.constant 0 : index
    %249 = vector.load %arg3[%c7, %c0_77, %c0_78] : memref<10x32x32xbf16, #tpu.memory_space<vmem>>, vector<1x32x32xbf16>
    %250 = vector.shape_cast %249 : vector<1x32x32xbf16> to vector<32x32xbf16>
    %251 = arith.truncf %248 : vector<9x32xf32> to vector<9x32xbf16>
    %cst_79 = arith.constant dense<0.000000e+00> : vector<9x32xf32>
    %252 = tpu.matmul %251, %250, %cst_79 {dimension_numbers = #tpu.dot_dimension_numbers<[1], [0], [0], [1], [0, 0, 1, 1], [], []>} : vector<9x32xbf16>, vector<32x32xbf16>, vector<9x32xf32> -> vector<9x32xf32>
    %253 = vector.extract_strided_slice %4 {offsets = [7, 0], sizes = [1, 32], strides = [1, 1]} : vector<10x32xf32> to vector<1x32xf32>
    %254 = vector.broadcast %253 : vector<1x32xf32> to vector<9x32xf32>
    %255 = arith.addf %252, %254 : vector<9x32xf32>
    %256 = arith.addf %156, %255 : vector<9x32xf32>
    %cst_80 = arith.constant dense<0.000000e+00> : vector<9xf32>
    %257 = vector.multi_reduction <add>, %256, %cst_80 [1] : vector<9x32xf32> to vector<9xf32>
    %258 = vector.shape_cast %257 : vector<9xf32> to vector<9x1xf32>
    %cst_81 = arith.constant 3.200000e+01 : f32
    %259 = vector.broadcast %cst_81 : f32 to vector<9x1xf32>
    %260 = arith.divf %258, %259 : vector<9x1xf32>
    %261 = vector.broadcast %260 : vector<9x1xf32> to vector<9x32xf32>
    %262 = arith.subf %256, %261 : vector<9x32xf32>
    %263 = arith.mulf %262, %262 : vector<9x32xf32>
    %cst_82 = arith.constant dense<0.000000e+00> : vector<9xf32>
    %264 = vector.multi_reduction <add>, %263, %cst_82 [1] : vector<9x32xf32> to vector<9xf32>
    %265 = vector.shape_cast %264 : vector<9xf32> to vector<9x1xf32>
    %cst_83 = arith.constant 3.200000e+01 : f32
    %266 = vector.broadcast %cst_83 : f32 to vector<9x1xf32>
    %267 = arith.divf %265, %266 : vector<9x1xf32>
    %268 = vector.broadcast %260 : vector<9x1xf32> to vector<9x32xf32>
    %269 = arith.subf %256, %268 : vector<9x32xf32>
    %cst_84 = arith.constant 9.99999974E-6 : f32
    %270 = vector.broadcast %cst_84 : f32 to vector<9x1xf32>
    %271 = arith.addf %267, %270 : vector<9x1xf32>
    %272 = math.rsqrt %271 : vector<9x1xf32>
    %273 = vector.broadcast %272 : vector<9x1xf32> to vector<9x32xf32>
    %274 = arith.mulf %269, %273 : vector<9x32xf32>
    %275 = vector.broadcast %5 : vector<1x32xf32> to vector<9x32xf32>
    %276 = arith.mulf %274, %275 : vector<9x32xf32>
    %277 = vector.broadcast %6 : vector<1x32xf32> to vector<9x32xf32>
    %278 = arith.addf %276, %277 : vector<9x32xf32>
    %c8 = arith.constant 8 : index
    %c0_85 = arith.constant 0 : index
    %c0_86 = arith.constant 0 : index
    %279 = vector.load %arg3[%c8, %c0_85, %c0_86] : memref<10x32x32xbf16, #tpu.memory_space<vmem>>, vector<1x32x32xbf16>
    %280 = vector.shape_cast %279 : vector<1x32x32xbf16> to vector<32x32xbf16>
    %281 = arith.truncf %278 : vector<9x32xf32> to vector<9x32xbf16>
    %cst_87 = arith.constant dense<0.000000e+00> : vector<9x32xf32>
    %282 = tpu.matmul %281, %280, %cst_87 {dimension_numbers = #tpu.dot_dimension_numbers<[1], [0], [0], [1], [0, 0, 1, 1], [], []>} : vector<9x32xbf16>, vector<32x32xbf16>, vector<9x32xf32> -> vector<9x32xf32>
    %283 = vector.extract_strided_slice %4 {offsets = [8, 0], sizes = [1, 32], strides = [1, 1]} : vector<10x32xf32> to vector<1x32xf32>
    %284 = vector.broadcast %283 : vector<1x32xf32> to vector<9x32xf32>
    %285 = arith.addf %282, %284 : vector<9x32xf32>
    %cst_88 = arith.constant 0.000000e+00 : f32
    %286 = vector.broadcast %cst_88 : f32 to vector<9x32xf32>
    %287 = arith.maximumf %285, %286 : vector<9x32xf32>
    %c9 = arith.constant 9 : index
    %c0_89 = arith.constant 0 : index
    %c0_90 = arith.constant 0 : index
    %288 = vector.load %arg3[%c9, %c0_89, %c0_90] : memref<10x32x32xbf16, #tpu.memory_space<vmem>>, vector<1x32x32xbf16>
    %289 = vector.shape_cast %288 : vector<1x32x32xbf16> to vector<32x32xbf16>
    %290 = arith.truncf %287 : vector<9x32xf32> to vector<9x32xbf16>
    %cst_91 = arith.constant dense<0.000000e+00> : vector<9x32xf32>
    %291 = tpu.matmul %290, %289, %cst_91 {dimension_numbers = #tpu.dot_dimension_numbers<[1], [0], [0], [1], [0, 0, 1, 1], [], []>} : vector<9x32xbf16>, vector<32x32xbf16>, vector<9x32xf32> -> vector<9x32xf32>
    %292 = vector.extract_strided_slice %4 {offsets = [9, 0], sizes = [1, 32], strides = [1, 1]} : vector<10x32xf32> to vector<1x32xf32>
    %293 = vector.broadcast %292 : vector<1x32xf32> to vector<9x32xf32>
    %294 = arith.addf %291, %293 : vector<9x32xf32>
    %295 = arith.addf %278, %294 : vector<9x32xf32>
    %cst_92 = arith.constant dense<0.000000e+00> : vector<9xf32>
    %296 = vector.multi_reduction <add>, %295, %cst_92 [1] : vector<9x32xf32> to vector<9xf32>
    %297 = vector.shape_cast %296 : vector<9xf32> to vector<9x1xf32>
    %cst_93 = arith.constant 3.200000e+01 : f32
    %298 = vector.broadcast %cst_93 : f32 to vector<9x1xf32>
    %299 = arith.divf %297, %298 : vector<9x1xf32>
    %300 = vector.broadcast %299 : vector<9x1xf32> to vector<9x32xf32>
    %301 = arith.subf %295, %300 : vector<9x32xf32>
    %302 = arith.mulf %301, %301 : vector<9x32xf32>
    %cst_94 = arith.constant dense<0.000000e+00> : vector<9xf32>
    %303 = vector.multi_reduction <add>, %302, %cst_94 [1] : vector<9x32xf32> to vector<9xf32>
    %304 = vector.shape_cast %303 : vector<9xf32> to vector<9x1xf32>
    %cst_95 = arith.constant 3.200000e+01 : f32
    %305 = vector.broadcast %cst_95 : f32 to vector<9x1xf32>
    %306 = arith.divf %304, %305 : vector<9x1xf32>
    %307 = vector.broadcast %299 : vector<9x1xf32> to vector<9x32xf32>
    %308 = arith.subf %295, %307 : vector<9x32xf32>
    %cst_96 = arith.constant 9.99999974E-6 : f32
    %309 = vector.broadcast %cst_96 : f32 to vector<9x1xf32>
    %310 = arith.addf %306, %309 : vector<9x1xf32>
    %311 = math.rsqrt %310 : vector<9x1xf32>
    %312 = vector.broadcast %311 : vector<9x1xf32> to vector<9x32xf32>
    %313 = arith.mulf %308, %312 : vector<9x32xf32>
    %314 = vector.broadcast %5 : vector<1x32xf32> to vector<9x32xf32>
    %315 = arith.mulf %313, %314 : vector<9x32xf32>
    %316 = vector.broadcast %6 : vector<1x32xf32> to vector<9x32xf32>
    %317 = arith.addf %315, %316 : vector<9x32xf32>
    %c0_97 = arith.constant 0 : index
    %c0_98 = arith.constant 0 : index
    %c0_99 = arith.constant 0 : index
    %318 = vector.load %arg7[%c0_97, %c0_98, %c0_99] : memref<1x9x32xf32, #tpu.memory_space<vmem>>, vector<1x9x32xf32>
    %319 = vector.shape_cast %318 : vector<1x9x32xf32> to vector<9x32xf32>
    %320 = vector.shape_cast %317 : vector<9x32xf32> to vector<1x9x32xf32>
    tpu.vector_store %arg7[%c0_97, %c0_98, %c0_99], %320 {strides = array<i32>} : memref<1x9x32xf32, #tpu.memory_space<vmem>>, vector<1x9x32xf32>,
    return
  }
  func.func @transform_0(%arg0: i32) -> (i32, i32, i32) {
    %c0_i32 = arith.constant 0 : i32
    %c0_i32_0 = arith.constant 0 : i32
    %c0_i32_1 = arith.constant 0 : i32
    return %arg0, %c0_i32, %c0_i32_0 : i32, i32, i32
  }
  func.func @transform_1(%arg0: i32) -> (i32, i32, i32) {
    %c0_i32 = arith.constant 0 : i32
    %c0_i32_0 = arith.constant 0 : i32
    %c0_i32_1 = arith.constant 0 : i32
    return %arg0, %c0_i32, %c0_i32_0 : i32, i32, i32
  }
  func.func @transform_2(%arg0: i32) -> (i32, i32, i32) {
    %c0_i32 = arith.constant 0 : i32
    %c0_i32_0 = arith.constant 0 : i32
    %c0_i32_1 = arith.constant 0 : i32
    %c0_i32_2 = arith.constant 0 : i32
    return %c0_i32, %c0_i32_0, %c0_i32_1 : i32, i32, i32
  }
  func.func @transform_3(%arg0: i32) -> (i32, i32) {
    %c0_i32 = arith.constant 0 : i32
    %c0_i32_0 = arith.constant 0 : i32
    %c0_i32_1 = arith.constant 0 : i32
    return %c0_i32, %c0_i32_0 : i32, i32
  }
  func.func @transform_4(%arg0: i32) -> (i32, i32) {
    %c0_i32 = arith.constant 0 : i32
    %c0_i32_0 = arith.constant 0 : i32
    %c0_i32_1 = arith.constant 0 : i32
    return %c0_i32, %c0_i32_0 : i32, i32
  }
  func.func @transform_5(%arg0: i32) -> (i32, i32) {
    %c0_i32 = arith.constant 0 : i32
    %c0_i32_0 = arith.constant 0 : i32
    %c0_i32_1 = arith.constant 0 : i32
    return %c0_i32, %c0_i32_0 : i32, i32
  }
  func.func @transform_6(%arg0: i32) -> (i32, i32, i32) {
    %c0_i32 = arith.constant 0 : i32
    %c0_i32_0 = arith.constant 0 : i32
    %c0_i32_1 = arith.constant 0 : i32
    return %arg0, %c0_i32, %c0_i32_0 : i32, i32, i32
  }
}

module attributes {stable_mosaic.version = 11 : i64} {
  func.func @_embed_kernel(%arg0: memref<2x8x2xf32, #tpu.memory_space<vmem>>, %arg1: memref<2x32xf32, #tpu.memory_space<vmem>>, %arg2: memref<2x8x32xf32, #tpu.memory_space<vmem>>) attributes {dimension_semantics = [], scalar_prefetch = 0 : i64, scratch_operands = 0 : i64, tpu.core_type = #tpu.core_type<tc>} {
    %c0 = arith.constant 0 : index
    %c0_0 = arith.constant 0 : index
    %0 = vector.load %arg1[%c0, %c0_0] : memref<2x32xf32, #tpu.memory_space<vmem>>, vector<2x32xf32>
    %c0_1 = arith.constant 0 : index
    %c0_2 = arith.constant 0 : index
    %c0_3 = arith.constant 0 : index
    %1 = vector.load %arg0[%c0_1, %c0_2, %c0_3] : memref<2x8x2xf32, #tpu.memory_space<vmem>>, vector<1x8x2xf32>
    %2 = vector.shape_cast %1 : vector<1x8x2xf32> to vector<8x2xf32>
    %cst = arith.constant dense<0.000000e+00> : vector<8x32xf32>
    %3 = tpu.matmul %2, %0, %cst {dimension_numbers = #tpu.dot_dimension_numbers<[1], [0], [0], [1], [0, 0, 1, 1], [], []>} : vector<8x2xf32>, vector<2x32xf32>, vector<8x32xf32> -> vector<8x32xf32>
    %c0_4 = arith.constant 0 : index
    %c0_5 = arith.constant 0 : index
    %c0_6 = arith.constant 0 : index
    %4 = vector.load %arg2[%c0_4, %c0_5, %c0_6] : memref<2x8x32xf32, #tpu.memory_space<vmem>>, vector<1x8x32xf32>
    %5 = vector.shape_cast %4 : vector<1x8x32xf32> to vector<8x32xf32>
    %6 = vector.shape_cast %3 : vector<8x32xf32> to vector<1x8x32xf32>
    tpu.vector_store %arg2[%c0_4, %c0_5, %c0_6], %6 {strides = array<i32>} : memref<2x8x32xf32, #tpu.memory_space<vmem>>, vector<1x8x32xf32>,
    %c1 = arith.constant 1 : index
    %c0_7 = arith.constant 0 : index
    %c0_8 = arith.constant 0 : index
    %7 = vector.load %arg0[%c1, %c0_7, %c0_8] : memref<2x8x2xf32, #tpu.memory_space<vmem>>, vector<1x8x2xf32>
    %8 = vector.shape_cast %7 : vector<1x8x2xf32> to vector<8x2xf32>
    %cst_9 = arith.constant dense<0.000000e+00> : vector<8x32xf32>
    %9 = tpu.matmul %8, %0, %cst_9 {dimension_numbers = #tpu.dot_dimension_numbers<[1], [0], [0], [1], [0, 0, 1, 1], [], []>} : vector<8x2xf32>, vector<2x32xf32>, vector<8x32xf32> -> vector<8x32xf32>
    %c1_10 = arith.constant 1 : index
    %c0_11 = arith.constant 0 : index
    %c0_12 = arith.constant 0 : index
    %10 = vector.load %arg2[%c1_10, %c0_11, %c0_12] : memref<2x8x32xf32, #tpu.memory_space<vmem>>, vector<1x8x32xf32>
    %11 = vector.shape_cast %10 : vector<1x8x32xf32> to vector<8x32xf32>
    %12 = vector.shape_cast %9 : vector<8x32xf32> to vector<1x8x32xf32>
    tpu.vector_store %arg2[%c1_10, %c0_11, %c0_12], %12 {strides = array<i32>} : memref<2x8x32xf32, #tpu.memory_space<vmem>>, vector<1x8x32xf32>,
    return
  }
}

module attributes {stable_mosaic.version = 11 : i64} {
  func.func @_encoder_layer_kernel(%arg0: memref<2x9x32xf32, #tpu.memory_space<vmem>>, %arg1: memref<4x32x32xbf16, #tpu.memory_space<vmem>>, %arg2: memref<4x32xf32, #tpu.memory_space<vmem>>, %arg3: memref<32x64xbf16, #tpu.memory_space<vmem>>, %arg4: memref<1x64xf32, #tpu.memory_space<vmem>>, %arg5: memref<64x32xbf16, #tpu.memory_space<vmem>>, %arg6: memref<1x32xf32, #tpu.memory_space<vmem>>, %arg7: memref<4x32xf32, #tpu.memory_space<vmem>>, %arg8: memref<2x9x32xf32, #tpu.memory_space<vmem>>) attributes {dimension_semantics = [], scalar_prefetch = 0 : i64, scratch_operands = 0 : i64, tpu.core_type = #tpu.core_type<tc>} {
    %c0 = arith.constant 0 : index
    %c0_0 = arith.constant 0 : index
    %0 = vector.load %arg2[%c0, %c0_0] : memref<4x32xf32, #tpu.memory_space<vmem>>, vector<4x32xf32>
    %c0_1 = arith.constant 0 : index
    %c0_2 = arith.constant 0 : index
    %1 = vector.load %arg7[%c0_1, %c0_2] : memref<4x32xf32, #tpu.memory_space<vmem>>, vector<4x32xf32>
    %c0_3 = arith.constant 0 : index
    %c0_4 = arith.constant 0 : index
    %2 = vector.load %arg3[%c0_3, %c0_4] : memref<32x64xbf16, #tpu.memory_space<vmem>>, vector<32x64xbf16>
    %c0_5 = arith.constant 0 : index
    %c0_6 = arith.constant 0 : index
    %3 = vector.load %arg4[%c0_5, %c0_6] : memref<1x64xf32, #tpu.memory_space<vmem>>, vector<1x64xf32>
    %c0_7 = arith.constant 0 : index
    %c0_8 = arith.constant 0 : index
    %4 = vector.load %arg5[%c0_7, %c0_8] : memref<64x32xbf16, #tpu.memory_space<vmem>>, vector<64x32xbf16>
    %c0_9 = arith.constant 0 : index
    %c0_10 = arith.constant 0 : index
    %5 = vector.load %arg6[%c0_9, %c0_10] : memref<1x32xf32, #tpu.memory_space<vmem>>, vector<1x32xf32>
    %cst = arith.constant 0.000000e+00 : f32
    %6 = vector.broadcast %cst : f32 to vector<1x32xf32>
    %cst_11 = arith.constant 0.000000e+00 : f32
    %7 = vector.broadcast %cst_11 : f32 to vector<1x32xf32>
    %c0_12 = arith.constant 0 : index
    %c0_13 = arith.constant 0 : index
    %c0_14 = arith.constant 0 : index
    %8 = vector.load %arg0[%c0_12, %c0_13, %c0_14] : memref<2x9x32xf32, #tpu.memory_space<vmem>>, vector<1x9x32xf32>
    %9 = vector.shape_cast %8 : vector<1x9x32xf32> to vector<9x32xf32>
    %c0_15 = arith.constant 0 : index
    %c0_16 = arith.constant 0 : index
    %c0_17 = arith.constant 0 : index
    %10 = vector.load %arg1[%c0_15, %c0_16, %c0_17] : memref<4x32x32xbf16, #tpu.memory_space<vmem>>, vector<1x32x32xbf16>
    %11 = vector.shape_cast %10 : vector<1x32x32xbf16> to vector<32x32xbf16>
    %12 = arith.truncf %9 : vector<9x32xf32> to vector<9x32xbf16>
    %cst_18 = arith.constant dense<0.000000e+00> : vector<9x32xf32>
    %13 = tpu.matmul %12, %11, %cst_18 {dimension_numbers = #tpu.dot_dimension_numbers<[1], [0], [0], [1], [0, 0, 1, 1], [], []>} : vector<9x32xbf16>, vector<32x32xbf16>, vector<9x32xf32> -> vector<9x32xf32>
    %14 = vector.extract_strided_slice %0 {offsets = [0, 0], sizes = [1, 32], strides = [1, 1]} : vector<4x32xf32> to vector<1x32xf32>
    %15 = vector.broadcast %14 : vector<1x32xf32> to vector<9x32xf32>
    %16 = arith.addf %13, %15 : vector<9x32xf32>
    %c1 = arith.constant 1 : index
    %c0_19 = arith.constant 0 : index
    %c0_20 = arith.constant 0 : index
    %17 = vector.load %arg1[%c1, %c0_19, %c0_20] : memref<4x32x32xbf16, #tpu.memory_space<vmem>>, vector<1x32x32xbf16>
    %18 = vector.shape_cast %17 : vector<1x32x32xbf16> to vector<32x32xbf16>
    %19 = arith.truncf %9 : vector<9x32xf32> to vector<9x32xbf16>
    %cst_21 = arith.constant dense<0.000000e+00> : vector<9x32xf32>
    %20 = tpu.matmul %19, %18, %cst_21 {dimension_numbers = #tpu.dot_dimension_numbers<[1], [0], [0], [1], [0, 0, 1, 1], [], []>} : vector<9x32xbf16>, vector<32x32xbf16>, vector<9x32xf32> -> vector<9x32xf32>
    %21 = vector.extract_strided_slice %0 {offsets = [1, 0], sizes = [1, 32], strides = [1, 1]} : vector<4x32xf32> to vector<1x32xf32>
    %22 = vector.broadcast %21 : vector<1x32xf32> to vector<9x32xf32>
    %23 = arith.addf %20, %22 : vector<9x32xf32>
    %c2 = arith.constant 2 : index
    %c0_22 = arith.constant 0 : index
    %c0_23 = arith.constant 0 : index
    %24 = vector.load %arg1[%c2, %c0_22, %c0_23] : memref<4x32x32xbf16, #tpu.memory_space<vmem>>, vector<1x32x32xbf16>
    %25 = vector.shape_cast %24 : vector<1x32x32xbf16> to vector<32x32xbf16>
    %26 = arith.truncf %9 : vector<9x32xf32> to vector<9x32xbf16>
    %cst_24 = arith.constant dense<0.000000e+00> : vector<9x32xf32>
    %27 = tpu.matmul %26, %25, %cst_24 {dimension_numbers = #tpu.dot_dimension_numbers<[1], [0], [0], [1], [0, 0, 1, 1], [], []>} : vector<9x32xbf16>, vector<32x32xbf16>, vector<9x32xf32> -> vector<9x32xf32>
    %28 = vector.extract_strided_slice %0 {offsets = [2, 0], sizes = [1, 32], strides = [1, 1]} : vector<4x32xf32> to vector<1x32xf32>
    %29 = vector.broadcast %28 : vector<1x32xf32> to vector<9x32xf32>
    %30 = arith.addf %27, %29 : vector<9x32xf32>
    %31 = vector.extract_strided_slice %16 {offsets = [0, 0], sizes = [9, 8], strides = [1, 1]} : vector<9x32xf32> to vector<9x8xf32>
    %32 = arith.truncf %31 : vector<9x8xf32> to vector<9x8xbf16>
    %33 = vector.extract_strided_slice %23 {offsets = [0, 0], sizes = [9, 8], strides = [1, 1]} : vector<9x32xf32> to vector<9x8xf32>
    %34 = arith.truncf %33 : vector<9x8xf32> to vector<9x8xbf16>
    %35 = vector.extract_strided_slice %30 {offsets = [0, 0], sizes = [9, 8], strides = [1, 1]} : vector<9x32xf32> to vector<9x8xf32>
    %36 = arith.truncf %35 : vector<9x8xf32> to vector<9x8xbf16>
    %cst_25 = arith.constant dense<0.000000e+00> : vector<9x9xf32>
    %37 = tpu.matmul %32, %34, %cst_25 {dimension_numbers = #tpu.dot_dimension_numbers<[1], [1], [0], [0], [0, 0, 1, 0], [], []>} : vector<9x8xbf16>, vector<9x8xbf16>, vector<9x9xf32> -> vector<9x9xf32>
    %cst_26 = arith.constant 0.353553385 : f32
    %38 = vector.broadcast %cst_26 : f32 to vector<9x9xf32>
    %39 = arith.mulf %37, %38 : vector<9x9xf32>
    %cst_27 = arith.constant dense<0xFF800000> : vector<9xf32>
    %40 = vector.multi_reduction <maximumf>, %39, %cst_27 [1] : vector<9x9xf32> to vector<9xf32>
    %41 = vector.shape_cast %40 : vector<9xf32> to vector<9x1xf32>
    %42 = vector.broadcast %41 : vector<9x1xf32> to vector<9x9xf32>
    %43 = arith.subf %39, %42 : vector<9x9xf32>
    %44 = math.exp %43 : vector<9x9xf32>
    %cst_28 = arith.constant dense<0.000000e+00> : vector<9xf32>
    %45 = vector.multi_reduction <add>, %44, %cst_28 [1] : vector<9x9xf32> to vector<9xf32>
    %46 = vector.shape_cast %45 : vector<9xf32> to vector<9x1xf32>
    %47 = tpu.reciprocal %46 {approx = true} : vector<9x1xf32> -> vector<9x1xf32>
    %48 = vector.broadcast %47 : vector<9x1xf32> to vector<9x9xf32>
    %49 = arith.mulf %44, %48 : vector<9x9xf32>
    %50 = arith.truncf %49 : vector<9x9xf32> to vector<9x9xbf16>
    %cst_29 = arith.constant dense<0.000000e+00> : vector<9x8xf32>
    %51 = tpu.matmul %50, %36, %cst_29 {dimension_numbers = #tpu.dot_dimension_numbers<[1], [0], [0], [1], [0, 0, 1, 1], [], []>} : vector<9x9xbf16>, vector<9x8xbf16>, vector<9x8xf32> -> vector<9x8xf32>
    %52 = vector.extract_strided_slice %16 {offsets = [0, 8], sizes = [9, 8], strides = [1, 1]} : vector<9x32xf32> to vector<9x8xf32>
    %53 = arith.truncf %52 : vector<9x8xf32> to vector<9x8xbf16>
    %54 = vector.extract_strided_slice %23 {offsets = [0, 8], sizes = [9, 8], strides = [1, 1]} : vector<9x32xf32> to vector<9x8xf32>
    %55 = arith.truncf %54 : vector<9x8xf32> to vector<9x8xbf16>
    %56 = vector.extract_strided_slice %30 {offsets = [0, 8], sizes = [9, 8], strides = [1, 1]} : vector<9x32xf32> to vector<9x8xf32>
    %57 = arith.truncf %56 : vector<9x8xf32> to vector<9x8xbf16>
    %cst_30 = arith.constant dense<0.000000e+00> : vector<9x9xf32>
    %58 = tpu.matmul %53, %55, %cst_30 {dimension_numbers = #tpu.dot_dimension_numbers<[1], [1], [0], [0], [0, 0, 1, 0], [], []>} : vector<9x8xbf16>, vector<9x8xbf16>, vector<9x9xf32> -> vector<9x9xf32>
    %cst_31 = arith.constant 0.353553385 : f32
    %59 = vector.broadcast %cst_31 : f32 to vector<9x9xf32>
    %60 = arith.mulf %58, %59 : vector<9x9xf32>
    %cst_32 = arith.constant dense<0xFF800000> : vector<9xf32>
    %61 = vector.multi_reduction <maximumf>, %60, %cst_32 [1] : vector<9x9xf32> to vector<9xf32>
    %62 = vector.shape_cast %61 : vector<9xf32> to vector<9x1xf32>
    %63 = vector.broadcast %62 : vector<9x1xf32> to vector<9x9xf32>
    %64 = arith.subf %60, %63 : vector<9x9xf32>
    %65 = math.exp %64 : vector<9x9xf32>
    %cst_33 = arith.constant dense<0.000000e+00> : vector<9xf32>
    %66 = vector.multi_reduction <add>, %65, %cst_33 [1] : vector<9x9xf32> to vector<9xf32>
    %67 = vector.shape_cast %66 : vector<9xf32> to vector<9x1xf32>
    %68 = tpu.reciprocal %67 {approx = true} : vector<9x1xf32> -> vector<9x1xf32>
    %69 = vector.broadcast %68 : vector<9x1xf32> to vector<9x9xf32>
    %70 = arith.mulf %65, %69 : vector<9x9xf32>
    %71 = arith.truncf %70 : vector<9x9xf32> to vector<9x9xbf16>
    %cst_34 = arith.constant dense<0.000000e+00> : vector<9x8xf32>
    %72 = tpu.matmul %71, %57, %cst_34 {dimension_numbers = #tpu.dot_dimension_numbers<[1], [0], [0], [1], [0, 0, 1, 1], [], []>} : vector<9x9xbf16>, vector<9x8xbf16>, vector<9x8xf32> -> vector<9x8xf32>
    %73 = vector.extract_strided_slice %16 {offsets = [0, 16], sizes = [9, 8], strides = [1, 1]} : vector<9x32xf32> to vector<9x8xf32>
    %74 = arith.truncf %73 : vector<9x8xf32> to vector<9x8xbf16>
    %75 = vector.extract_strided_slice %23 {offsets = [0, 16], sizes = [9, 8], strides = [1, 1]} : vector<9x32xf32> to vector<9x8xf32>
    %76 = arith.truncf %75 : vector<9x8xf32> to vector<9x8xbf16>
    %77 = vector.extract_strided_slice %30 {offsets = [0, 16], sizes = [9, 8], strides = [1, 1]} : vector<9x32xf32> to vector<9x8xf32>
    %78 = arith.truncf %77 : vector<9x8xf32> to vector<9x8xbf16>
    %cst_35 = arith.constant dense<0.000000e+00> : vector<9x9xf32>
    %79 = tpu.matmul %74, %76, %cst_35 {dimension_numbers = #tpu.dot_dimension_numbers<[1], [1], [0], [0], [0, 0, 1, 0], [], []>} : vector<9x8xbf16>, vector<9x8xbf16>, vector<9x9xf32> -> vector<9x9xf32>
    %cst_36 = arith.constant 0.353553385 : f32
    %80 = vector.broadcast %cst_36 : f32 to vector<9x9xf32>
    %81 = arith.mulf %79, %80 : vector<9x9xf32>
    %cst_37 = arith.constant dense<0xFF800000> : vector<9xf32>
    %82 = vector.multi_reduction <maximumf>, %81, %cst_37 [1] : vector<9x9xf32> to vector<9xf32>
    %83 = vector.shape_cast %82 : vector<9xf32> to vector<9x1xf32>
    %84 = vector.broadcast %83 : vector<9x1xf32> to vector<9x9xf32>
    %85 = arith.subf %81, %84 : vector<9x9xf32>
    %86 = math.exp %85 : vector<9x9xf32>
    %cst_38 = arith.constant dense<0.000000e+00> : vector<9xf32>
    %87 = vector.multi_reduction <add>, %86, %cst_38 [1] : vector<9x9xf32> to vector<9xf32>
    %88 = vector.shape_cast %87 : vector<9xf32> to vector<9x1xf32>
    %89 = tpu.reciprocal %88 {approx = true} : vector<9x1xf32> -> vector<9x1xf32>
    %90 = vector.broadcast %89 : vector<9x1xf32> to vector<9x9xf32>
    %91 = arith.mulf %86, %90 : vector<9x9xf32>
    %92 = arith.truncf %91 : vector<9x9xf32> to vector<9x9xbf16>
    %cst_39 = arith.constant dense<0.000000e+00> : vector<9x8xf32>
    %93 = tpu.matmul %92, %78, %cst_39 {dimension_numbers = #tpu.dot_dimension_numbers<[1], [0], [0], [1], [0, 0, 1, 1], [], []>} : vector<9x9xbf16>, vector<9x8xbf16>, vector<9x8xf32> -> vector<9x8xf32>
    %94 = vector.extract_strided_slice %16 {offsets = [0, 24], sizes = [9, 8], strides = [1, 1]} : vector<9x32xf32> to vector<9x8xf32>
    %95 = arith.truncf %94 : vector<9x8xf32> to vector<9x8xbf16>
    %96 = vector.extract_strided_slice %23 {offsets = [0, 24], sizes = [9, 8], strides = [1, 1]} : vector<9x32xf32> to vector<9x8xf32>
    %97 = arith.truncf %96 : vector<9x8xf32> to vector<9x8xbf16>
    %98 = vector.extract_strided_slice %30 {offsets = [0, 24], sizes = [9, 8], strides = [1, 1]} : vector<9x32xf32> to vector<9x8xf32>
    %99 = arith.truncf %98 : vector<9x8xf32> to vector<9x8xbf16>
    %cst_40 = arith.constant dense<0.000000e+00> : vector<9x9xf32>
    %100 = tpu.matmul %95, %97, %cst_40 {dimension_numbers = #tpu.dot_dimension_numbers<[1], [1], [0], [0], [0, 0, 1, 0], [], []>} : vector<9x8xbf16>, vector<9x8xbf16>, vector<9x9xf32> -> vector<9x9xf32>
    %cst_41 = arith.constant 0.353553385 : f32
    %101 = vector.broadcast %cst_41 : f32 to vector<9x9xf32>
    %102 = arith.mulf %100, %101 : vector<9x9xf32>
    %cst_42 = arith.constant dense<0xFF800000> : vector<9xf32>
    %103 = vector.multi_reduction <maximumf>, %102, %cst_42 [1] : vector<9x9xf32> to vector<9xf32>
    %104 = vector.shape_cast %103 : vector<9xf32> to vector<9x1xf32>
    %105 = vector.broadcast %104 : vector<9x1xf32> to vector<9x9xf32>
    %106 = arith.subf %102, %105 : vector<9x9xf32>
    %107 = math.exp %106 : vector<9x9xf32>
    %cst_43 = arith.constant dense<0.000000e+00> : vector<9xf32>
    %108 = vector.multi_reduction <add>, %107, %cst_43 [1] : vector<9x9xf32> to vector<9xf32>
    %109 = vector.shape_cast %108 : vector<9xf32> to vector<9x1xf32>
    %110 = tpu.reciprocal %109 {approx = true} : vector<9x1xf32> -> vector<9x1xf32>
    %111 = vector.broadcast %110 : vector<9x1xf32> to vector<9x9xf32>
    %112 = arith.mulf %107, %111 : vector<9x9xf32>
    %113 = arith.truncf %112 : vector<9x9xf32> to vector<9x9xbf16>
    %cst_44 = arith.constant dense<0.000000e+00> : vector<9x8xf32>
    %114 = tpu.matmul %113, %99, %cst_44 {dimension_numbers = #tpu.dot_dimension_numbers<[1], [0], [0], [1], [0, 0, 1, 1], [], []>} : vector<9x9xbf16>, vector<9x8xbf16>, vector<9x8xf32> -> vector<9x8xf32>
    %115 = tpu.concatenate %51, %72, %93, %114 in 1 : vector<9x8xf32>, vector<9x8xf32>, vector<9x8xf32>, vector<9x8xf32> -> vector<9x32xf32>
    %c3 = arith.constant 3 : index
    %c0_45 = arith.constant 0 : index
    %c0_46 = arith.constant 0 : index
    %116 = vector.load %arg1[%c3, %c0_45, %c0_46] : memref<4x32x32xbf16, #tpu.memory_space<vmem>>, vector<1x32x32xbf16>
    %117 = vector.shape_cast %116 : vector<1x32x32xbf16> to vector<32x32xbf16>
    %118 = arith.truncf %115 : vector<9x32xf32> to vector<9x32xbf16>
    %cst_47 = arith.constant dense<0.000000e+00> : vector<9x32xf32>
    %119 = tpu.matmul %118, %117, %cst_47 {dimension_numbers = #tpu.dot_dimension_numbers<[1], [0], [0], [1], [0, 0, 1, 1], [], []>} : vector<9x32xbf16>, vector<32x32xbf16>, vector<9x32xf32> -> vector<9x32xf32>
    %120 = arith.addf %9, %119 : vector<9x32xf32>
    %121 = vector.extract_strided_slice %0 {offsets = [3, 0], sizes = [1, 32], strides = [1, 1]} : vector<4x32xf32> to vector<1x32xf32>
    %122 = vector.broadcast %121 : vector<1x32xf32> to vector<9x32xf32>
    %123 = arith.addf %120, %122 : vector<9x32xf32>
    %cst_48 = arith.constant dense<0.000000e+00> : vector<32xf32>
    %124 = vector.multi_reduction <add>, %123, %cst_48 [0] : vector<9x32xf32> to vector<32xf32>
    %125 = vector.shape_cast %124 : vector<32xf32> to vector<1x32xf32>
    %126 = arith.addf %6, %125 : vector<1x32xf32>
    %127 = arith.mulf %123, %123 : vector<9x32xf32>
    %cst_49 = arith.constant dense<0.000000e+00> : vector<32xf32>
    %128 = vector.multi_reduction <add>, %127, %cst_49 [0] : vector<9x32xf32> to vector<32xf32>
    %129 = vector.shape_cast %128 : vector<32xf32> to vector<1x32xf32>
    %130 = arith.addf %7, %129 : vector<1x32xf32>
    %c1_50 = arith.constant 1 : index
    %c0_51 = arith.constant 0 : index
    %c0_52 = arith.constant 0 : index
    %131 = vector.load %arg0[%c1_50, %c0_51, %c0_52] : memref<2x9x32xf32, #tpu.memory_space<vmem>>, vector<1x9x32xf32>
    %132 = vector.shape_cast %131 : vector<1x9x32xf32> to vector<9x32xf32>
    %c0_53 = arith.constant 0 : index
    %c0_54 = arith.constant 0 : index
    %c0_55 = arith.constant 0 : index
    %133 = vector.load %arg1[%c0_53, %c0_54, %c0_55] : memref<4x32x32xbf16, #tpu.memory_space<vmem>>, vector<1x32x32xbf16>
    %134 = vector.shape_cast %133 : vector<1x32x32xbf16> to vector<32x32xbf16>
    %135 = arith.truncf %132 : vector<9x32xf32> to vector<9x32xbf16>
    %cst_56 = arith.constant dense<0.000000e+00> : vector<9x32xf32>
    %136 = tpu.matmul %135, %134, %cst_56 {dimension_numbers = #tpu.dot_dimension_numbers<[1], [0], [0], [1], [0, 0, 1, 1], [], []>} : vector<9x32xbf16>, vector<32x32xbf16>, vector<9x32xf32> -> vector<9x32xf32>
    %137 = vector.extract_strided_slice %0 {offsets = [0, 0], sizes = [1, 32], strides = [1, 1]} : vector<4x32xf32> to vector<1x32xf32>
    %138 = vector.broadcast %137 : vector<1x32xf32> to vector<9x32xf32>
    %139 = arith.addf %136, %138 : vector<9x32xf32>
    %c1_57 = arith.constant 1 : index
    %c0_58 = arith.constant 0 : index
    %c0_59 = arith.constant 0 : index
    %140 = vector.load %arg1[%c1_57, %c0_58, %c0_59] : memref<4x32x32xbf16, #tpu.memory_space<vmem>>, vector<1x32x32xbf16>
    %141 = vector.shape_cast %140 : vector<1x32x32xbf16> to vector<32x32xbf16>
    %142 = arith.truncf %132 : vector<9x32xf32> to vector<9x32xbf16>
    %cst_60 = arith.constant dense<0.000000e+00> : vector<9x32xf32>
    %143 = tpu.matmul %142, %141, %cst_60 {dimension_numbers = #tpu.dot_dimension_numbers<[1], [0], [0], [1], [0, 0, 1, 1], [], []>} : vector<9x32xbf16>, vector<32x32xbf16>, vector<9x32xf32> -> vector<9x32xf32>
    %144 = vector.extract_strided_slice %0 {offsets = [1, 0], sizes = [1, 32], strides = [1, 1]} : vector<4x32xf32> to vector<1x32xf32>
    %145 = vector.broadcast %144 : vector<1x32xf32> to vector<9x32xf32>
    %146 = arith.addf %143, %145 : vector<9x32xf32>
    %c2_61 = arith.constant 2 : index
    %c0_62 = arith.constant 0 : index
    %c0_63 = arith.constant 0 : index
    %147 = vector.load %arg1[%c2_61, %c0_62, %c0_63] : memref<4x32x32xbf16, #tpu.memory_space<vmem>>, vector<1x32x32xbf16>
    %148 = vector.shape_cast %147 : vector<1x32x32xbf16> to vector<32x32xbf16>
    %149 = arith.truncf %132 : vector<9x32xf32> to vector<9x32xbf16>
    %cst_64 = arith.constant dense<0.000000e+00> : vector<9x32xf32>
    %150 = tpu.matmul %149, %148, %cst_64 {dimension_numbers = #tpu.dot_dimension_numbers<[1], [0], [0], [1], [0, 0, 1, 1], [], []>} : vector<9x32xbf16>, vector<32x32xbf16>, vector<9x32xf32> -> vector<9x32xf32>
    %151 = vector.extract_strided_slice %0 {offsets = [2, 0], sizes = [1, 32], strides = [1, 1]} : vector<4x32xf32> to vector<1x32xf32>
    %152 = vector.broadcast %151 : vector<1x32xf32> to vector<9x32xf32>
    %153 = arith.addf %150, %152 : vector<9x32xf32>
    %154 = vector.extract_strided_slice %139 {offsets = [0, 0], sizes = [9, 8], strides = [1, 1]} : vector<9x32xf32> to vector<9x8xf32>
    %155 = arith.truncf %154 : vector<9x8xf32> to vector<9x8xbf16>
    %156 = vector.extract_strided_slice %146 {offsets = [0, 0], sizes = [9, 8], strides = [1, 1]} : vector<9x32xf32> to vector<9x8xf32>
    %157 = arith.truncf %156 : vector<9x8xf32> to vector<9x8xbf16>
    %158 = vector.extract_strided_slice %153 {offsets = [0, 0], sizes = [9, 8], strides = [1, 1]} : vector<9x32xf32> to vector<9x8xf32>
    %159 = arith.truncf %158 : vector<9x8xf32> to vector<9x8xbf16>
    %cst_65 = arith.constant dense<0.000000e+00> : vector<9x9xf32>
    %160 = tpu.matmul %155, %157, %cst_65 {dimension_numbers = #tpu.dot_dimension_numbers<[1], [1], [0], [0], [0, 0, 1, 0], [], []>} : vector<9x8xbf16>, vector<9x8xbf16>, vector<9x9xf32> -> vector<9x9xf32>
    %cst_66 = arith.constant 0.353553385 : f32
    %161 = vector.broadcast %cst_66 : f32 to vector<9x9xf32>
    %162 = arith.mulf %160, %161 : vector<9x9xf32>
    %cst_67 = arith.constant dense<0xFF800000> : vector<9xf32>
    %163 = vector.multi_reduction <maximumf>, %162, %cst_67 [1] : vector<9x9xf32> to vector<9xf32>
    %164 = vector.shape_cast %163 : vector<9xf32> to vector<9x1xf32>
    %165 = vector.broadcast %164 : vector<9x1xf32> to vector<9x9xf32>
    %166 = arith.subf %162, %165 : vector<9x9xf32>
    %167 = math.exp %166 : vector<9x9xf32>
    %cst_68 = arith.constant dense<0.000000e+00> : vector<9xf32>
    %168 = vector.multi_reduction <add>, %167, %cst_68 [1] : vector<9x9xf32> to vector<9xf32>
    %169 = vector.shape_cast %168 : vector<9xf32> to vector<9x1xf32>
    %170 = tpu.reciprocal %169 {approx = true} : vector<9x1xf32> -> vector<9x1xf32>
    %171 = vector.broadcast %170 : vector<9x1xf32> to vector<9x9xf32>
    %172 = arith.mulf %167, %171 : vector<9x9xf32>
    %173 = arith.truncf %172 : vector<9x9xf32> to vector<9x9xbf16>
    %cst_69 = arith.constant dense<0.000000e+00> : vector<9x8xf32>
    %174 = tpu.matmul %173, %159, %cst_69 {dimension_numbers = #tpu.dot_dimension_numbers<[1], [0], [0], [1], [0, 0, 1, 1], [], []>} : vector<9x9xbf16>, vector<9x8xbf16>, vector<9x8xf32> -> vector<9x8xf32>
    %175 = vector.extract_strided_slice %139 {offsets = [0, 8], sizes = [9, 8], strides = [1, 1]} : vector<9x32xf32> to vector<9x8xf32>
    %176 = arith.truncf %175 : vector<9x8xf32> to vector<9x8xbf16>
    %177 = vector.extract_strided_slice %146 {offsets = [0, 8], sizes = [9, 8], strides = [1, 1]} : vector<9x32xf32> to vector<9x8xf32>
    %178 = arith.truncf %177 : vector<9x8xf32> to vector<9x8xbf16>
    %179 = vector.extract_strided_slice %153 {offsets = [0, 8], sizes = [9, 8], strides = [1, 1]} : vector<9x32xf32> to vector<9x8xf32>
    %180 = arith.truncf %179 : vector<9x8xf32> to vector<9x8xbf16>
    %cst_70 = arith.constant dense<0.000000e+00> : vector<9x9xf32>
    %181 = tpu.matmul %176, %178, %cst_70 {dimension_numbers = #tpu.dot_dimension_numbers<[1], [1], [0], [0], [0, 0, 1, 0], [], []>} : vector<9x8xbf16>, vector<9x8xbf16>, vector<9x9xf32> -> vector<9x9xf32>
    %cst_71 = arith.constant 0.353553385 : f32
    %182 = vector.broadcast %cst_71 : f32 to vector<9x9xf32>
    %183 = arith.mulf %181, %182 : vector<9x9xf32>
    %cst_72 = arith.constant dense<0xFF800000> : vector<9xf32>
    %184 = vector.multi_reduction <maximumf>, %183, %cst_72 [1] : vector<9x9xf32> to vector<9xf32>
    %185 = vector.shape_cast %184 : vector<9xf32> to vector<9x1xf32>
    %186 = vector.broadcast %185 : vector<9x1xf32> to vector<9x9xf32>
    %187 = arith.subf %183, %186 : vector<9x9xf32>
    %188 = math.exp %187 : vector<9x9xf32>
    %cst_73 = arith.constant dense<0.000000e+00> : vector<9xf32>
    %189 = vector.multi_reduction <add>, %188, %cst_73 [1] : vector<9x9xf32> to vector<9xf32>
    %190 = vector.shape_cast %189 : vector<9xf32> to vector<9x1xf32>
    %191 = tpu.reciprocal %190 {approx = true} : vector<9x1xf32> -> vector<9x1xf32>
    %192 = vector.broadcast %191 : vector<9x1xf32> to vector<9x9xf32>
    %193 = arith.mulf %188, %192 : vector<9x9xf32>
    %194 = arith.truncf %193 : vector<9x9xf32> to vector<9x9xbf16>
    %cst_74 = arith.constant dense<0.000000e+00> : vector<9x8xf32>
    %195 = tpu.matmul %194, %180, %cst_74 {dimension_numbers = #tpu.dot_dimension_numbers<[1], [0], [0], [1], [0, 0, 1, 1], [], []>} : vector<9x9xbf16>, vector<9x8xbf16>, vector<9x8xf32> -> vector<9x8xf32>
    %196 = vector.extract_strided_slice %139 {offsets = [0, 16], sizes = [9, 8], strides = [1, 1]} : vector<9x32xf32> to vector<9x8xf32>
    %197 = arith.truncf %196 : vector<9x8xf32> to vector<9x8xbf16>
    %198 = vector.extract_strided_slice %146 {offsets = [0, 16], sizes = [9, 8], strides = [1, 1]} : vector<9x32xf32> to vector<9x8xf32>
    %199 = arith.truncf %198 : vector<9x8xf32> to vector<9x8xbf16>
    %200 = vector.extract_strided_slice %153 {offsets = [0, 16], sizes = [9, 8], strides = [1, 1]} : vector<9x32xf32> to vector<9x8xf32>
    %201 = arith.truncf %200 : vector<9x8xf32> to vector<9x8xbf16>
    %cst_75 = arith.constant dense<0.000000e+00> : vector<9x9xf32>
    %202 = tpu.matmul %197, %199, %cst_75 {dimension_numbers = #tpu.dot_dimension_numbers<[1], [1], [0], [0], [0, 0, 1, 0], [], []>} : vector<9x8xbf16>, vector<9x8xbf16>, vector<9x9xf32> -> vector<9x9xf32>
    %cst_76 = arith.constant 0.353553385 : f32
    %203 = vector.broadcast %cst_76 : f32 to vector<9x9xf32>
    %204 = arith.mulf %202, %203 : vector<9x9xf32>
    %cst_77 = arith.constant dense<0xFF800000> : vector<9xf32>
    %205 = vector.multi_reduction <maximumf>, %204, %cst_77 [1] : vector<9x9xf32> to vector<9xf32>
    %206 = vector.shape_cast %205 : vector<9xf32> to vector<9x1xf32>
    %207 = vector.broadcast %206 : vector<9x1xf32> to vector<9x9xf32>
    %208 = arith.subf %204, %207 : vector<9x9xf32>
    %209 = math.exp %208 : vector<9x9xf32>
    %cst_78 = arith.constant dense<0.000000e+00> : vector<9xf32>
    %210 = vector.multi_reduction <add>, %209, %cst_78 [1] : vector<9x9xf32> to vector<9xf32>
    %211 = vector.shape_cast %210 : vector<9xf32> to vector<9x1xf32>
    %212 = tpu.reciprocal %211 {approx = true} : vector<9x1xf32> -> vector<9x1xf32>
    %213 = vector.broadcast %212 : vector<9x1xf32> to vector<9x9xf32>
    %214 = arith.mulf %209, %213 : vector<9x9xf32>
    %215 = arith.truncf %214 : vector<9x9xf32> to vector<9x9xbf16>
    %cst_79 = arith.constant dense<0.000000e+00> : vector<9x8xf32>
    %216 = tpu.matmul %215, %201, %cst_79 {dimension_numbers = #tpu.dot_dimension_numbers<[1], [0], [0], [1], [0, 0, 1, 1], [], []>} : vector<9x9xbf16>, vector<9x8xbf16>, vector<9x8xf32> -> vector<9x8xf32>
    %217 = vector.extract_strided_slice %139 {offsets = [0, 24], sizes = [9, 8], strides = [1, 1]} : vector<9x32xf32> to vector<9x8xf32>
    %218 = arith.truncf %217 : vector<9x8xf32> to vector<9x8xbf16>
    %219 = vector.extract_strided_slice %146 {offsets = [0, 24], sizes = [9, 8], strides = [1, 1]} : vector<9x32xf32> to vector<9x8xf32>
    %220 = arith.truncf %219 : vector<9x8xf32> to vector<9x8xbf16>
    %221 = vector.extract_strided_slice %153 {offsets = [0, 24], sizes = [9, 8], strides = [1, 1]} : vector<9x32xf32> to vector<9x8xf32>
    %222 = arith.truncf %221 : vector<9x8xf32> to vector<9x8xbf16>
    %cst_80 = arith.constant dense<0.000000e+00> : vector<9x9xf32>
    %223 = tpu.matmul %218, %220, %cst_80 {dimension_numbers = #tpu.dot_dimension_numbers<[1], [1], [0], [0], [0, 0, 1, 0], [], []>} : vector<9x8xbf16>, vector<9x8xbf16>, vector<9x9xf32> -> vector<9x9xf32>
    %cst_81 = arith.constant 0.353553385 : f32
    %224 = vector.broadcast %cst_81 : f32 to vector<9x9xf32>
    %225 = arith.mulf %223, %224 : vector<9x9xf32>
    %cst_82 = arith.constant dense<0xFF800000> : vector<9xf32>
    %226 = vector.multi_reduction <maximumf>, %225, %cst_82 [1] : vector<9x9xf32> to vector<9xf32>
    %227 = vector.shape_cast %226 : vector<9xf32> to vector<9x1xf32>
    %228 = vector.broadcast %227 : vector<9x1xf32> to vector<9x9xf32>
    %229 = arith.subf %225, %228 : vector<9x9xf32>
    %230 = math.exp %229 : vector<9x9xf32>
    %cst_83 = arith.constant dense<0.000000e+00> : vector<9xf32>
    %231 = vector.multi_reduction <add>, %230, %cst_83 [1] : vector<9x9xf32> to vector<9xf32>
    %232 = vector.shape_cast %231 : vector<9xf32> to vector<9x1xf32>
    %233 = tpu.reciprocal %232 {approx = true} : vector<9x1xf32> -> vector<9x1xf32>
    %234 = vector.broadcast %233 : vector<9x1xf32> to vector<9x9xf32>
    %235 = arith.mulf %230, %234 : vector<9x9xf32>
    %236 = arith.truncf %235 : vector<9x9xf32> to vector<9x9xbf16>
    %cst_84 = arith.constant dense<0.000000e+00> : vector<9x8xf32>
    %237 = tpu.matmul %236, %222, %cst_84 {dimension_numbers = #tpu.dot_dimension_numbers<[1], [0], [0], [1], [0, 0, 1, 1], [], []>} : vector<9x9xbf16>, vector<9x8xbf16>, vector<9x8xf32> -> vector<9x8xf32>
    %238 = tpu.concatenate %174, %195, %216, %237 in 1 : vector<9x8xf32>, vector<9x8xf32>, vector<9x8xf32>, vector<9x8xf32> -> vector<9x32xf32>
    %c3_85 = arith.constant 3 : index
    %c0_86 = arith.constant 0 : index
    %c0_87 = arith.constant 0 : index
    %239 = vector.load %arg1[%c3_85, %c0_86, %c0_87] : memref<4x32x32xbf16, #tpu.memory_space<vmem>>, vector<1x32x32xbf16>
    %240 = vector.shape_cast %239 : vector<1x32x32xbf16> to vector<32x32xbf16>
    %241 = arith.truncf %238 : vector<9x32xf32> to vector<9x32xbf16>
    %cst_88 = arith.constant dense<0.000000e+00> : vector<9x32xf32>
    %242 = tpu.matmul %241, %240, %cst_88 {dimension_numbers = #tpu.dot_dimension_numbers<[1], [0], [0], [1], [0, 0, 1, 1], [], []>} : vector<9x32xbf16>, vector<32x32xbf16>, vector<9x32xf32> -> vector<9x32xf32>
    %243 = arith.addf %132, %242 : vector<9x32xf32>
    %244 = vector.extract_strided_slice %0 {offsets = [3, 0], sizes = [1, 32], strides = [1, 1]} : vector<4x32xf32> to vector<1x32xf32>
    %245 = vector.broadcast %244 : vector<1x32xf32> to vector<9x32xf32>
    %246 = arith.addf %243, %245 : vector<9x32xf32>
    %cst_89 = arith.constant dense<0.000000e+00> : vector<32xf32>
    %247 = vector.multi_reduction <add>, %246, %cst_89 [0] : vector<9x32xf32> to vector<32xf32>
    %248 = vector.shape_cast %247 : vector<32xf32> to vector<1x32xf32>
    %249 = arith.addf %126, %248 : vector<1x32xf32>
    %250 = arith.mulf %246, %246 : vector<9x32xf32>
    %cst_90 = arith.constant dense<0.000000e+00> : vector<32xf32>
    %251 = vector.multi_reduction <add>, %250, %cst_90 [0] : vector<9x32xf32> to vector<32xf32>
    %252 = vector.shape_cast %251 : vector<32xf32> to vector<1x32xf32>
    %253 = arith.addf %130, %252 : vector<1x32xf32>
    %cst_91 = arith.constant 0.055555556 : f32
    %254 = vector.broadcast %cst_91 : f32 to vector<1x32xf32>
    %255 = arith.mulf %249, %254 : vector<1x32xf32>
    %cst_92 = arith.constant 0.055555556 : f32
    %256 = vector.broadcast %cst_92 : f32 to vector<1x32xf32>
    %257 = arith.mulf %253, %256 : vector<1x32xf32>
    %258 = arith.mulf %255, %255 : vector<1x32xf32>
    %259 = arith.subf %257, %258 : vector<1x32xf32>
    %cst_93 = arith.constant 0.000000e+00 : f32
    %260 = vector.broadcast %cst_93 : f32 to vector<1x32xf32>
    %261 = arith.maximumf %259, %260 : vector<1x32xf32>
    %262 = vector.extract_strided_slice %1 {offsets = [0, 0], sizes = [1, 32], strides = [1, 1]} : vector<4x32xf32> to vector<1x32xf32>
    %cst_94 = arith.constant 9.99999974E-6 : f32
    %263 = vector.broadcast %cst_94 : f32 to vector<1x32xf32>
    %264 = arith.addf %261, %263 : vector<1x32xf32>
    %265 = math.rsqrt %264 : vector<1x32xf32>
    %266 = arith.mulf %262, %265 : vector<1x32xf32>
    %267 = vector.extract_strided_slice %1 {offsets = [1, 0], sizes = [1, 32], strides = [1, 1]} : vector<4x32xf32> to vector<1x32xf32>
    %268 = arith.mulf %255, %266 : vector<1x32xf32>
    %269 = arith.subf %267, %268 : vector<1x32xf32>
    %cst_95 = arith.constant 0.000000e+00 : f32
    %270 = vector.broadcast %cst_95 : f32 to vector<1x32xf32>
    %cst_96 = arith.constant 0.000000e+00 : f32
    %271 = vector.broadcast %cst_96 : f32 to vector<1x32xf32>
    %272 = vector.broadcast %266 : vector<1x32xf32> to vector<9x32xf32>
    %273 = arith.mulf %123, %272 : vector<9x32xf32>
    %274 = vector.broadcast %269 : vector<1x32xf32> to vector<9x32xf32>
    %275 = arith.addf %273, %274 : vector<9x32xf32>
    %276 = arith.truncf %275 : vector<9x32xf32> to vector<9x32xbf16>
    %cst_97 = arith.constant dense<0.000000e+00> : vector<9x64xf32>
    %277 = tpu.matmul %276, %2, %cst_97 {dimension_numbers = #tpu.dot_dimension_numbers<[1], [0], [0], [1], [0, 0, 1, 1], [], []>} : vector<9x32xbf16>, vector<32x64xbf16>, vector<9x64xf32> -> vector<9x64xf32>
    %278 = vector.broadcast %3 : vector<1x64xf32> to vector<9x64xf32>
    %279 = arith.addf %277, %278 : vector<9x64xf32>
    %cst_98 = arith.constant 0.000000e+00 : f32
    %280 = vector.broadcast %cst_98 : f32 to vector<9x64xf32>
    %281 = arith.maximumf %279, %280 : vector<9x64xf32>
    %282 = arith.truncf %281 : vector<9x64xf32> to vector<9x64xbf16>
    %cst_99 = arith.constant dense<0.000000e+00> : vector<9x32xf32>
    %283 = tpu.matmul %282, %4, %cst_99 {dimension_numbers = #tpu.dot_dimension_numbers<[1], [0], [0], [1], [0, 0, 1, 1], [], []>} : vector<9x64xbf16>, vector<64x32xbf16>, vector<9x32xf32> -> vector<9x32xf32>
    %284 = arith.addf %275, %283 : vector<9x32xf32>
    %285 = vector.broadcast %5 : vector<1x32xf32> to vector<9x32xf32>
    %286 = arith.addf %284, %285 : vector<9x32xf32>
    %cst_100 = arith.constant dense<0.000000e+00> : vector<32xf32>
    %287 = vector.multi_reduction <add>, %286, %cst_100 [0] : vector<9x32xf32> to vector<32xf32>
    %288 = vector.shape_cast %287 : vector<32xf32> to vector<1x32xf32>
    %289 = arith.addf %270, %288 : vector<1x32xf32>
    %290 = arith.mulf %286, %286 : vector<9x32xf32>
    %cst_101 = arith.constant dense<0.000000e+00> : vector<32xf32>
    %291 = vector.multi_reduction <add>, %290, %cst_101 [0] : vector<9x32xf32> to vector<32xf32>
    %292 = vector.shape_cast %291 : vector<32xf32> to vector<1x32xf32>
    %293 = arith.addf %271, %292 : vector<1x32xf32>
    %294 = vector.broadcast %266 : vector<1x32xf32> to vector<9x32xf32>
    %295 = arith.mulf %246, %294 : vector<9x32xf32>
    %296 = vector.broadcast %269 : vector<1x32xf32> to vector<9x32xf32>
    %297 = arith.addf %295, %296 : vector<9x32xf32>
    %298 = arith.truncf %297 : vector<9x32xf32> to vector<9x32xbf16>
    %cst_102 = arith.constant dense<0.000000e+00> : vector<9x64xf32>
    %299 = tpu.matmul %298, %2, %cst_102 {dimension_numbers = #tpu.dot_dimension_numbers<[1], [0], [0], [1], [0, 0, 1, 1], [], []>} : vector<9x32xbf16>, vector<32x64xbf16>, vector<9x64xf32> -> vector<9x64xf32>
    %300 = vector.broadcast %3 : vector<1x64xf32> to vector<9x64xf32>
    %301 = arith.addf %299, %300 : vector<9x64xf32>
    %cst_103 = arith.constant 0.000000e+00 : f32
    %302 = vector.broadcast %cst_103 : f32 to vector<9x64xf32>
    %303 = arith.maximumf %301, %302 : vector<9x64xf32>
    %304 = arith.truncf %303 : vector<9x64xf32> to vector<9x64xbf16>
    %cst_104 = arith.constant dense<0.000000e+00> : vector<9x32xf32>
    %305 = tpu.matmul %304, %4, %cst_104 {dimension_numbers = #tpu.dot_dimension_numbers<[1], [0], [0], [1], [0, 0, 1, 1], [], []>} : vector<9x64xbf16>, vector<64x32xbf16>, vector<9x32xf32> -> vector<9x32xf32>
    %306 = arith.addf %297, %305 : vector<9x32xf32>
    %307 = vector.broadcast %5 : vector<1x32xf32> to vector<9x32xf32>
    %308 = arith.addf %306, %307 : vector<9x32xf32>
    %cst_105 = arith.constant dense<0.000000e+00> : vector<32xf32>
    %309 = vector.multi_reduction <add>, %308, %cst_105 [0] : vector<9x32xf32> to vector<32xf32>
    %310 = vector.shape_cast %309 : vector<32xf32> to vector<1x32xf32>
    %311 = arith.addf %289, %310 : vector<1x32xf32>
    %312 = arith.mulf %308, %308 : vector<9x32xf32>
    %cst_106 = arith.constant dense<0.000000e+00> : vector<32xf32>
    %313 = vector.multi_reduction <add>, %312, %cst_106 [0] : vector<9x32xf32> to vector<32xf32>
    %314 = vector.shape_cast %313 : vector<32xf32> to vector<1x32xf32>
    %315 = arith.addf %293, %314 : vector<1x32xf32>
    %cst_107 = arith.constant 0.055555556 : f32
    %316 = vector.broadcast %cst_107 : f32 to vector<1x32xf32>
    %317 = arith.mulf %311, %316 : vector<1x32xf32>
    %cst_108 = arith.constant 0.055555556 : f32
    %318 = vector.broadcast %cst_108 : f32 to vector<1x32xf32>
    %319 = arith.mulf %315, %318 : vector<1x32xf32>
    %320 = arith.mulf %317, %317 : vector<1x32xf32>
    %321 = arith.subf %319, %320 : vector<1x32xf32>
    %cst_109 = arith.constant 0.000000e+00 : f32
    %322 = vector.broadcast %cst_109 : f32 to vector<1x32xf32>
    %323 = arith.maximumf %321, %322 : vector<1x32xf32>
    %324 = vector.extract_strided_slice %1 {offsets = [2, 0], sizes = [1, 32], strides = [1, 1]} : vector<4x32xf32> to vector<1x32xf32>
    %cst_110 = arith.constant 9.99999974E-6 : f32
    %325 = vector.broadcast %cst_110 : f32 to vector<1x32xf32>
    %326 = arith.addf %323, %325 : vector<1x32xf32>
    %327 = math.rsqrt %326 : vector<1x32xf32>
    %328 = arith.mulf %324, %327 : vector<1x32xf32>
    %329 = vector.extract_strided_slice %1 {offsets = [3, 0], sizes = [1, 32], strides = [1, 1]} : vector<4x32xf32> to vector<1x32xf32>
    %330 = arith.mulf %317, %328 : vector<1x32xf32>
    %331 = arith.subf %329, %330 : vector<1x32xf32>
    %332 = vector.broadcast %328 : vector<1x32xf32> to vector<9x32xf32>
    %333 = arith.mulf %286, %332 : vector<9x32xf32>
    %334 = vector.broadcast %331 : vector<1x32xf32> to vector<9x32xf32>
    %335 = arith.addf %333, %334 : vector<9x32xf32>
    %c0_111 = arith.constant 0 : index
    %c0_112 = arith.constant 0 : index
    %c0_113 = arith.constant 0 : index
    %336 = vector.load %arg8[%c0_111, %c0_112, %c0_113] : memref<2x9x32xf32, #tpu.memory_space<vmem>>, vector<1x9x32xf32>
    %337 = vector.shape_cast %336 : vector<1x9x32xf32> to vector<9x32xf32>
    %338 = vector.shape_cast %335 : vector<9x32xf32> to vector<1x9x32xf32>
    tpu.vector_store %arg8[%c0_111, %c0_112, %c0_113], %338 {strides = array<i32>} : memref<2x9x32xf32, #tpu.memory_space<vmem>>, vector<1x9x32xf32>,
    %339 = vector.broadcast %328 : vector<1x32xf32> to vector<9x32xf32>
    %340 = arith.mulf %308, %339 : vector<9x32xf32>
    %341 = vector.broadcast %331 : vector<1x32xf32> to vector<9x32xf32>
    %342 = arith.addf %340, %341 : vector<9x32xf32>
    %c1_114 = arith.constant 1 : index
    %c0_115 = arith.constant 0 : index
    %c0_116 = arith.constant 0 : index
    %343 = vector.load %arg8[%c1_114, %c0_115, %c0_116] : memref<2x9x32xf32, #tpu.memory_space<vmem>>, vector<1x9x32xf32>
    %344 = vector.shape_cast %343 : vector<1x9x32xf32> to vector<9x32xf32>
    %345 = vector.shape_cast %342 : vector<9x32xf32> to vector<1x9x32xf32>
    tpu.vector_store %arg8[%c1_114, %c0_115, %c0_116], %345 {strides = array<i32>} : memref<2x9x32xf32, #tpu.memory_space<vmem>>, vector<1x9x32xf32>,
    return
  }
}

module attributes {stable_mosaic.version = 11 : i64} {
  func.func @_final_kernel(%arg0: i32, %arg1: memref<1x9x32xf32, #tpu.memory_space<vmem>>, %arg2: memref<1x9x32xf32, #tpu.memory_space<vmem>>, %arg3: memref<32x32xbf16, #tpu.memory_space<vmem>>, %arg4: memref<1x32xf32, #tpu.memory_space<vmem>>, %arg5: memref<32x32xbf16, #tpu.memory_space<vmem>>, %arg6: memref<1x32xf32, #tpu.memory_space<vmem>>, %arg7: memref<1x9x9xf32, #tpu.memory_space<vmem>>) attributes {dimension_semantics = [#tpu.dimension_semantics<parallel>], iteration_bounds = array<i64: 2>, scalar_prefetch = 0 : i64, scratch_operands = 0 : i64, tpu.core_type = #tpu.core_type<tc>, window_params = [{transform_indices = @transform_0, window_bounds = array<i64: 1, 9, 32>}, {transform_indices = @transform_1, window_bounds = array<i64: 1, 9, 32>}, {pipeline_mode = #tpu.pipeline_mode<synchronous>, transform_indices = @transform_2, window_bounds = array<i64: 32, 32>}, {pipeline_mode = #tpu.pipeline_mode<synchronous>, transform_indices = @transform_3, window_bounds = array<i64: 1, 32>}, {pipeline_mode = #tpu.pipeline_mode<synchronous>, transform_indices = @transform_4, window_bounds = array<i64: 32, 32>}, {pipeline_mode = #tpu.pipeline_mode<synchronous>, transform_indices = @transform_5, window_bounds = array<i64: 1, 32>}, {transform_indices = @transform_6, window_bounds = array<i64: 1, 9, 9>}]} {
    %c0 = arith.constant 0 : index
    %c0_0 = arith.constant 0 : index
    %c0_1 = arith.constant 0 : index
    %0 = vector.load %arg1[%c0, %c0_0, %c0_1] : memref<1x9x32xf32, #tpu.memory_space<vmem>>, vector<1x9x32xf32>
    %1 = vector.shape_cast %0 : vector<1x9x32xf32> to vector<9x32xf32>
    %c0_2 = arith.constant 0 : index
    %c0_3 = arith.constant 0 : index
    %c0_4 = arith.constant 0 : index
    %2 = vector.load %arg2[%c0_2, %c0_3, %c0_4] : memref<1x9x32xf32, #tpu.memory_space<vmem>>, vector<1x9x32xf32>
    %3 = vector.shape_cast %2 : vector<1x9x32xf32> to vector<9x32xf32>
    %c0_5 = arith.constant 0 : index
    %c0_6 = arith.constant 0 : index
    %4 = vector.load %arg3[%c0_5, %c0_6] : memref<32x32xbf16, #tpu.memory_space<vmem>>, vector<32x32xbf16>
    %5 = arith.truncf %3 : vector<9x32xf32> to vector<9x32xbf16>
    %cst = arith.constant dense<0.000000e+00> : vector<9x32xf32>
    %6 = tpu.matmul %5, %4, %cst {dimension_numbers = #tpu.dot_dimension_numbers<[1], [0], [0], [1], [0, 0, 1, 1], [], []>} : vector<9x32xbf16>, vector<32x32xbf16>, vector<9x32xf32> -> vector<9x32xf32>
    %c0_7 = arith.constant 0 : index
    %c0_8 = arith.constant 0 : index
    %7 = vector.load %arg4[%c0_7, %c0_8] : memref<1x32xf32, #tpu.memory_space<vmem>>, vector<1x32xf32>
    %8 = vector.broadcast %7 : vector<1x32xf32> to vector<9x32xf32>
    %9 = arith.addf %6, %8 : vector<9x32xf32>
    %c0_9 = arith.constant 0 : index
    %c0_10 = arith.constant 0 : index
    %10 = vector.load %arg5[%c0_9, %c0_10] : memref<32x32xbf16, #tpu.memory_space<vmem>>, vector<32x32xbf16>
    %11 = arith.truncf %1 : vector<9x32xf32> to vector<9x32xbf16>
    %cst_11 = arith.constant dense<0.000000e+00> : vector<9x32xf32>
    %12 = tpu.matmul %11, %10, %cst_11 {dimension_numbers = #tpu.dot_dimension_numbers<[1], [0], [0], [1], [0, 0, 1, 1], [], []>} : vector<9x32xbf16>, vector<32x32xbf16>, vector<9x32xf32> -> vector<9x32xf32>
    %c0_12 = arith.constant 0 : index
    %c0_13 = arith.constant 0 : index
    %13 = vector.load %arg6[%c0_12, %c0_13] : memref<1x32xf32, #tpu.memory_space<vmem>>, vector<1x32xf32>
    %14 = vector.broadcast %13 : vector<1x32xf32> to vector<9x32xf32>
    %15 = arith.addf %12, %14 : vector<9x32xf32>
    %16 = arith.truncf %15 : vector<9x32xf32> to vector<9x32xbf16>
    %17 = arith.truncf %9 : vector<9x32xf32> to vector<9x32xbf16>
    %cst_14 = arith.constant dense<0.000000e+00> : vector<9x9xf32>
    %18 = tpu.matmul %16, %17, %cst_14 {dimension_numbers = #tpu.dot_dimension_numbers<[1], [1], [0], [0], [0, 0, 1, 0], [], []>} : vector<9x32xbf16>, vector<9x32xbf16>, vector<9x9xf32> -> vector<9x9xf32>
    %cst_15 = arith.constant 0.176776692 : f32
    %19 = vector.broadcast %cst_15 : f32 to vector<9x9xf32>
    %20 = arith.mulf %18, %19 : vector<9x9xf32>
    %21 = math.tanh %20 : vector<9x9xf32>
    %cst_16 = arith.constant 1.000000e+01 : f32
    %22 = vector.broadcast %cst_16 : f32 to vector<9x9xf32>
    %23 = arith.mulf %22, %21 : vector<9x9xf32>
    %c0_17 = arith.constant 0 : index
    %c0_18 = arith.constant 0 : index
    %c0_19 = arith.constant 0 : index
    %24 = vector.load %arg7[%c0_17, %c0_18, %c0_19] : memref<1x9x9xf32, #tpu.memory_space<vmem>>, vector<1x9x9xf32>
    %25 = vector.shape_cast %24 : vector<1x9x9xf32> to vector<9x9xf32>
    %26 = vector.shape_cast %23 : vector<9x9xf32> to vector<1x9x9xf32>
    tpu.vector_store %arg7[%c0_17, %c0_18, %c0_19], %26 {strides = array<i32>} : memref<1x9x9xf32, #tpu.memory_space<vmem>>, vector<1x9x9xf32>,
    return
  }
  func.func @transform_0(%arg0: i32) -> (i32, i32, i32) {
    %c0_i32 = arith.constant 0 : i32
    %c0_i32_0 = arith.constant 0 : i32
    %c0_i32_1 = arith.constant 0 : i32
    return %arg0, %c0_i32, %c0_i32_0 : i32, i32, i32
  }
  func.func @transform_1(%arg0: i32) -> (i32, i32, i32) {
    %c0_i32 = arith.constant 0 : i32
    %c0_i32_0 = arith.constant 0 : i32
    %c0_i32_1 = arith.constant 0 : i32
    return %arg0, %c0_i32, %c0_i32_0 : i32, i32, i32
  }
  func.func @transform_2(%arg0: i32) -> (i32, i32) {
    %c0_i32 = arith.constant 0 : i32
    %c0_i32_0 = arith.constant 0 : i32
    %c0_i32_1 = arith.constant 0 : i32
    return %c0_i32, %c0_i32_0 : i32, i32
  }
  func.func @transform_3(%arg0: i32) -> (i32, i32) {
    %c0_i32 = arith.constant 0 : i32
    %c0_i32_0 = arith.constant 0 : i32
    %c0_i32_1 = arith.constant 0 : i32
    return %c0_i32, %c0_i32_0 : i32, i32
  }
  func.func @transform_4(%arg0: i32) -> (i32, i32) {
    %c0_i32 = arith.constant 0 : i32
    %c0_i32_0 = arith.constant 0 : i32
    %c0_i32_1 = arith.constant 0 : i32
    return %c0_i32, %c0_i32_0 : i32, i32
  }
  func.func @transform_5(%arg0: i32) -> (i32, i32) {
    %c0_i32 = arith.constant 0 : i32
    %c0_i32_0 = arith.constant 0 : i32
    %c0_i32_1 = arith.constant 0 : i32
    return %c0_i32, %c0_i32_0 : i32, i32
  }
  func.func @transform_6(%arg0: i32) -> (i32, i32, i32) {
    %c0_i32 = arith.constant 0 : i32
    %c0_i32_0 = arith.constant 0 : i32
    %c0_i32_1 = arith.constant 0 : i32
    return %arg0, %c0_i32, %c0_i32_0 : i32, i32, i32
  }
}

</mosaic_0001>

<llo_original>
// kernel: nar_tsp_net_forward.5
$region0: #{nar_tsp_net_forward.5}
  #allocation0 [shape = 'u32[]', space=smem, size = 0x4, offset = 0x4, fixed_abs, tag = 'smem constant byte address 0x4 - core index']
  #allocation1 [shape = 'u32[144,128]{1,0:T(1,128)}', space=vmem, size = 0x12000, scoped, tag = 'internal scratch']
  %s0 = inlined_call_operand.vmem [shape: f32[2,8,2], index: 0, kind: input, shape index: {}]
  %s1 = inlined_call_operand.vmem [shape: f32[2,32], index: 1, kind: input, shape index: {}]
  %s2 = inlined_call_operand.vmem [shape: f32[2,8,32], index: 2, kind: output, shape index: {}]
  %s3 = sld [smem:[#allocation0]]
  $region18: #{nar_tsp_net_forward.5} parent=0
    _
  %s5 = ssub.s32 1, %s3
  %s6 = scalar_select 0, %s5, %s3
  // Predicated region
  $region2: #{nar_tsp_net_forward.5} parent=0 // pred_check
    _
  $region3: #{nar_tsp_net_forward.5} parent=0 // pred_check_branch
    %8 = sbr.rel (0) target = $region5
  $region4: #{nar_tsp_net_forward.5} parent=0 // pred_region
    _
  $region5: #{nar_tsp_net_forward.5} parent=0 // pred_fallthru
    _
  // Predicated region
  $region6: #{nar_tsp_net_forward.5} parent=0 // pred_check
    _
  $region7: #{nar_tsp_net_forward.5} parent=0 // pred_check_branch
    %10 = sbr.rel (0) target = $region9
  $region8: #{nar_tsp_net_forward.5} parent=0 // pred_region
    _
  $region9: #{nar_tsp_net_forward.5} parent=0 // pred_fallthru
    _
  %v11 = vld [vmem:[%s1] sm:$0x3]
  %v12 = vld [vmem:[%s0] sm:$0xff]
  %vm13 = vcmask 15360
  %v15 = vsel %vm13, %v12, 0
  %vm17 = vcmask 1041408
  %v19 = vsel %vm17, %v11, 0
  %21 = vmatprep.subr.mxu0 0.0
  %22 = vmatpush1.msra.mxu0 0.0
  %23 = vmatprep.subr.mxu0 0.0
  %24 = vmatpush1.msra.mxu0 0.0
  %25 = vmatprep.subr.mxu0 0.0
  %26 = vmatpush1.msra.mxu0 0.0
  %27 = vmatprep.subr.mxu0 0.0
  %28 = vmatpush1.msra.mxu0 0.0
  %29 = vmatprep.subr.mxu0 0.0
  %30 = vmatpush1.msra.mxu0 0.0
  %31 = vmatprep.subr.mxu0 0.0
  %32 = vmatpush1.msra.mxu0 0.0
  %33 = vmatprep.subr.mxu0 0.0
  %34 = vmatpush1.msra.mxu0 0.0
  %35 = vmatprep.subr.mxu0 0.0
  %36 = vmatpush1.msra.mxu0 0.0
  %37 = vmatprep.subr.mxu0 0.0
  %38 = vmatpush1.msra.mxu0 0.0
  %39 = vmatprep.subr.mxu0 0.0
  %40 = vmatpush1.msra.mxu0 0.0
  %41 = vmatprep.subr.mxu0 0.0
  %42 = vmatpush1.msra.mxu0 0.0
  %43 = vmatprep.subr.mxu0 0.0
  %44 = vmatpush1.msra.mxu0 0.0
  %45 = vmatprep.subr.mxu0 0.0
  %46 = vmatpush1.msra.mxu0 0.0
  %47 = vmatprep.subr.mxu0 0.0
  %48 = vmatpush1.msra.mxu0 0.0
  %49 = vmatprep.subr.mxu0 0.0
  %50 = vmatpush1.msra.mxu0 0.0
  %51 = vmatprep.subr.mxu0 0.0
  %52 = vmatpush1.msra.mxu0 %v19
  %53 = vmatprep.subr.mxu0 0.0
  %54 = vmatpush2.msra.mxu0 0.0
  %55 = vmatprep.subr.mxu0 0.0
  %56 = vmatpush2.msra.mxu0 0.0
  %57 = vmatprep.subr.mxu0 0.0
  %58 = vmatpush2.msra.mxu0 0.0
  %59 = vmatprep.subr.mxu0 0.0
  %60 = vmatpush2.msra.mxu0 0.0
  %61 = vmatprep.subr.mxu0 0.0
  %62 = vmatpush2.msra.mxu0 0.0
  %63 = vmatprep.subr.mxu0 0.0
  %64 = vmatpush2.msra.mxu0 0.0
  %65 = vmatprep.subr.mxu0 0.0
  %66 = vmatpush2.msra.mxu0 0.0
  %67 = vmatprep.subr.mxu0 0.0
  %68 = vmatpush2.msra.mxu0 0.0
  %69 = vmatprep.subr.mxu0 0.0
  %70 = vmatpush2.msra.mxu0 0.0
  %71 = vmatprep.subr.mxu0 0.0
  %72 = vmatpush2.msra.mxu0 0.0
  %73 = vmatprep.subr.mxu0 0.0
  %74 = vmatpush2.msra.mxu0 0.0
  %75 = vmatprep.subr.mxu0 0.0
  %76 = vmatpush2.msra.mxu0 0.0
  %77 = vmatprep.subr.mxu0 0.0
  %78 = vmatpush2.msra.mxu0 0.0
  %79 = vmatprep.subr.mxu0 0.0
  %80 = vmatpush2.msra.mxu0 0.0
  %81 = vmatprep.subr.mxu0 0.0
  %82 = vmatpush2.msra.mxu0 0.0
  %83 = vmatprep.subr.mxu0 0.0
  %84 = vmatpush2.msra.mxu0 0.0
  %85 = vmatprep.mubr.f32.mxu0 0.0
  %86 = vmatmul.mubr.f32.gmra.mxu0 %v15
  %v87 = vpop.f32.mrf.mxu0
  %v88 = vadd.f32 0.0, %v87
  %v89 = vpop.f32.mrf.mxu0
  %90 = vdwg.mxu0
  %vm91 = vcmask 261120
  %92 = vst.msk [vmem:[%s2] sm:$0xff] %vm91, %v88
  %s93 = scalar_lea.vmem %s0, 8
  %v94 = vld [vmem:[%s93] sm:$0xff]
  %v96 = vsel %vm13, %v94, 0
  %98 = vmatprep.subr.mxu0 0.0
  %99 = vmatpush1.msra.mxu0 0.0
  %100 = vmatprep.subr.mxu0 0.0
  %101 = vmatpush1.msra.mxu0 0.0
  %102 = vmatprep.subr.mxu0 0.0
  %103 = vmatpush1.msra.mxu0 0.0
  %104 = vmatprep.subr.mxu0 0.0
  %105 = vmatpush1.msra.mxu0 0.0
  %106 = vmatprep.subr.mxu0 0.0
  %107 = vmatpush1.msra.mxu0 0.0
  %108 = vmatprep.subr.mxu0 0.0
  %109 = vmatpush1.msra.mxu0 0.0
  %110 = vmatprep.subr.mxu0 0.0
  %111 = vmatpush1.msra.mxu0 0.0
  %112 = vmatprep.subr.mxu0 0.0
  %113 = vmatpush1.msra.mxu0 0.0
  %114 = vmatprep.subr.mxu0 0.0
  %115 = vmatpush1.msra.mxu0 0.0
  %116 = vmatprep.subr.mxu0 0.0
  %117 = vmatpush1.msra.mxu0 0.0
  %118 = vmatprep.subr.mxu0 0.0
  %119 = vmatpush1.msra.mxu0 0.0
  %120 = vmatprep.subr.mxu0 0.0
  %121 = vmatpush1.msra.mxu0 0.0
  %122 = vmatprep.subr.mxu0 0.0
  %123 = vmatpush1.msra.mxu0 0.0
  %124 = vmatprep.subr.mxu0 0.0
  %125 = vmatpush1.msra.mxu0 0.0
  %126 = vmatprep.subr.mxu0 0.0
  %127 = vmatpush1.msra.mxu0 0.0
  %128 = vmatprep.subr.mxu0 0.0
  %129 = vmatpush1.msra.mxu0 %v19
  %130 = vmatprep.subr.mxu0 0.0
  %131 = vmatpush2.msra.mxu0 0.0
  %132 = vmatprep.subr.mxu0 0.0
  %133 = vmatpush2.msra.mxu0 0.0
  %134 = vmatprep.subr.mxu0 0.0
  %135 = vmatpush2.msra.mxu0 0.0
  %136 = vmatprep.subr.mxu0 0.0
  %137 = vmatpush2.msra.mxu0 0.0
  %138 = vmatprep.subr.mxu0 0.0
  %139 = vmatpush2.msra.mxu0 0.0
  %140 = vmatprep.subr.mxu0 0.0
  %141 = vmatpush2.msra.mxu0 0.0
  %142 = vmatprep.subr.mxu0 0.0
  %143 = vmatpush2.msra.mxu0 0.0
  %144 = vmatprep.subr.mxu0 0.0
  %145 = vmatpush2.msra.mxu0 0.0
  %146 = vmatprep.subr.mxu0 0.0
  %147 = vmatpush2.msra.mxu0 0.0
  %148 = vmatprep.subr.mxu0 0.0
  %149 = vmatpush2.msra.mxu0 0.0
  %150 = vmatprep.subr.mxu0 0.0
  %151 = vmatpush2.msra.mxu0 0.0
  %152 = vmatprep.subr.mxu0 0.0
  %153 = vmatpush2.msra.mxu0 0.0
  %154 = vmatprep.subr.mxu0 0.0
  %155 = vmatpush2.msra.mxu0 0.0
  %156 = vmatprep.subr.mxu0 0.0
  %157 = vmatpush2.msra.mxu0 0.0
  %158 = vmatprep.subr.mxu0 0.0
  %159 = vmatpush2.msra.mxu0 0.0
  %160 = vmatprep.subr.mxu0 0.0
  %161 = vmatpush2.msra.mxu0 0.0
  %162 = vmatprep.mubr.f32.mxu0 0.0
  %163 = vmatmul.mubr.f32.gmra.mxu0 %v96
  %v164 = vpop.f32.mrf.mxu0
  %v165 = vadd.f32 0.0, %v164
  %v166 = vpop.f32.mrf.mxu0
  %167 = vdwg.mxu0
  %s168 = scalar_lea.vmem %s2, 8
  %169 = vst.msk [vmem:[%s168] sm:$0xff] %vm91, %v165
  // Predicated region
  $region10: #{nar_tsp_net_forward.5} parent=0 // pred_check
    _
  $region11: #{nar_tsp_net_forward.5} parent=0 // pred_check_branch
    %171 = sbr.rel (0) target = $region13
  $region12: #{nar_tsp_net_forward.5} parent=0 // pred_region
    _
  $region13: #{nar_tsp_net_forward.5} parent=0 // pred_fallthru
    _
  // Predicated region
  $region14: #{nar_tsp_net_forward.5} parent=0 // pred_check
    _
  $region15: #{nar_tsp_net_forward.5} parent=0 // pred_check_branch
    %173 = sbr.rel (0) target = $region17
  $region16: #{nar_tsp_net_forward.5} parent=0 // pred_region
    _
  $region17: #{nar_tsp_net_forward.5} parent=0 // pred_fallthru
    _

// kernel: nar_tsp_net_forward.9
$region0: #{nar_tsp_net_forward.9}
  #allocation0 [shape = 'u32[]', space=smem, size = 0x4, offset = 0x4, fixed_abs, tag = 'smem constant byte address 0x4 - core index']
  #allocation1 [shape = 'u32[144,128]{1,0:T(1,128)}', space=vmem, size = 0x12000, scoped, tag = 'internal scratch']
  %s0 = inlined_call_operand.vmem [shape: f32[2,9,32], index: 0, kind: input, shape index: {}]
  %s1 = inlined_call_operand.vmem [shape: f32[2,9,32], index: 1, kind: input, shape index: {}]
  %s2 = inlined_call_operand.vmem [shape: bf16[32,32], index: 2, kind: input, shape index: {}]
  %s3 = inlined_call_operand.vmem [shape: f32[1,32], index: 3, kind: input, shape index: {}]
  %s4 = inlined_call_operand.vmem [shape: bf16[32,32], index: 4, kind: input, shape index: {}]
  %s5 = inlined_call_operand.vmem [shape: f32[1,32], index: 5, kind: input, shape index: {}]
  %s6 = inlined_call_operand.vmem [shape: f32[2,9,9], index: 6, kind: output, shape index: {}]
  %s7 = sld [smem:[#allocation0]]
  $region57: #{nar_tsp_net_forward.9} parent=0
    _
  %s9 = ssub.s32 1, %s7
  %s10 = scalar_select 0, %s9, %s7
  loop: start=0, step=1, limit=4
  $region2: #{nar_tsp_net_forward.9} parent=0 // loop_pre_header
    _
  $region3: #{nar_tsp_net_forward.9} parent=0 // loop_header
    %s12 = sphi 0, %s16
    %p13 = scmp.ge.s32.totalorder %s12, 4
    %s22 = sphi 0, %s24
    %s25 = sphi 0, %s22
    %s26 = sphi 0, %s25
    %s42 = sphi 0, %s26
    %s48 = sphi 0, %s50
    %s51 = sphi 0, %s48
    %s52 = sphi 0, %s51
    %s68 = sphi 0, %s52
    %s72 = sphi 0, %s72
    %s74 = sphi 0, %s72
    %s75 = sphi 0, %s74
    %s89 = sphi 0, %s75
    %s93 = sphi 0, %s93
    %s95 = sphi 0, %s93
    %s96 = sphi 0, %s95
    %s110 = sphi 0, %s96
    %s114 = sphi 0, %s114
    %s116 = sphi 0, %s114
    %s117 = sphi 0, %s116
    %s131 = sphi 0, %s117
    %s135 = sphi 0, %s135
    %s137 = sphi 0, %s135
    %s138 = sphi 0, %s137
    %s152 = sphi 0, %s138
    %s158 = sphi 0, %s160
    %s161 = sphi 0, %s158
    %s162 = sphi 0, %s161
    %s178 = sphi 0, %s162
  $region4: #{nar_tsp_net_forward.9} parent=0 // loop_header_branch
    %15 = sbr.rel (%p13) target = $region8
  $region5: #{nar_tsp_net_forward.9} parent=0 // loop_body
    %s17 = ssub.s32 %s12, 1
    %s18 = ssub.s32 %s12, 2
    %s19 = sadd.s32 %s12, 1
    %s20 = ssub.s32 %s12, %s19
    %p21 = scmp.eq.s32.totalorder %s20, 0
    %s23 = sadd.s32 %s22, 1
    %s24 = scalar_select %p21, %s22, %s23
    %p27 = pneg %p21
    %p28 = scmp.eq.s32.totalorder %s12, 1
    %p29 = por %p27, %p28
    %p30 = scmp.ne.s32.totalorder %s22, %s25
    %p31 = scmp.eq.s32.totalorder %s12, 0
    %p32 = por %p30, %p31
    %p33 = scmp.ne.s32.totalorder %s22, %s25
    %p34 = scmp.eq.s32.totalorder %s17, 1
    %p35 = por %p33, %p34
    %p36 = scmp.ne.s32.totalorder %s25, %s26
    %p37 = scmp.eq.s32.totalorder %s17, 0
    %p38 = por %p36, %p37
    %p39 = scmp.ne.s32.totalorder %s25, %s26
    %p40 = scmp.eq.s32.totalorder %s18, 1
    %p41 = por %p39, %p40
    %p43 = scmp.ne.s32.totalorder %s26, %s42
    %p44 = scmp.eq.s32.totalorder %s18, 0
    %p45 = por %p43, %p44
    %s46 = ssub.s32 %s12, %s19
    %p47 = scmp.eq.s32.totalorder %s46, 0
    %s49 = sadd.s32 %s48, 1
    %s50 = scalar_select %p47, %s48, %s49
    %p53 = pneg %p47
    %p54 = scmp.eq.s32.totalorder %s12, 1
    %p55 = por %p53, %p54
    %p56 = scmp.ne.s32.totalorder %s48, %s51
    %p57 = scmp.eq.s32.totalorder %s12, 0
    %p58 = por %p56, %p57
    %p59 = scmp.ne.s32.totalorder %s48, %s51
    %p60 = scmp.eq.s32.totalorder %s17, 1
    %p61 = por %p59, %p60
    %p62 = scmp.ne.s32.totalorder %s51, %s52
    %p63 = scmp.eq.s32.totalorder %s17, 0
    %p64 = por %p62, %p63
    %p65 = scmp.ne.s32.totalorder %s51, %s52
    %p66 = scmp.eq.s32.totalorder %s18, 1
    %p67 = por %p65, %p66
    %p69 = scmp.ne.s32.totalorder %s52, %s68
    %p70 = scmp.eq.s32.totalorder %s18, 0
    %p71 = por %p69, %p70
    %s73 = sadd.s32 %s72, 1
    %p76 = scmp.eq.s32.totalorder %s12, 1
    %p77 = scmp.ne.s32.totalorder %s72, %s74
    %p78 = scmp.eq.s32.totalorder %s12, 0
    %p79 = por %p77, %p78
    %p80 = scmp.ne.s32.totalorder %s72, %s74
    %p81 = scmp.eq.s32.totalorder %s17, 1
    %p82 = por %p80, %p81
    %p83 = scmp.ne.s32.totalorder %s74, %s75
    %p84 = scmp.eq.s32.totalorder %s17, 0
    %p85 = por %p83, %p84
    %p86 = scmp.ne.s32.totalorder %s74, %s75
    %p87 = scmp.eq.s32.totalorder %s18, 1
    %p88 = por %p86, %p87
    %p90 = scmp.ne.s32.totalorder %s75, %s89
    %p91 = scmp.eq.s32.totalorder %s18, 0
    %p92 = por %p90, %p91
    %s94 = sadd.s32 %s93, 1
    %p97 = scmp.eq.s32.totalorder %s12, 1
    %p98 = scmp.ne.s32.totalorder %s93, %s95
    %p99 = scmp.eq.s32.totalorder %s12, 0
    %p100 = por %p98, %p99
    %p101 = scmp.ne.s32.totalorder %s93, %s95
    %p102 = scmp.eq.s32.totalorder %s17, 1
    %p103 = por %p101, %p102
    %p104 = scmp.ne.s32.totalorder %s95, %s96
    %p105 = scmp.eq.s32.totalorder %s17, 0
    %p106 = por %p104, %p105
    %p107 = scmp.ne.s32.totalorder %s95, %s96
    %p108 = scmp.eq.s32.totalorder %s18, 1
    %p109 = por %p107, %p108
    %p111 = scmp.ne.s32.totalorder %s96, %s110
    %p112 = scmp.eq.s32.totalorder %s18, 0
    %p113 = por %p111, %p112
    %s115 = sadd.s32 %s114, 1
    %p118 = scmp.eq.s32.totalorder %s12, 1
    %p119 = scmp.ne.s32.totalorder %s114, %s116
    %p120 = scmp.eq.s32.totalorder %s12, 0
    %p121 = por %p119, %p120
    %p122 = scmp.ne.s32.totalorder %s114, %s116
    %p123 = scmp.eq.s32.totalorder %s17, 1
    %p124 = por %p122, %p123
    %p125 = scmp.ne.s32.totalorder %s116, %s117
    %p126 = scmp.eq.s32.totalorder %s17, 0
    %p127 = por %p125, %p126
    %p128 = scmp.ne.s32.totalorder %s116, %s117
    %p129 = scmp.eq.s32.totalorder %s18, 1
    %p130 = por %p128, %p129
    %p132 = scmp.ne.s32.totalorder %s117, %s131
    %p133 = scmp.eq.s32.totalorder %s18, 0
    %p134 = por %p132, %p133
    %s136 = sadd.s32 %s135, 1
    %p139 = scmp.eq.s32.totalorder %s12, 1
    %p140 = scmp.ne.s32.totalorder %s135, %s137
    %p141 = scmp.eq.s32.totalorder %s12, 0
    %p142 = por %p140, %p141
    %p143 = scmp.ne.s32.totalorder %s135, %s137
    %p144 = scmp.eq.s32.totalorder %s17, 1
    %p145 = por %p143, %p144
    %p146 = scmp.ne.s32.totalorder %s137, %s138
    %p147 = scmp.eq.s32.totalorder %s17, 0
    %p148 = por %p146, %p147
    %p149 = scmp.ne.s32.totalorder %s137, %s138
    %p150 = scmp.eq.s32.totalorder %s18, 1
    %p151 = por %p149, %p150
    %p153 = scmp.ne.s32.totalorder %s138, %s152
    %p154 = scmp.eq.s32.totalorder %s18, 0
    %p155 = por %p153, %p154
    %s156 = ssub.s32 %s12, %s19
    %p157 = scmp.eq.s32.totalorder %s156, 0
    %s159 = sadd.s32 %s158, 1
    %s160 = scalar_select %p157, %s158, %s159
    %p163 = pneg %p157
    %p164 = scmp.eq.s32.totalorder %s12, 1
    %p165 = por %p163, %p164
    %p166 = scmp.ne.s32.totalorder %s158, %s161
    %p167 = scmp.eq.s32.totalorder %s12, 0
    %p168 = por %p166, %p167
    %p169 = scmp.ne.s32.totalorder %s158, %s161
    %p170 = scmp.eq.s32.totalorder %s17, 1
    %p171 = por %p169, %p170
    %p172 = scmp.ne.s32.totalorder %s161, %s162
    %p173 = scmp.eq.s32.totalorder %s17, 0
    %p174 = por %p172, %p173
    %p175 = scmp.ne.s32.totalorder %s161, %s162
    %p176 = scmp.eq.s32.totalorder %s18, 1
    %p177 = por %p175, %p176
    %p179 = scmp.ne.s32.totalorder %s162, %s178
    %p180 = scmp.eq.s32.totalorder %s18, 0
    %p181 = por %p179, %p180
    %p182 = scmp.le.s32.totalorder 1, %s12
    %p183 = scmp.lt.s32.totalorder %s12, 3
    %p184 = pnand %p182, %p183
    %p185 = pneg %p184
    // Predicated region
    $region9: #{nar_tsp_net_forward.9} parent=5 // pred_check
      _
    $region10: #{nar_tsp_net_forward.9} parent=5 // pred_check_branch
      %187 = sbr.rel (%p184) target = $region12
    $region11: #{nar_tsp_net_forward.9} parent=5 // pred_region
      %s188 = ssub.s32 %s12, 1
      // Predicated region
      $region13: #{nar_tsp_net_forward.9} parent=11 // pred_check
        %p189 = pneg %p85
      $region14: #{nar_tsp_net_forward.9} parent=11 // pred_check_branch
        %191 = sbr.rel (%p189) target = $region16
      $region15: #{nar_tsp_net_forward.9} parent=11 // pred_region
        _
      $region16: #{nar_tsp_net_forward.9} parent=11 // pred_fallthru
        _
      // Predicated region
      $region17: #{nar_tsp_net_forward.9} parent=11 // pred_check
        %p192 = pneg %p106
      $region18: #{nar_tsp_net_forward.9} parent=11 // pred_check_branch
        %194 = sbr.rel (%p192) target = $region20
      $region19: #{nar_tsp_net_forward.9} parent=11 // pred_region
        _
      $region20: #{nar_tsp_net_forward.9} parent=11 // pred_fallthru
        _
      // Predicated region
      $region21: #{nar_tsp_net_forward.9} parent=11 // pred_check
        %p195 = pneg %p127
      $region22: #{nar_tsp_net_forward.9} parent=11 // pred_check_branch
        %197 = sbr.rel (%p195) target = $region24
      $region23: #{nar_tsp_net_forward.9} parent=11 // pred_region
        _
      $region24: #{nar_tsp_net_forward.9} parent=11 // pred_fallthru
        _
      // Predicated region
      $region25: #{nar_tsp_net_forward.9} parent=11 // pred_check
        %p198 = pneg %p148
      $region26: #{nar_tsp_net_forward.9} parent=11 // pred_check_branch
        %200 = sbr.rel (%p198) target = $region28
      $region27: #{nar_tsp_net_forward.9} parent=11 // pred_region
        _
      $region28: #{nar_tsp_net_forward.9} parent=11 // pred_fallthru
        _
    $region12: #{nar_tsp_net_forward.9} parent=5 // pred_fallthru
      _
    %p201 = scmp.lt.s32.totalorder %s12, 2
    // Predicated region
    $region29: #{nar_tsp_net_forward.9} parent=5 // pred_check
      %p202 = pneg %p201
    $region30: #{nar_tsp_net_forward.9} parent=5 // pred_check_branch
      %204 = sbr.rel (%p202) target = $region32
    $region31: #{nar_tsp_net_forward.9} parent=5 // pred_region
      // Predicated region
      $region33: #{nar_tsp_net_forward.9} parent=31 // pred_check
        %p205 = pneg %p32
      $region34: #{nar_tsp_net_forward.9} parent=31 // pred_check_branch
        %207 = sbr.rel (%p205) target = $region36
      $region35: #{nar_tsp_net_forward.9} parent=31 // pred_region
        %p208 = scmp.lt.s32.totalorder %s12, 1
        %s209 = scalar_select %p208, %s12, 1
        %s210 = smul.addr %s209, 2
        %s211 = smul.addr %s210, 8
        %s212 = scalar_lea.vmem %s0, %s211
      $region36: #{nar_tsp_net_forward.9} parent=31 // pred_fallthru
        _
      // Predicated region
      $region37: #{nar_tsp_net_forward.9} parent=31 // pred_check
        %p213 = pneg %p58
      $region38: #{nar_tsp_net_forward.9} parent=31 // pred_check_branch
        %215 = sbr.rel (%p213) target = $region40
      $region39: #{nar_tsp_net_forward.9} parent=31 // pred_region
        %p216 = scmp.lt.s32.totalorder %s12, 1
        %s217 = scalar_select %p216, %s12, 1
        %s218 = smul.addr %s217, 2
        %s219 = smul.addr %s218, 8
        %s220 = scalar_lea.vmem %s1, %s219
      $region40: #{nar_tsp_net_forward.9} parent=31 // pred_fallthru
        _
    $region32: #{nar_tsp_net_forward.9} parent=5 // pred_fallthru
      _
    %p221 = scmp.le.s32.totalorder 1, %s12
    %p222 = scmp.lt.s32.totalorder %s12, 3
    %p223 = pnand %p221, %p222
    %p224 = pneg %p223
    // Predicated region
    $region41: #{nar_tsp_net_forward.9} parent=5 // pred_check
      _
    $region42: #{nar_tsp_net_forward.9} parent=5 // pred_check_branch
      %226 = sbr.rel (%p223) target = $region44
    $region43: #{nar_tsp_net_forward.9} parent=5 // pred_region
      %s227 = ssub.s32 %s12, 1
      %p228 = scmp.lt.s32.totalorder %s17, 1
      %s229 = scalar_select %p228, %s17, 1
      %s230 = smul.addr %s229, 2
      %s231 = smul.addr %s230, 8
      %s232 = scalar_lea.vmem %s0, %s231
      %p233 = pneg %p38
      %p234 = pneg %p35
      %p235 = scmp.lt.s32.totalorder %s17, 1
      %s236 = scalar_select %p235, %s17, 1
      %s237 = smul.addr %s236, 2
      %s238 = smul.addr %s237, 8
      %s239 = scalar_lea.vmem %s1, %s238
      %p240 = pneg %p64
      %p241 = pneg %p61
      %p242 = pneg %p85
      %p243 = pneg %p82
      %p244 = pneg %p106
      %p245 = pneg %p103
      %p246 = pneg %p127
      %p247 = pneg %p124
      %p248 = pneg %p148
      %p249 = pneg %p145
      %p250 = pneg %p174
      %p251 = pneg %p171
      %p252 = scmp.lt.s32.totalorder %s17, 1
      %s253 = scalar_select %p252, %s17, 1
      %s254 = smul.addr %s253, 2
      %s255 = smul.addr %s254, 8
      %s256 = scalar_lea.vmem %s6, %s255
      %p257 = scmp.lt.s32.totalorder %s17, 1
      %s258 = scalar_select %p257, %s17, 1
      %s259 = smul.addr %s258, 2
      %s260 = smul.addr %s259, 8
      %s261 = scalar_lea.vmem %s0, %s260
      %p262 = scmp.lt.s32.totalorder %s17, 1
      %s263 = scalar_select %p262, %s17, 1
      %s264 = smul.addr %s263, 2
      %s265 = smul.addr %s264, 8
      %s266 = scalar_lea.vmem %s1, %s265
      %p267 = scmp.lt.s32.totalorder %s17, 1
      %s268 = scalar_select %p267, %s17, 1
      %s269 = smul.addr %s268, 2
      %s270 = smul.addr %s269, 8
      %s271 = scalar_lea.vmem %s6, %s270
      %v273 = vld [vmem:[%s261] sm:$0xff]
      %v274 = vld [vmem:[%s261 + $0x8] sm:$0x1]
      %v275 = vld [vmem:[%s266] sm:$0xff]
      %v276 = vld [vmem:[%s266 + $0x8] sm:$0x1]
      %v277 = vld [vmem:[%s2] sm:$0xf]
      %v278 = vld [vmem:[%s2 + $0x4] sm:$0xf]
      %v279 = vld [vmem:[%s2 + $0x8] sm:$0xf]
      %v280 = vld [vmem:[%s2 + $0xc] sm:$0xf]
      %v281 = vpack.c.bf16 %v276, %v275
      %v282 = vld [vmem:[%s3] sm:$0x1]
      %v284 = vlaneseq
      %v285 = vshrl.u32 %v284, 7
      %v286 = vsub.s32 0, %v285
      %v287 = vrot.slane %v282, %v286
      %v293 = vunpack.c.l.b16 %v277
      %v294 = vunpack.c.l.b16 %v278
      %v295 = vunpack.c.l.b16 %v279
      %v296 = vunpack.c.l.b16 %v280
      %v297 = vpack.c.b16 %v294, %v293
      %v298 = vpack.c.b16 %v296, %v295
      %vm301 = vcmask 261120
      %v303 = vsel %vm301, %v281, 0
      %305 = vmatprep.subr.bf16.mxu0 0
      %306 = vmatpush1.bf16.msra.mxu0 0
      %307 = vmatprep.subr.bf16.mxu0 0
      %308 = vmatpush1.bf16.msra.mxu0 0
      %309 = vmatprep.subr.bf16.mxu0 0
      %310 = vmatpush1.bf16.msra.mxu0 0
      %311 = vmatprep.subr.bf16.mxu0 0
      %312 = vmatpush1.bf16.msra.mxu0 0
      %313 = vmatprep.subr.bf16.mxu0 0
      %314 = vmatpush1.bf16.msra.mxu0 0
      %315 = vmatprep.subr.bf16.mxu0 0
      %316 = vmatpush1.bf16.msra.mxu0 0
      %317 = vmatprep.subr.bf16.mxu0 0
      %318 = vmatpush1.bf16.msra.mxu0 %v298
      %319 = vmatprep.subr.bf16.mxu0 0
      %320 = vmatpush1.bf16.msra.mxu0 %v297
      %321 = vmatprep.subr.bf16.mxu0 0
      %322 = vmatpush2.bf16.msra.mxu0 0
      %323 = vmatprep.subr.bf16.mxu0 0
      %324 = vmatpush2.bf16.msra.mxu0 0
      %325 = vmatprep.subr.bf16.mxu0 0
      %326 = vmatpush2.bf16.msra.mxu0 0
      %327 = vmatprep.subr.bf16.mxu0 0
      %328 = vmatpush2.bf16.msra.mxu0 0
      %329 = vmatprep.subr.bf16.mxu0 0
      %330 = vmatpush2.bf16.msra.mxu0 0
      %331 = vmatprep.subr.bf16.mxu0 0
      %332 = vmatpush2.bf16.msra.mxu0 0
      %333 = vmatprep.subr.bf16.mxu0 0
      %334 = vmatpush2.bf16.msra.mxu0 0
      %335 = vmatprep.subr.bf16.mxu0 0
      %336 = vmatpush2.bf16.msra.mxu0 0
      %337 = vmatprep.mubr.bf16.mxu0 0
      %338 = vmatmul.mubr.bf16.gmra.mxu0 %v303
      %v339 = vpop.f32.mrf.mxu0
      %v340 = vadd.f32 %v287, %v339
      %v341 = vpop.f32.mrf.mxu0
      %v342 = vpop.f32.mrf.mxu0
      %v343 = vadd.f32 %v287, %v342
      %v344 = vpop.f32.mrf.mxu0
      %345 = vdwg.mxu0
      %v346 = vld [vmem:[%s4] sm:$0xf]
      %v347 = vld [vmem:[%s4 + $0x4] sm:$0xf]
      %v348 = vld [vmem:[%s4 + $0x8] sm:$0xf]
      %v349 = vld [vmem:[%s4 + $0xc] sm:$0xf]
      %v350 = vpack.c.bf16 %v274, %v273
      %v351 = vld [vmem:[%s5] sm:$0x1]
      %v353 = vlaneseq
      %v354 = vshrl.u32 %v353, 7
      %v355 = vsub.s32 0, %v354
      %v356 = vrot.slane %v351, %v355
      %v362 = vunpack.c.l.b16 %v346
      %v363 = vunpack.c.l.b16 %v347
      %v364 = vunpack.c.l.b16 %v348
      %v365 = vunpack.c.l.b16 %v349
      %v366 = vpack.c.b16 %v363, %v362
      %v367 = vpack.c.b16 %v365, %v364
      %v371 = vsel %vm301, %v350, 0
      %373 = vmatprep.subr.bf16.mxu0 0
      %374 = vmatpush1.bf16.msra.mxu0 0
      %375 = vmatprep.subr.bf16.mxu0 0
      %376 = vmatpush1.bf16.msra.mxu0 0
      %377 = vmatprep.subr.bf16.mxu0 0
      %378 = vmatpush1.bf16.msra.mxu0 0
      %379 = vmatprep.subr.bf16.mxu0 0
      %380 = vmatpush1.bf16.msra.mxu0 0
      %381 = vmatprep.subr.bf16.mxu0 0
      %382 = vmatpush1.bf16.msra.mxu0 0
      %383 = vmatprep.subr.bf16.mxu0 0
      %384 = vmatpush1.bf16.msra.mxu0 0
      %385 = vmatprep.subr.bf16.mxu0 0
      %386 = vmatpush1.bf16.msra.mxu0 %v367
      %387 = vmatprep.subr.bf16.mxu0 0
      %388 = vmatpush1.bf16.msra.mxu0 %v366
      %389 = vmatprep.subr.bf16.mxu0 0
      %390 = vmatpush2.bf16.msra.mxu0 0
      %391 = vmatprep.subr.bf16.mxu0 0
      %392 = vmatpush2.bf16.msra.mxu0 0
      %393 = vmatprep.subr.bf16.mxu0 0
      %394 = vmatpush2.bf16.msra.mxu0 0
      %395 = vmatprep.subr.bf16.mxu0 0
      %396 = vmatpush2.bf16.msra.mxu0 0
      %397 = vmatprep.subr.bf16.mxu0 0
      %398 = vmatpush2.bf16.msra.mxu0 0
      %399 = vmatprep.subr.bf16.mxu0 0
      %400 = vmatpush2.bf16.msra.mxu0 0
      %401 = vmatprep.subr.bf16.mxu0 0
      %402 = vmatpush2.bf16.msra.mxu0 0
      %403 = vmatprep.subr.bf16.mxu0 0
      %404 = vmatpush2.bf16.msra.mxu0 0
      %405 = vmatprep.mubr.bf16.mxu0 0
      %406 = vmatmul.mubr.bf16.gmra.mxu0 %v371
      %v407 = vpop.f32.mrf.mxu0
      %v408 = vadd.f32 %v356, %v407
      %v409 = vpop.f32.mrf.mxu0
      %v410 = vpop.f32.mrf.mxu0
      %v411 = vadd.f32 %v356, %v410
      %v412 = vpop.f32.mrf.mxu0
      %413 = vdwg.mxu0
      %v414 = vpack.c.bf16 %v411, %v408
      %v415 = vpack.c.bf16 %v343, %v340
      %v417 = vsel %vm301, %v414, 0
      %v420 = vsel %vm301, %v415, 0
      %422 = vmatprep.subr.bf16.mxu0 0
      %423 = vmatpush1.bf16.xpose.msra.mxu0 0
      %424 = vmatprep.subr.bf16.mxu0 0
      %425 = vmatpush1.bf16.xpose.msra.mxu0 0
      %426 = vmatprep.subr.bf16.mxu0 0
      %427 = vmatpush1.bf16.xpose.msra.mxu0 0
      %428 = vmatprep.subr.bf16.mxu0 0
      %429 = vmatpush1.bf16.xpose.msra.mxu0 0
      %430 = vmatprep.subr.bf16.mxu0 0
      %431 = vmatpush1.bf16.xpose.msra.mxu0 0
      %432 = vmatprep.subr.bf16.mxu0 0
      %433 = vmatpush1.bf16.xpose.msra.mxu0 0
      %434 = vmatprep.subr.bf16.mxu0 0
      %435 = vmatpush1.bf16.xpose.msra.mxu0 0
      %436 = vmatprep.subr.bf16.mxu0 0
      %437 = vmatpush1.bf16.xpose.msra.mxu0 %v420
      %438 = vmatprep.subr.bf16.mxu0 0
      %439 = vmatpush2.bf16.xpose.msra.mxu0 0
      %440 = vmatprep.subr.bf16.mxu0 0
      %441 = vmatpush2.bf16.xpose.msra.mxu0 0
      %442 = vmatprep.subr.bf16.mxu0 0
      %443 = vmatpush2.bf16.xpose.msra.mxu0 0
      %444 = vmatprep.subr.bf16.mxu0 0
      %445 = vmatpush2.bf16.xpose.msra.mxu0 0
      %446 = vmatprep.subr.bf16.mxu0 0
      %447 = vmatpush2.bf16.xpose.msra.mxu0 0
      %448 = vmatprep.subr.bf16.mxu0 0
      %449 = vmatpush2.bf16.xpose.msra.mxu0 0
      %450 = vmatprep.subr.bf16.mxu0 0
      %451 = vmatpush2.bf16.xpose.msra.mxu0 0
      %452 = vmatprep.subr.bf16.mxu0 0
      %453 = vmatpush2.bf16.xpose.msra.mxu0 0
      %454 = vmatprep.mubr.bf16.mxu0 0
      %455 = vmatmul.mubr.bf16.gmra.mxu0 %v417
      %v456 = vpop.f32.mrf.mxu0
      %v457 = vadd.f32 0.0, %v456
      %v458 = vpop.f32.mrf.mxu0
      %v459 = vpop.f32.mrf.mxu0
      %v460 = vadd.f32 0.0, %v459
      %v461 = vpop.f32.mrf.mxu0
      %462 = vdwg.mxu0
      %v463 = vmul.f32 %v457, 0.17677669
      %v464 = vmul.f32 %v460, 0.17677669
      %v465 = vtanh.pop %v463
      %v466 = vtanh.pop %v464
      %v467 = vmul.f32 %v465, 10.0
      %v468 = vmul.f32 %v466, 10.0
      %vm469 = vcmask 72704
      %470 = vst.msk [vmem:[%s271] sm:$0xff] %vm469, %v467
      %vm471 = vcmask 65536
      %472 = vst.msk [vmem:[%s271 + $0x8] sm:$0x1] %vm471, %v468
      %p473 = scmp.lt.s32.totalorder %s17, 1
      %s474 = scalar_select %p473, %s17, 1
      %s475 = smul.addr %s474, 2
      %s476 = smul.addr %s475, 8
      %s477 = scalar_lea.vmem %s6, %s476
      // Predicated region
      $region45: #{nar_tsp_net_forward.9} parent=43 // pred_check
        %p478 = pneg %p171
      $region46: #{nar_tsp_net_forward.9} parent=43 // pred_check_branch
        %480 = sbr.rel (%p478) target = $region48
      $region47: #{nar_tsp_net_forward.9} parent=43 // pred_region
        _
      $region48: #{nar_tsp_net_forward.9} parent=43 // pred_fallthru
        _
    $region44: #{nar_tsp_net_forward.9} parent=5 // pred_fallthru
      _
    %p481 = scmp.le.s32.totalorder 2, %s12
    // Predicated region
    $region49: #{nar_tsp_net_forward.9} parent=5 // pred_check
      %p482 = pneg %p481
    $region50: #{nar_tsp_net_forward.9} parent=5 // pred_check_branch
      %484 = sbr.rel (%p482) target = $region52
    $region51: #{nar_tsp_net_forward.9} parent=5 // pred_region
      %s485 = ssub.s32 %s12, 2
      // Predicated region
      $region53: #{nar_tsp_net_forward.9} parent=51 // pred_check
        %p486 = pneg %p177
      $region54: #{nar_tsp_net_forward.9} parent=51 // pred_check_branch
        %488 = sbr.rel (%p486) target = $region56
      $region55: #{nar_tsp_net_forward.9} parent=51 // pred_region
        %p489 = scmp.lt.s32.totalorder %s18, 1
        %s490 = scalar_select %p489, %s18, 1
        %s491 = smul.addr %s490, 2
        %s492 = smul.addr %s491, 8
        %s493 = scalar_lea.vmem %s6, %s492
      $region56: #{nar_tsp_net_forward.9} parent=51 // pred_fallthru
        _
    $region52: #{nar_tsp_net_forward.9} parent=5 // pred_fallthru
      _
  $region6: #{nar_tsp_net_forward.9} parent=0 // loop_footer
    %s16 = sadd.s32 1, %s12
  $region7: #{nar_tsp_net_forward.9} parent=0 // loop_footer_branch
    %11 = sbr.rel target = $region3
  $region8: #{nar_tsp_net_forward.9} parent=0 // loop_exit
    _

// kernel: nar_tsp_net_forward.8
$region0: #{nar_tsp_net_forward.8}
  #allocation0 [shape = 'u32[]', space=smem, size = 0x4, offset = 0x4, fixed_abs, tag = 'smem constant byte address 0x4 - core index']
  #allocation1 [shape = 'u32[144,128]{1,0:T(1,128)}', space=vmem, size = 0x12000, scoped, tag = 'internal scratch']
  %s0 = inlined_call_operand.vmem [shape: f32[2,9,32], index: 0, kind: input, shape index: {}, may-alias: {0,1}]
  %s1 = inlined_call_operand.vmem [shape: f32[2,9,32], index: 1, kind: input, shape index: {}, may-alias: {0,1}]
  %s2 = inlined_call_operand.vmem [shape: bf16[10,32,32], index: 2, kind: input, shape index: {}]
  %s3 = inlined_call_operand.vmem [shape: f32[10,32], index: 3, kind: input, shape index: {}]
  %s4 = inlined_call_operand.vmem [shape: f32[1,32], index: 4, kind: input, shape index: {}]
  %s5 = inlined_call_operand.vmem [shape: f32[1,32], index: 5, kind: input, shape index: {}]
  %s6 = inlined_call_operand.vmem [shape: f32[2,9,32], index: 6, kind: output, shape index: {}]
  %s7 = sld [smem:[#allocation0]]
  $region57: #{nar_tsp_net_forward.8} parent=0
    _
  %s9 = ssub.s32 1, %s7
  %s10 = scalar_select 0, %s9, %s7
  loop: start=0, step=1, limit=4
  $region2: #{nar_tsp_net_forward.8} parent=0 // loop_pre_header
    _
  $region3: #{nar_tsp_net_forward.8} parent=0 // loop_header
    %s12 = sphi 0, %s16
    %p13 = scmp.ge.s32.totalorder %s12, 4
    %s22 = sphi 0, %s24
    %s25 = sphi 0, %s22
    %s26 = sphi 0, %s25
    %s42 = sphi 0, %s26
    %s48 = sphi 0, %s50
    %s51 = sphi 0, %s48
    %s52 = sphi 0, %s51
    %s68 = sphi 0, %s52
    %s72 = sphi 0, %s72
    %s74 = sphi 0, %s72
    %s75 = sphi 0, %s74
    %s89 = sphi 0, %s75
    %s93 = sphi 0, %s93
    %s95 = sphi 0, %s93
    %s96 = sphi 0, %s95
    %s110 = sphi 0, %s96
    %s114 = sphi 0, %s114
    %s116 = sphi 0, %s114
    %s117 = sphi 0, %s116
    %s131 = sphi 0, %s117
    %s135 = sphi 0, %s135
    %s137 = sphi 0, %s135
    %s138 = sphi 0, %s137
    %s152 = sphi 0, %s138
    %s158 = sphi 0, %s160
    %s161 = sphi 0, %s158
    %s162 = sphi 0, %s161
    %s178 = sphi 0, %s162
  $region4: #{nar_tsp_net_forward.8} parent=0 // loop_header_branch
    %15 = sbr.rel (%p13) target = $region8
  $region5: #{nar_tsp_net_forward.8} parent=0 // loop_body
    %s17 = ssub.s32 %s12, 1
    %s18 = ssub.s32 %s12, 2
    %s19 = sadd.s32 %s12, 1
    %s20 = ssub.s32 %s12, %s19
    %p21 = scmp.eq.s32.totalorder %s20, 0
    %s23 = sadd.s32 %s22, 1
    %s24 = scalar_select %p21, %s22, %s23
    %p27 = pneg %p21
    %p28 = scmp.eq.s32.totalorder %s12, 1
    %p29 = por %p27, %p28
    %p30 = scmp.ne.s32.totalorder %s22, %s25
    %p31 = scmp.eq.s32.totalorder %s12, 0
    %p32 = por %p30, %p31
    %p33 = scmp.ne.s32.totalorder %s22, %s25
    %p34 = scmp.eq.s32.totalorder %s17, 1
    %p35 = por %p33, %p34
    %p36 = scmp.ne.s32.totalorder %s25, %s26
    %p37 = scmp.eq.s32.totalorder %s17, 0
    %p38 = por %p36, %p37
    %p39 = scmp.ne.s32.totalorder %s25, %s26
    %p40 = scmp.eq.s32.totalorder %s18, 1
    %p41 = por %p39, %p40
    %p43 = scmp.ne.s32.totalorder %s26, %s42
    %p44 = scmp.eq.s32.totalorder %s18, 0
    %p45 = por %p43, %p44
    %s46 = ssub.s32 %s12, %s19
    %p47 = scmp.eq.s32.totalorder %s46, 0
    %s49 = sadd.s32 %s48, 1
    %s50 = scalar_select %p47, %s48, %s49
    %p53 = pneg %p47
    %p54 = scmp.eq.s32.totalorder %s12, 1
    %p55 = por %p53, %p54
    %p56 = scmp.ne.s32.totalorder %s48, %s51
    %p57 = scmp.eq.s32.totalorder %s12, 0
    %p58 = por %p56, %p57
    %p59 = scmp.ne.s32.totalorder %s48, %s51
    %p60 = scmp.eq.s32.totalorder %s17, 1
    %p61 = por %p59, %p60
    %p62 = scmp.ne.s32.totalorder %s51, %s52
    %p63 = scmp.eq.s32.totalorder %s17, 0
    %p64 = por %p62, %p63
    %p65 = scmp.ne.s32.totalorder %s51, %s52
    %p66 = scmp.eq.s32.totalorder %s18, 1
    %p67 = por %p65, %p66
    %p69 = scmp.ne.s32.totalorder %s52, %s68
    %p70 = scmp.eq.s32.totalorder %s18, 0
    %p71 = por %p69, %p70
    %s73 = sadd.s32 %s72, 1
    %p76 = scmp.eq.s32.totalorder %s12, 1
    %p77 = scmp.ne.s32.totalorder %s72, %s74
    %p78 = scmp.eq.s32.totalorder %s12, 0
    %p79 = por %p77, %p78
    %p80 = scmp.ne.s32.totalorder %s72, %s74
    %p81 = scmp.eq.s32.totalorder %s17, 1
    %p82 = por %p80, %p81
    %p83 = scmp.ne.s32.totalorder %s74, %s75
    %p84 = scmp.eq.s32.totalorder %s17, 0
    %p85 = por %p83, %p84
    %p86 = scmp.ne.s32.totalorder %s74, %s75
    %p87 = scmp.eq.s32.totalorder %s18, 1
    %p88 = por %p86, %p87
    %p90 = scmp.ne.s32.totalorder %s75, %s89
    %p91 = scmp.eq.s32.totalorder %s18, 0
    %p92 = por %p90, %p91
    %s94 = sadd.s32 %s93, 1
    %p97 = scmp.eq.s32.totalorder %s12, 1
    %p98 = scmp.ne.s32.totalorder %s93, %s95
    %p99 = scmp.eq.s32.totalorder %s12, 0
    %p100 = por %p98, %p99
    %p101 = scmp.ne.s32.totalorder %s93, %s95
    %p102 = scmp.eq.s32.totalorder %s17, 1
    %p103 = por %p101, %p102
    %p104 = scmp.ne.s32.totalorder %s95, %s96
    %p105 = scmp.eq.s32.totalorder %s17, 0
    %p106 = por %p104, %p105
    %p107 = scmp.ne.s32.totalorder %s95, %s96
    %p108 = scmp.eq.s32.totalorder %s18, 1
    %p109 = por %p107, %p108
    %p111 = scmp.ne.s32.totalorder %s96, %s110
    %p112 = scmp.eq.s32.totalorder %s18, 0
    %p113 = por %p111, %p112
    %s115 = sadd.s32 %s114, 1
    %p118 = scmp.eq.s32.totalorder %s12, 1
    %p119 = scmp.ne.s32.totalorder %s114, %s116
    %p120 = scmp.eq.s32.totalorder %s12, 0
    %p121 = por %p119, %p120
    %p122 = scmp.ne.s32.totalorder %s114, %s116
    %p123 = scmp.eq.s32.totalorder %s17, 1
    %p124 = por %p122, %p123
    %p125 = scmp.ne.s32.totalorder %s116, %s117
    %p126 = scmp.eq.s32.totalorder %s17, 0
    %p127 = por %p125, %p126
    %p128 = scmp.ne.s32.totalorder %s116, %s117
    %p129 = scmp.eq.s32.totalorder %s18, 1
    %p130 = por %p128, %p129
    %p132 = scmp.ne.s32.totalorder %s117, %s131
    %p133 = scmp.eq.s32.totalorder %s18, 0
    %p134 = por %p132, %p133
    %s136 = sadd.s32 %s135, 1
    %p139 = scmp.eq.s32.totalorder %s12, 1
    %p140 = scmp.ne.s32.totalorder %s135, %s137
    %p141 = scmp.eq.s32.totalorder %s12, 0
    %p142 = por %p140, %p141
    %p143 = scmp.ne.s32.totalorder %s135, %s137
    %p144 = scmp.eq.s32.totalorder %s17, 1
    %p145 = por %p143, %p144
    %p146 = scmp.ne.s32.totalorder %s137, %s138
    %p147 = scmp.eq.s32.totalorder %s17, 0
    %p148 = por %p146, %p147
    %p149 = scmp.ne.s32.totalorder %s137, %s138
    %p150 = scmp.eq.s32.totalorder %s18, 1
    %p151 = por %p149, %p150
    %p153 = scmp.ne.s32.totalorder %s138, %s152
    %p154 = scmp.eq.s32.totalorder %s18, 0
    %p155 = por %p153, %p154
    %s156 = ssub.s32 %s12, %s19
    %p157 = scmp.eq.s32.totalorder %s156, 0
    %s159 = sadd.s32 %s158, 1
    %s160 = scalar_select %p157, %s158, %s159
    %p163 = pneg %p157
    %p164 = scmp.eq.s32.totalorder %s12, 1
    %p165 = por %p163, %p164
    %p166 = scmp.ne.s32.totalorder %s158, %s161
    %p167 = scmp.eq.s32.totalorder %s12, 0
    %p168 = por %p166, %p167
    %p169 = scmp.ne.s32.totalorder %s158, %s161
    %p170 = scmp.eq.s32.totalorder %s17, 1
    %p171 = por %p169, %p170
    %p172 = scmp.ne.s32.totalorder %s161, %s162
    %p173 = scmp.eq.s32.totalorder %s17, 0
    %p174 = por %p172, %p173
    %p175 = scmp.ne.s32.totalorder %s161, %s162
    %p176 = scmp.eq.s32.totalorder %s18, 1
    %p177 = por %p175, %p176
    %p179 = scmp.ne.s32.totalorder %s162, %s178
    %p180 = scmp.eq.s32.totalorder %s18, 0
    %p181 = por %p179, %p180
    %p182 = scmp.le.s32.totalorder 1, %s12
    %p183 = scmp.lt.s32.totalorder %s12, 3
    %p184 = pnand %p182, %p183
    %p185 = pneg %p184
    // Predicated region
    $region9: #{nar_tsp_net_forward.8} parent=5 // pred_check
      _
    $region10: #{nar_tsp_net_forward.8} parent=5 // pred_check_branch
      %187 = sbr.rel (%p184) target = $region12
    $region11: #{nar_tsp_net_forward.8} parent=5 // pred_region
      %s188 = ssub.s32 %s12, 1
      // Predicated region
      $region13: #{nar_tsp_net_forward.8} parent=11 // pred_check
        %p189 = pneg %p85
      $region14: #{nar_tsp_net_forward.8} parent=11 // pred_check_branch
        %191 = sbr.rel (%p189) target = $region16
      $region15: #{nar_tsp_net_forward.8} parent=11 // pred_region
        _
      $region16: #{nar_tsp_net_forward.8} parent=11 // pred_fallthru
        _
      // Predicated region
      $region17: #{nar_tsp_net_forward.8} parent=11 // pred_check
        %p192 = pneg %p106
      $region18: #{nar_tsp_net_forward.8} parent=11 // pred_check_branch
        %194 = sbr.rel (%p192) target = $region20
      $region19: #{nar_tsp_net_forward.8} parent=11 // pred_region
        _
      $region20: #{nar_tsp_net_forward.8} parent=11 // pred_fallthru
        _
      // Predicated region
      $region21: #{nar_tsp_net_forward.8} parent=11 // pred_check
        %p195 = pneg %p127
      $region22: #{nar_tsp_net_forward.8} parent=11 // pred_check_branch
        %197 = sbr.rel (%p195) target = $region24
      $region23: #{nar_tsp_net_forward.8} parent=11 // pred_region
        _
      $region24: #{nar_tsp_net_forward.8} parent=11 // pred_fallthru
        _
      // Predicated region
      $region25: #{nar_tsp_net_forward.8} parent=11 // pred_check
        %p198 = pneg %p148
      $region26: #{nar_tsp_net_forward.8} parent=11 // pred_check_branch
        %200 = sbr.rel (%p198) target = $region28
      $region27: #{nar_tsp_net_forward.8} parent=11 // pred_region
        _
      $region28: #{nar_tsp_net_forward.8} parent=11 // pred_fallthru
        _
    $region12: #{nar_tsp_net_forward.8} parent=5 // pred_fallthru
      _
    %p201 = scmp.lt.s32.totalorder %s12, 2
    // Predicated region
    $region29: #{nar_tsp_net_forward.8} parent=5 // pred_check
      %p202 = pneg %p201
    $region30: #{nar_tsp_net_forward.8} parent=5 // pred_check_branch
      %204 = sbr.rel (%p202) target = $region32
    $region31: #{nar_tsp_net_forward.8} parent=5 // pred_region
      // Predicated region
      $region33: #{nar_tsp_net_forward.8} parent=31 // pred_check
        %p205 = pneg %p32
      $region34: #{nar_tsp_net_forward.8} parent=31 // pred_check_branch
        %207 = sbr.rel (%p205) target = $region36
      $region35: #{nar_tsp_net_forward.8} parent=31 // pred_region
        %p208 = scmp.lt.s32.totalorder %s12, 1
        %s209 = scalar_select %p208, %s12, 1
        %s210 = smul.addr %s209, 2
        %s211 = smul.addr %s210, 8
        %s212 = scalar_lea.vmem %s0, %s211
      $region36: #{nar_tsp_net_forward.8} parent=31 // pred_fallthru
        _
      // Predicated region
      $region37: #{nar_tsp_net_forward.8} parent=31 // pred_check
        %p213 = pneg %p58
      $region38: #{nar_tsp_net_forward.8} parent=31 // pred_check_branch
        %215 = sbr.rel (%p213) target = $region40
      $region39: #{nar_tsp_net_forward.8} parent=31 // pred_region
        %p216 = scmp.lt.s32.totalorder %s12, 1
        %s217 = scalar_select %p216, %s12, 1
        %s218 = smul.addr %s217, 2
        %s219 = smul.addr %s218, 8
        %s220 = scalar_lea.vmem %s1, %s219
      $region40: #{nar_tsp_net_forward.8} parent=31 // pred_fallthru
        _
    $region32: #{nar_tsp_net_forward.8} parent=5 // pred_fallthru
      _
    %p221 = scmp.le.s32.totalorder 1, %s12
    %p222 = scmp.lt.s32.totalorder %s12, 3
    %p223 = pnand %p221, %p222
    %p224 = pneg %p223
    // Predicated region
    $region41: #{nar_tsp_net_forward.8} parent=5 // pred_check
      _
    $region42: #{nar_tsp_net_forward.8} parent=5 // pred_check_branch
      %226 = sbr.rel (%p223) target = $region44
    $region43: #{nar_tsp_net_forward.8} parent=5 // pred_region
      %s227 = ssub.s32 %s12, 1
      %p228 = scmp.lt.s32.totalorder %s17, 1
      %s229 = scalar_select %p228, %s17, 1
      %s230 = smul.addr %s229, 2
      %s231 = smul.addr %s230, 8
      %s232 = scalar_lea.vmem %s0, %s231
      %p233 = pneg %p38
      %p234 = pneg %p35
      %p235 = scmp.lt.s32.totalorder %s17, 1
      %s236 = scalar_select %p235, %s17, 1
      %s237 = smul.addr %s236, 2
      %s238 = smul.addr %s237, 8
      %s239 = scalar_lea.vmem %s1, %s238
      %p240 = pneg %p64
      %p241 = pneg %p61
      %p242 = pneg %p85
      %p243 = pneg %p82
      %p244 = pneg %p106
      %p245 = pneg %p103
      %p246 = pneg %p127
      %p247 = pneg %p124
      %p248 = pneg %p148
      %p249 = pneg %p145
      %p250 = pneg %p174
      %p251 = pneg %p171
      %p252 = scmp.lt.s32.totalorder %s17, 1
      %s253 = scalar_select %p252, %s17, 1
      %s254 = smul.addr %s253, 2
      %s255 = smul.addr %s254, 8
      %s256 = scalar_lea.vmem %s6, %s255
      %p257 = scmp.lt.s32.totalorder %s17, 1
      %s258 = scalar_select %p257, %s17, 1
      %s259 = smul.addr %s258, 2
      %s260 = smul.addr %s259, 8
      %s261 = scalar_lea.vmem %s0, %s260
      %p262 = scmp.lt.s32.totalorder %s17, 1
      %s263 = scalar_select %p262, %s17, 1
      %s264 = smul.addr %s263, 2
      %s265 = smul.addr %s264, 8
      %s266 = scalar_lea.vmem %s1, %s265
      %p267 = scmp.lt.s32.totalorder %s17, 1
      %s268 = scalar_select %p267, %s17, 1
      %s269 = smul.addr %s268, 2
      %s270 = smul.addr %s269, 8
      %s271 = scalar_lea.vmem %s6, %s270
      %v273 = vld [vmem:[%s261] sm:$0xff]
      %v274 = vld [vmem:[%s261 + $0x8] sm:$0x1]
      %v275 = vld [vmem:[%s266] sm:$0xff]
      %v276 = vld [vmem:[%s266 + $0x8] sm:$0x1]
      %v277 = vld [vmem:[%s3] sm:$0xff]
      %v278 = vld [vmem:[%s3 + $0x8] sm:$0x3]
      %v279 = vld [vmem:[%s4] sm:$0x1]
      %v280 = vld [vmem:[%s5] sm:$0x1]
      %v281 = vld [vmem:[%s2] sm:$0xf]
      %v282 = vld [vmem:[%s2 + $0x4] sm:$0xf]
      %v283 = vld [vmem:[%s2 + $0x8] sm:$0xf]
      %v284 = vld [vmem:[%s2 + $0xc] sm:$0xf]
      %v285 = vpack.c.bf16 %v276, %v275
      %v286 = vlaneseq
      %v287 = vshrl.u32 %v286, 7
      %v288 = vsub.s32 0, %v287
      %v289 = vrot.slane %v277, %v288
      %v294 = vunpack.c.l.b16 %v281
      %v295 = vunpack.c.l.b16 %v282
      %v296 = vunpack.c.l.b16 %v283
      %v297 = vunpack.c.l.b16 %v284
      %v298 = vpack.c.b16 %v295, %v294
      %v299 = vpack.c.b16 %v297, %v296
      %vm302 = vcmask 261120
      %v304 = vsel %vm302, %v285, 0
      %306 = vmatprep.subr.bf16.mxu0 0
      %307 = vmatpush1.bf16.msra.mxu0 0
      %308 = vmatprep.subr.bf16.mxu0 0
      %309 = vmatpush1.bf16.msra.mxu0 0
      %310 = vmatprep.subr.bf16.mxu0 0
      %311 = vmatpush1.bf16.msra.mxu0 0
      %312 = vmatprep.subr.bf16.mxu0 0
      %313 = vmatpush1.bf16.msra.mxu0 0
      %314 = vmatprep.subr.bf16.mxu0 0
      %315 = vmatpush1.bf16.msra.mxu0 0
      %316 = vmatprep.subr.bf16.mxu0 0
      %317 = vmatpush1.bf16.msra.mxu0 0
      %318 = vmatprep.subr.bf16.mxu0 0
      %319 = vmatpush1.bf16.msra.mxu0 %v299
      %320 = vmatprep.subr.bf16.mxu0 0
      %321 = vmatpush1.bf16.msra.mxu0 %v298
      %322 = vmatprep.subr.bf16.mxu0 0
      %323 = vmatpush2.bf16.msra.mxu0 0
      %324 = vmatprep.subr.bf16.mxu0 0
      %325 = vmatpush2.bf16.msra.mxu0 0
      %326 = vmatprep.subr.bf16.mxu0 0
      %327 = vmatpush2.bf16.msra.mxu0 0
      %328 = vmatprep.subr.bf16.mxu0 0
      %329 = vmatpush2.bf16.msra.mxu0 0
      %330 = vmatprep.subr.bf16.mxu0 0
      %331 = vmatpush2.bf16.msra.mxu0 0
      %332 = vmatprep.subr.bf16.mxu0 0
      %333 = vmatpush2.bf16.msra.mxu0 0
      %334 = vmatprep.subr.bf16.mxu0 0
      %335 = vmatpush2.bf16.msra.mxu0 0
      %336 = vmatprep.subr.bf16.mxu0 0
      %337 = vmatpush2.bf16.msra.mxu0 0
      %338 = vmatprep.mubr.bf16.mxu0 0
      %339 = vmatmul.mubr.bf16.gmra.mxu0 %v304
      %v340 = vpop.f32.mrf.mxu0
      %v341 = vadd.f32 %v289, %v340
      %v342 = vpop.f32.mrf.mxu0
      %v343 = vpop.f32.mrf.mxu0
      %v344 = vadd.f32 %v289, %v343
      %v345 = vpop.f32.mrf.mxu0
      %346 = vdwg.mxu0
      %s347 = scalar_lea.vmem %s2, 16
      %v348 = vld [vmem:[%s347] sm:$0xf]
      %v349 = vld [vmem:[%s347 + $0x4] sm:$0xf]
      %v350 = vld [vmem:[%s347 + $0x8] sm:$0xf]
      %v351 = vld [vmem:[%s347 + $0xc] sm:$0xf]
      %v352 = vlaneseq
      %v353 = vshrl.u32 %v352, 7
      %v354 = vsub.s32 1, %v353
      %v355 = vrot.slane %v277, %v354
      %v360 = vunpack.c.l.b16 %v348
      %v361 = vunpack.c.l.b16 %v349
      %v362 = vunpack.c.l.b16 %v350
      %v363 = vunpack.c.l.b16 %v351
      %v364 = vpack.c.b16 %v361, %v360
      %v365 = vpack.c.b16 %v363, %v362
      %368 = vmatprep.subr.bf16.mxu0 0
      %369 = vmatpush1.bf16.msra.mxu0 0
      %370 = vmatprep.subr.bf16.mxu0 0
      %371 = vmatpush1.bf16.msra.mxu0 0
      %372 = vmatprep.subr.bf16.mxu0 0
      %373 = vmatpush1.bf16.msra.mxu0 0
      %374 = vmatprep.subr.bf16.mxu0 0
      %375 = vmatpush1.bf16.msra.mxu0 0
      %376 = vmatprep.subr.bf16.mxu0 0
      %377 = vmatpush1.bf16.msra.mxu0 0
      %378 = vmatprep.subr.bf16.mxu0 0
      %379 = vmatpush1.bf16.msra.mxu0 0
      %380 = vmatprep.subr.bf16.mxu0 0
      %381 = vmatpush1.bf16.msra.mxu0 %v365
      %382 = vmatprep.subr.bf16.mxu0 0
      %383 = vmatpush1.bf16.msra.mxu0 %v364
      %384 = vmatprep.subr.bf16.mxu0 0
      %385 = vmatpush2.bf16.msra.mxu0 0
      %386 = vmatprep.subr.bf16.mxu0 0
      %387 = vmatpush2.bf16.msra.mxu0 0
      %388 = vmatprep.subr.bf16.mxu0 0
      %389 = vmatpush2.bf16.msra.mxu0 0
      %390 = vmatprep.subr.bf16.mxu0 0
      %391 = vmatpush2.bf16.msra.mxu0 0
      %392 = vmatprep.subr.bf16.mxu0 0
      %393 = vmatpush2.bf16.msra.mxu0 0
      %394 = vmatprep.subr.bf16.mxu0 0
      %395 = vmatpush2.bf16.msra.mxu0 0
      %396 = vmatprep.subr.bf16.mxu0 0
      %397 = vmatpush2.bf16.msra.mxu0 0
      %398 = vmatprep.subr.bf16.mxu0 0
      %399 = vmatpush2.bf16.msra.mxu0 0
      %400 = vmatprep.mubr.bf16.mxu0 0
      %401 = vmatmul.mubr.bf16.gmra.mxu0 %v304
      %v402 = vpop.f32.mrf.mxu0
      %v403 = vadd.f32 %v355, %v402
      %v404 = vpop.f32.mrf.mxu0
      %v405 = vpop.f32.mrf.mxu0
      %v406 = vadd.f32 %v355, %v405
      %v407 = vpop.f32.mrf.mxu0
      %408 = vdwg.mxu0
      %s409 = scalar_lea.vmem %s2, 32
      %v410 = vld [vmem:[%s409] sm:$0xf]
      %v411 = vld [vmem:[%s409 + $0x4] sm:$0xf]
      %v412 = vld [vmem:[%s409 + $0x8] sm:$0xf]
      %v413 = vld [vmem:[%s409 + $0xc] sm:$0xf]
      %v414 = vpack.c.bf16 %v274, %v273
      %v415 = vlaneseq
      %v416 = vshrl.u32 %v415, 7
      %v417 = vsub.s32 2, %v416
      %v418 = vrot.slane %v277, %v417
      %v423 = vunpack.c.l.b16 %v410
      %v424 = vunpack.c.l.b16 %v411
      %v425 = vunpack.c.l.b16 %v412
      %v426 = vunpack.c.l.b16 %v413
      %v427 = vpack.c.b16 %v424, %v423
      %v428 = vpack.c.b16 %v426, %v425
      %v432 = vsel %vm302, %v414, 0
      %434 = vmatprep.subr.bf16.mxu0 0
      %435 = vmatpush1.bf16.msra.mxu0 0
      %436 = vmatprep.subr.bf16.mxu0 0
      %437 = vmatpush1.bf16.msra.mxu0 0
      %438 = vmatprep.subr.bf16.mxu0 0
      %439 = vmatpush1.bf16.msra.mxu0 0
      %440 = vmatprep.subr.bf16.mxu0 0
      %441 = vmatpush1.bf16.msra.mxu0 0
      %442 = vmatprep.subr.bf16.mxu0 0
      %443 = vmatpush1.bf16.msra.mxu0 0
      %444 = vmatprep.subr.bf16.mxu0 0
      %445 = vmatpush1.bf16.msra.mxu0 0
      %446 = vmatprep.subr.bf16.mxu0 0
      %447 = vmatpush1.bf16.msra.mxu0 %v428
      %448 = vmatprep.subr.bf16.mxu0 0
      %449 = vmatpush1.bf16.msra.mxu0 %v427
      %450 = vmatprep.subr.bf16.mxu0 0
      %451 = vmatpush2.bf16.msra.mxu0 0
      %452 = vmatprep.subr.bf16.mxu0 0
      %453 = vmatpush2.bf16.msra.mxu0 0
      %454 = vmatprep.subr.bf16.mxu0 0
      %455 = vmatpush2.bf16.msra.mxu0 0
      %456 = vmatprep.subr.bf16.mxu0 0
      %457 = vmatpush2.bf16.msra.mxu0 0
      %458 = vmatprep.subr.bf16.mxu0 0
      %459 = vmatpush2.bf16.msra.mxu0 0
      %460 = vmatprep.subr.bf16.mxu0 0
      %461 = vmatpush2.bf16.msra.mxu0 0
      %462 = vmatprep.subr.bf16.mxu0 0
      %463 = vmatpush2.bf16.msra.mxu0 0
      %464 = vmatprep.subr.bf16.mxu0 0
      %465 = vmatpush2.bf16.msra.mxu0 0
      %466 = vmatprep.mubr.bf16.mxu0 0
      %467 = vmatmul.mubr.bf16.gmra.mxu0 %v432
      %v468 = vpop.f32.mrf.mxu0
      %v469 = vadd.f32 %v418, %v468
      %v470 = vpop.f32.mrf.mxu0
      %v471 = vpop.f32.mrf.mxu0
      %v472 = vadd.f32 %v418, %v471
      %v473 = vpop.f32.mrf.mxu0
      %474 = vdwg.mxu0
      %s475 = scalar_lea.vmem %s2, 48
      %v476 = vld [vmem:[%s475] sm:$0xf]
      %v477 = vld [vmem:[%s475 + $0x4] sm:$0xf]
      %v478 = vld [vmem:[%s475 + $0x8] sm:$0xf]
      %v479 = vld [vmem:[%s475 + $0xc] sm:$0xf]
      %v480 = vlaneseq
      %v481 = vshrl.u32 %v480, 7
      %v482 = vsub.s32 3, %v481
      %v483 = vrot.slane %v277, %v482
      %v488 = vunpack.c.l.b16 %v476
      %v489 = vunpack.c.l.b16 %v477
      %v490 = vunpack.c.l.b16 %v478
      %v491 = vunpack.c.l.b16 %v479
      %v492 = vpack.c.b16 %v489, %v488
      %v493 = vpack.c.b16 %v491, %v490
      %496 = vmatprep.subr.bf16.mxu0 0
      %497 = vmatpush1.bf16.msra.mxu0 0
      %498 = vmatprep.subr.bf16.mxu0 0
      %499 = vmatpush1.bf16.msra.mxu0 0
      %500 = vmatprep.subr.bf16.mxu0 0
      %501 = vmatpush1.bf16.msra.mxu0 0
      %502 = vmatprep.subr.bf16.mxu0 0
      %503 = vmatpush1.bf16.msra.mxu0 0
      %504 = vmatprep.subr.bf16.mxu0 0
      %505 = vmatpush1.bf16.msra.mxu0 0
      %506 = vmatprep.subr.bf16.mxu0 0
      %507 = vmatpush1.bf16.msra.mxu0 0
      %508 = vmatprep.subr.bf16.mxu0 0
      %509 = vmatpush1.bf16.msra.mxu0 %v493
      %510 = vmatprep.subr.bf16.mxu0 0
      %511 = vmatpush1.bf16.msra.mxu0 %v492
      %512 = vmatprep.subr.bf16.mxu0 0
      %513 = vmatpush2.bf16.msra.mxu0 0
      %514 = vmatprep.subr.bf16.mxu0 0
      %515 = vmatpush2.bf16.msra.mxu0 0
      %516 = vmatprep.subr.bf16.mxu0 0
      %517 = vmatpush2.bf16.msra.mxu0 0
      %518 = vmatprep.subr.bf16.mxu0 0
      %519 = vmatpush2.bf16.msra.mxu0 0
      %520 = vmatprep.subr.bf16.mxu0 0
      %521 = vmatpush2.bf16.msra.mxu0 0
      %522 = vmatprep.subr.bf16.mxu0 0
      %523 = vmatpush2.bf16.msra.mxu0 0
      %524 = vmatprep.subr.bf16.mxu0 0
      %525 = vmatpush2.bf16.msra.mxu0 0
      %526 = vmatprep.subr.bf16.mxu0 0
      %527 = vmatpush2.bf16.msra.mxu0 0
      %528 = vmatprep.mubr.bf16.mxu0 0
      %529 = vmatmul.mubr.bf16.gmra.mxu0 %v432
      %v530 = vpop.f32.mrf.mxu0
      %v531 = vadd.f32 %v483, %v530
      %v532 = vpop.f32.mrf.mxu0
      %v533 = vpop.f32.mrf.mxu0
      %v534 = vadd.f32 %v483, %v533
      %v535 = vpop.f32.mrf.mxu0
      %536 = vdwg.mxu0
      %s537 = scalar_lea.vmem %s2, 64
      %v538 = vld [vmem:[%s537] sm:$0xf]
      %v539 = vld [vmem:[%s537 + $0x4] sm:$0xf]
      %v540 = vld [vmem:[%s537 + $0x8] sm:$0xf]
      %v541 = vld [vmem:[%s537 + $0xc] sm:$0xf]
      %v542 = vlaneseq
      %v543 = vshrl.u32 %v542, 7
      %v544 = vsub.s32 4, %v543
      %v545 = vrot.slane %v277, %v544
      %v550 = vunpack.c.l.b16 %v538
      %v551 = vunpack.c.l.b16 %v539
      %v552 = vunpack.c.l.b16 %v540
      %v553 = vunpack.c.l.b16 %v541
      %v554 = vpack.c.b16 %v551, %v550
      %v555 = vpack.c.b16 %v553, %v552
      %558 = vmatprep.subr.bf16.mxu0 0
      %559 = vmatpush1.bf16.msra.mxu0 0
      %560 = vmatprep.subr.bf16.mxu0 0
      %561 = vmatpush1.bf16.msra.mxu0 0
      %562 = vmatprep.subr.bf16.mxu0 0
      %563 = vmatpush1.bf16.msra.mxu0 0
      %564 = vmatprep.subr.bf16.mxu0 0
      %565 = vmatpush1.bf16.msra.mxu0 0
      %566 = vmatprep.subr.bf16.mxu0 0
      %567 = vmatpush1.bf16.msra.mxu0 0
      %568 = vmatprep.subr.bf16.mxu0 0
      %569 = vmatpush1.bf16.msra.mxu0 0
      %570 = vmatprep.subr.bf16.mxu0 0
      %571 = vmatpush1.bf16.msra.mxu0 %v555
      %572 = vmatprep.subr.bf16.mxu0 0
      %573 = vmatpush1.bf16.msra.mxu0 %v554
      %574 = vmatprep.subr.bf16.mxu0 0
      %575 = vmatpush2.bf16.msra.mxu0 0
      %576 = vmatprep.subr.bf16.mxu0 0
      %577 = vmatpush2.bf16.msra.mxu0 0
      %578 = vmatprep.subr.bf16.mxu0 0
      %579 = vmatpush2.bf16.msra.mxu0 0
      %580 = vmatprep.subr.bf16.mxu0 0
      %581 = vmatpush2.bf16.msra.mxu0 0
      %582 = vmatprep.subr.bf16.mxu0 0
      %583 = vmatpush2.bf16.msra.mxu0 0
      %584 = vmatprep.subr.bf16.mxu0 0
      %585 = vmatpush2.bf16.msra.mxu0 0
      %586 = vmatprep.subr.bf16.mxu0 0
      %587 = vmatpush2.bf16.msra.mxu0 0
      %588 = vmatprep.subr.bf16.mxu0 0
      %589 = vmatpush2.bf16.msra.mxu0 0
      %590 = vmatprep.mubr.bf16.mxu0 0
      %591 = vmatmul.mubr.bf16.gmra.mxu0 %v432
      %v592 = vpop.f32.mrf.mxu0
      %v593 = vadd.f32 %v545, %v592
      %v594 = vpop.f32.mrf.mxu0
      %v595 = vpop.f32.mrf.mxu0
      %v596 = vadd.f32 %v545, %v595
      %v597 = vpop.f32.mrf.mxu0
      %598 = vdwg.mxu0
      %v599 = vpack.c.bf16 %v472, %v469
      %v600 = vpack.c.bf16 %v534, %v531
      %v601 = vpack.c.bf16 %v596, %v593
      %vm602 = vcmask 64512
      %v604 = vsel %vm602, %v599, 0
      %v607 = vsel %vm602, %v600, 0
      %609 = vmatprep.subr.bf16.mxu0 0
      %610 = vmatpush1.bf16.xpose.msra.mxu0 0
      %611 = vmatprep.subr.bf16.mxu0 0
      %612 = vmatpush1.bf16.xpose.msra.mxu0 0
      %613 = vmatprep.subr.bf16.mxu0 0
      %614 = vmatpush1.bf16.xpose.msra.mxu0 0
      %615 = vmatprep.subr.bf16.mxu0 0
      %616 = vmatpush1.bf16.xpose.msra.mxu0 0
      %617 = vmatprep.subr.bf16.mxu0 0
      %618 = vmatpush1.bf16.xpose.msra.mxu0 0
      %619 = vmatprep.subr.bf16.mxu0 0
      %620 = vmatpush1.bf16.xpose.msra.mxu0 0
      %621 = vmatprep.subr.bf16.mxu0 0
      %622 = vmatpush1.bf16.xpose.msra.mxu0 0
      %623 = vmatprep.subr.bf16.mxu0 0
      %624 = vmatpush1.bf16.xpose.msra.mxu0 %v607
      %625 = vmatprep.subr.bf16.mxu0 0
      %626 = vmatpush2.bf16.xpose.msra.mxu0 0
      %627 = vmatprep.subr.bf16.mxu0 0
      %628 = vmatpush2.bf16.xpose.msra.mxu0 0
      %629 = vmatprep.subr.bf16.mxu0 0
      %630 = vmatpush2.bf16.xpose.msra.mxu0 0
      %631 = vmatprep.subr.bf16.mxu0 0
      %632 = vmatpush2.bf16.xpose.msra.mxu0 0
      %633 = vmatprep.subr.bf16.mxu0 0
      %634 = vmatpush2.bf16.xpose.msra.mxu0 0
      %635 = vmatprep.subr.bf16.mxu0 0
      %636 = vmatpush2.bf16.xpose.msra.mxu0 0
      %637 = vmatprep.subr.bf16.mxu0 0
      %638 = vmatpush2.bf16.xpose.msra.mxu0 0
      %639 = vmatprep.subr.bf16.mxu0 0
      %640 = vmatpush2.bf16.xpose.msra.mxu0 0
      %641 = vmatprep.mubr.bf16.mxu0 0
      %642 = vmatmul.mubr.bf16.gmra.mxu0 %v604
      %v643 = vpop.f32.mrf.mxu0
      %v644 = vadd.f32 0.0, %v643
      %v645 = vpop.f32.mrf.mxu0
      %v646 = vpop.f32.mrf.mxu0
      %v647 = vadd.f32 0.0, %v646
      %v648 = vpop.f32.mrf.mxu0
      %649 = vdwg.mxu0
      %v650 = vmul.f32 %v644, 0.35355338
      %v651 = vmul.f32 %v647, 0.35355338
      %vm652 = vcmask 72704
      %v653 = vsel %vm652, %v650, -inf
      %654 = vmax.xlane.f32.xlu0 %v653
      %v655 = vpop.xlane.xlu0 %654
      %vm656 = vcmask 65536
      %v657 = vsel %vm656, %v651, -inf
      %658 = vmax.xlane.f32.xlu0 %v657
      %v659 = vpop.xlane.xlu0 %658
      %v660 = vsub.f32 %v650, %v655
      %v661 = vsub.f32 %v651, %v659
      %v662 = vmul.f32 %v660, 1.442695
      %v663 = vpow.pop %v662
      %v664 = vmul.f32 %v661, 1.442695
      %v665 = vpow.pop %v664
      %v666 = vsel %vm652, %v663, 0.0
      %667 = vadd.xlane.f32.xlu0 %v666
      %v668 = vpop.xlane.xlu0 %667
      %v669 = vsel %vm656, %v665, 0.0
      %670 = vadd.xlane.f32.xlu0 %v669
      %v671 = vpop.xlane.xlu0 %670
      %v672 = vrcp.pop %v668
      %v673 = vrcp.pop %v671
      %v674 = vmul.f32 %v663, %v672
      %v675 = vmul.f32 %v665, %v673
      %v676 = vpack.c.bf16 %v675, %v674
      %v678 = vsel %vm652, %v676, 0
      %vm680 = vcmask 1043456
      %vm681 = vcmask 1044480
      %v682 = vsel %vm680, 4294967295, 65535
      %v683 = vsel %vm681, %v682, 0
      %v685 = vand.u32 %v601, %v683
      %687 = vmatprep.subr.bf16.mxu0 0
      %688 = vmatpush1.bf16.msra.mxu0 0
      %689 = vmatprep.subr.bf16.mxu0 0
      %690 = vmatpush1.bf16.msra.mxu0 0
      %691 = vmatprep.subr.bf16.mxu0 0
      %692 = vmatpush1.bf16.msra.mxu0 0
      %693 = vmatprep.subr.bf16.mxu0 0
      %694 = vmatpush1.bf16.msra.mxu0 0
      %695 = vmatprep.subr.bf16.mxu0 0
      %696 = vmatpush1.bf16.msra.mxu0 0
      %697 = vmatprep.subr.bf16.mxu0 0
      %698 = vmatpush1.bf16.msra.mxu0 0
      %699 = vmatprep.subr.bf16.mxu0 0
      %700 = vmatpush1.bf16.msra.mxu0 0
      %701 = vmatprep.subr.bf16.mxu0 0
      %702 = vmatpush1.bf16.msra.mxu0 %v685
      %703 = vmatprep.subr.bf16.mxu0 0
      %704 = vmatpush2.bf16.msra.mxu0 0
      %705 = vmatprep.subr.bf16.mxu0 0
      %706 = vmatpush2.bf16.msra.mxu0 0
      %707 = vmatprep.subr.bf16.mxu0 0
      %708 = vmatpush2.bf16.msra.mxu0 0
      %709 = vmatprep.subr.bf16.mxu0 0
      %710 = vmatpush2.bf16.msra.mxu0 0
      %711 = vmatprep.subr.bf16.mxu0 0
      %712 = vmatpush2.bf16.msra.mxu0 0
      %713 = vmatprep.subr.bf16.mxu0 0
      %714 = vmatpush2.bf16.msra.mxu0 0
      %715 = vmatprep.subr.bf16.mxu0 0
      %716 = vmatpush2.bf16.msra.mxu0 0
      %717 = vmatprep.subr.bf16.mxu0 0
      %718 = vmatpush2.bf16.msra.mxu0 0
      %719 = vmatprep.mubr.bf16.mxu0 0
      %720 = vmatmul.mubr.bf16.gmra.mxu0 %v678
      %v721 = vpop.f32.mrf.mxu0
      %v722 = vadd.f32 0.0, %v721
      %v723 = vpop.f32.mrf.mxu0
      %v724 = vpop.f32.mrf.mxu0
      %v725 = vadd.f32 0.0, %v724
      %v726 = vpop.f32.mrf.mxu0
      %727 = vdwg.mxu0
      %729 = vrot.lane.b32.xlu0 %v599, 120
      %v730 = vpop.permute.xlu0 %729
      %732 = vrot.lane.b32.xlu0 %v600, 120
      %v733 = vpop.permute.xlu0 %732
      %v735 = vsel %vm602, %v730, 0
      %v738 = vsel %vm602, %v733, 0
      %740 = vmatprep.subr.bf16.mxu0 0
      %741 = vmatpush1.bf16.xpose.msra.mxu0 0
      %742 = vmatprep.subr.bf16.mxu0 0
      %743 = vmatpush1.bf16.xpose.msra.mxu0 0
      %744 = vmatprep.subr.bf16.mxu0 0
      %745 = vmatpush1.bf16.xpose.msra.mxu0 0
      %746 = vmatprep.subr.bf16.mxu0 0
      %747 = vmatpush1.bf16.xpose.msra.mxu0 0
      %748 = vmatprep.subr.bf16.mxu0 0
      %749 = vmatpush1.bf16.xpose.msra.mxu0 0
      %750 = vmatprep.subr.bf16.mxu0 0
      %751 = vmatpush1.bf16.xpose.msra.mxu0 0
      %752 = vmatprep.subr.bf16.mxu0 0
      %753 = vmatpush1.bf16.xpose.msra.mxu0 0
      %754 = vmatprep.subr.bf16.mxu0 0
      %755 = vmatpush1.bf16.xpose.msra.mxu0 %v738
      %756 = vmatprep.subr.bf16.mxu0 0
      %757 = vmatpush2.bf16.xpose.msra.mxu0 0
      %758 = vmatprep.subr.bf16.mxu0 0
      %759 = vmatpush2.bf16.xpose.msra.mxu0 0
      %760 = vmatprep.subr.bf16.mxu0 0
      %761 = vmatpush2.bf16.xpose.msra.mxu0 0
      %762 = vmatprep.subr.bf16.mxu0 0
      %763 = vmatpush2.bf16.xpose.msra.mxu0 0
      %764 = vmatprep.subr.bf16.mxu0 0
      %765 = vmatpush2.bf16.xpose.msra.mxu0 0
      %766 = vmatprep.subr.bf16.mxu0 0
      %767 = vmatpush2.bf16.xpose.msra.mxu0 0
      %768 = vmatprep.subr.bf16.mxu0 0
      %769 = vmatpush2.bf16.xpose.msra.mxu0 0
      %770 = vmatprep.subr.bf16.mxu0 0
      %771 = vmatpush2.bf16.xpose.msra.mxu0 0
      %772 = vmatprep.mubr.bf16.mxu0 0
      %773 = vmatmul.mubr.bf16.gmra.mxu0 %v735
      %v774 = vpop.f32.mrf.mxu0
      %v775 = vadd.f32 0.0, %v774
      %v776 = vpop.f32.mrf.mxu0
      %v777 = vpop.f32.mrf.mxu0
      %v778 = vadd.f32 0.0, %v777
      %v779 = vpop.f32.mrf.mxu0
      %780 = vdwg.mxu0
      %v781 = vmul.f32 %v775, 0.35355338
      %v782 = vmul.f32 %v778, 0.35355338
      %v783 = vsel %vm652, %v781, -inf
      %784 = vmax.xlane.f32.xlu0 %v783
      %v785 = vpop.xlane.xlu0 %784
      %v786 = vsel %vm656, %v782, -inf
      %787 = vmax.xlane.f32.xlu0 %v786
      %v788 = vpop.xlane.xlu0 %787
      %v789 = vsub.f32 %v781, %v785
      %v790 = vsub.f32 %v782, %v788
      %v791 = vmul.f32 %v789, 1.442695
      %v792 = vpow.pop %v791
      %v793 = vmul.f32 %v790, 1.442695
      %v794 = vpow.pop %v793
      %v795 = vsel %vm652, %v792, 0.0
      %796 = vadd.xlane.f32.xlu0 %v795
      %v797 = vpop.xlane.xlu0 %796
      %v798 = vsel %vm656, %v794, 0.0
      %799 = vadd.xlane.f32.xlu0 %v798
      %v800 = vpop.xlane.xlu0 %799
      %v801 = vrcp.pop %v797
      %v802 = vrcp.pop %v800
      %v803 = vmul.f32 %v792, %v801
      %v804 = vmul.f32 %v794, %v802
      %v805 = vpack.c.bf16 %v804, %v803
      %807 = vrot.lane.b32.xlu0 %v601, 120
      %v808 = vpop.permute.xlu0 %807
      %v810 = vsel %vm652, %v805, 0
      %v813 = vand.u32 %v808, %v683
      %815 = vmatprep.subr.bf16.mxu0 0
      %816 = vmatpush1.bf16.msra.mxu0 0
      %817 = vmatprep.subr.bf16.mxu0 0
      %818 = vmatpush1.bf16.msra.mxu0 0
      %819 = vmatprep.subr.bf16.mxu0 0
      %820 = vmatpush1.bf16.msra.mxu0 0
      %821 = vmatprep.subr.bf16.mxu0 0
      %822 = vmatpush1.bf16.msra.mxu0 0
      %823 = vmatprep.subr.bf16.mxu0 0
      %824 = vmatpush1.bf16.msra.mxu0 0
      %825 = vmatprep.subr.bf16.mxu0 0
      %826 = vmatpush1.bf16.msra.mxu0 0
      %827 = vmatprep.subr.bf16.mxu0 0
      %828 = vmatpush1.bf16.msra.mxu0 0
      %829 = vmatprep.subr.bf16.mxu0 0
      %830 = vmatpush1.bf16.msra.mxu0 %v813
      %831 = vmatprep.subr.bf16.mxu0 0
      %832 = vmatpush2.bf16.msra.mxu0 0
      %833 = vmatprep.subr.bf16.mxu0 0
      %834 = vmatpush2.bf16.msra.mxu0 0
      %835 = vmatprep.subr.bf16.mxu0 0
      %836 = vmatpush2.bf16.msra.mxu0 0
      %837 = vmatprep.subr.bf16.mxu0 0
      %838 = vmatpush2.bf16.msra.mxu0 0
      %839 = vmatprep.subr.bf16.mxu0 0
      %840 = vmatpush2.bf16.msra.mxu0 0
      %841 = vmatprep.subr.bf16.mxu0 0
      %842 = vmatpush2.bf16.msra.mxu0 0
      %843 = vmatprep.subr.bf16.mxu0 0
      %844 = vmatpush2.bf16.msra.mxu0 0
      %845 = vmatprep.subr.bf16.mxu0 0
      %846 = vmatpush2.bf16.msra.mxu0 0
      %847 = vmatprep.mubr.bf16.mxu0 0
      %848 = vmatmul.mubr.bf16.gmra.mxu0 %v810
      %v849 = vpop.f32.mrf.mxu0
      %v850 = vadd.f32 0.0, %v849
      %v851 = vpop.f32.mrf.mxu0
      %v852 = vpop.f32.mrf.mxu0
      %v853 = vadd.f32 0.0, %v852
      %v854 = vpop.f32.mrf.mxu0
      %855 = vdwg.mxu0
      %856 = vrot.lane.b32.xlu0 %v599, 112
      %v857 = vpop.permute.xlu0 %856
      %858 = vrot.lane.b32.xlu0 %v600, 112
      %v859 = vpop.permute.xlu0 %858
      %v861 = vsel %vm602, %v857, 0
      %v864 = vsel %vm602, %v859, 0
      %866 = vmatprep.subr.bf16.mxu0 0
      %867 = vmatpush1.bf16.xpose.msra.mxu0 0
      %868 = vmatprep.subr.bf16.mxu0 0
      %869 = vmatpush1.bf16.xpose.msra.mxu0 0
      %870 = vmatprep.subr.bf16.mxu0 0
      %871 = vmatpush1.bf16.xpose.msra.mxu0 0
      %872 = vmatprep.subr.bf16.mxu0 0
      %873 = vmatpush1.bf16.xpose.msra.mxu0 0
      %874 = vmatprep.subr.bf16.mxu0 0
      %875 = vmatpush1.bf16.xpose.msra.mxu0 0
      %876 = vmatprep.subr.bf16.mxu0 0
      %877 = vmatpush1.bf16.xpose.msra.mxu0 0
      %878 = vmatprep.subr.bf16.mxu0 0
      %879 = vmatpush1.bf16.xpose.msra.mxu0 0
      %880 = vmatprep.subr.bf16.mxu0 0
      %881 = vmatpush1.bf16.xpose.msra.mxu0 %v864
      %882 = vmatprep.subr.bf16.mxu0 0
      %883 = vmatpush2.bf16.xpose.msra.mxu0 0
      %884 = vmatprep.subr.bf16.mxu0 0
      %885 = vmatpush2.bf16.xpose.msra.mxu0 0
      %886 = vmatprep.subr.bf16.mxu0 0
      %887 = vmatpush2.bf16.xpose.msra.mxu0 0
      %888 = vmatprep.subr.bf16.mxu0 0
      %889 = vmatpush2.bf16.xpose.msra.mxu0 0
      %890 = vmatprep.subr.bf16.mxu0 0
      %891 = vmatpush2.bf16.xpose.msra.mxu0 0
      %892 = vmatprep.subr.bf16.mxu0 0
      %893 = vmatpush2.bf16.xpose.msra.mxu0 0
      %894 = vmatprep.subr.bf16.mxu0 0
      %895 = vmatpush2.bf16.xpose.msra.mxu0 0
      %896 = vmatprep.subr.bf16.mxu0 0
      %897 = vmatpush2.bf16.xpose.msra.mxu0 0
      %898 = vmatprep.mubr.bf16.mxu0 0
      %899 = vmatmul.mubr.bf16.gmra.mxu0 %v861
      %v900 = vpop.f32.mrf.mxu0
      %v901 = vadd.f32 0.0, %v900
      %v902 = vpop.f32.mrf.mxu0
      %v903 = vpop.f32.mrf.mxu0
      %v904 = vadd.f32 0.0, %v903
      %v905 = vpop.f32.mrf.mxu0
      %906 = vdwg.mxu0
      %v907 = vmul.f32 %v901, 0.35355338
      %v908 = vmul.f32 %v904, 0.35355338
      %v909 = vsel %vm652, %v907, -inf
      %910 = vmax.xlane.f32.xlu0 %v909
      %v911 = vpop.xlane.xlu0 %910
      %v912 = vsel %vm656, %v908, -inf
      %913 = vmax.xlane.f32.xlu0 %v912
      %v914 = vpop.xlane.xlu0 %913
      %v915 = vsub.f32 %v907, %v911
      %v916 = vsub.f32 %v908, %v914
      %v917 = vmul.f32 %v915, 1.442695
      %v918 = vpow.pop %v917
      %v919 = vmul.f32 %v916, 1.442695
      %v920 = vpow.pop %v919
      %v921 = vsel %vm652, %v918, 0.0
      %922 = vadd.xlane.f32.xlu0 %v921
      %v923 = vpop.xlane.xlu0 %922
      %v924 = vsel %vm656, %v920, 0.0
      %925 = vadd.xlane.f32.xlu0 %v924
      %v926 = vpop.xlane.xlu0 %925
      %v927 = vrcp.pop %v923
      %v928 = vrcp.pop %v926
      %v929 = vmul.f32 %v918, %v927
      %v930 = vmul.f32 %v920, %v928
      %v931 = vpack.c.bf16 %v930, %v929
      %932 = vrot.lane.b32.xlu0 %v601, 112
      %v933 = vpop.permute.xlu0 %932
      %v935 = vsel %vm652, %v931, 0
      %v938 = vand.u32 %v933, %v683
      %940 = vmatprep.subr.bf16.mxu0 0
      %941 = vmatpush1.bf16.msra.mxu0 0
      %942 = vmatprep.subr.bf16.mxu0 0
      %943 = vmatpush1.bf16.msra.mxu0 0
      %944 = vmatprep.subr.bf16.mxu0 0
      %945 = vmatpush1.bf16.msra.mxu0 0
      %946 = vmatprep.subr.bf16.mxu0 0
      %947 = vmatpush1.bf16.msra.mxu0 0
      %948 = vmatprep.subr.bf16.mxu0 0
      %949 = vmatpush1.bf16.msra.mxu0 0
      %950 = vmatprep.subr.bf16.mxu0 0
      %951 = vmatpush1.bf16.msra.mxu0 0
      %952 = vmatprep.subr.bf16.mxu0 0
      %953 = vmatpush1.bf16.msra.mxu0 0
      %954 = vmatprep.subr.bf16.mxu0 0
      %955 = vmatpush1.bf16.msra.mxu0 %v938
      %956 = vmatprep.subr.bf16.mxu0 0
      %957 = vmatpush2.bf16.msra.mxu0 0
      %958 = vmatprep.subr.bf16.mxu0 0
      %959 = vmatpush2.bf16.msra.mxu0 0
      %960 = vmatprep.subr.bf16.mxu0 0
      %961 = vmatpush2.bf16.msra.mxu0 0
      %962 = vmatprep.subr.bf16.mxu0 0
      %963 = vmatpush2.bf16.msra.mxu0 0
      %964 = vmatprep.subr.bf16.mxu0 0
      %965 = vmatpush2.bf16.msra.mxu0 0
      %966 = vmatprep.subr.bf16.mxu0 0
      %967 = vmatpush2.bf16.msra.mxu0 0
      %968 = vmatprep.subr.bf16.mxu0 0
      %969 = vmatpush2.bf16.msra.mxu0 0
      %970 = vmatprep.subr.bf16.mxu0 0
      %971 = vmatpush2.bf16.msra.mxu0 0
      %972 = vmatprep.mubr.bf16.mxu0 0
      %973 = vmatmul.mubr.bf16.gmra.mxu0 %v935
      %v974 = vpop.f32.mrf.mxu0
      %v975 = vadd.f32 0.0, %v974
      %v976 = vpop.f32.mrf.mxu0
      %v977 = vpop.f32.mrf.mxu0
      %v978 = vadd.f32 0.0, %v977
      %v979 = vpop.f32.mrf.mxu0
      %980 = vdwg.mxu0
      %981 = vrot.lane.b32.xlu0 %v599, 104
      %v982 = vpop.permute.xlu0 %981
      %983 = vrot.lane.b32.xlu0 %v600, 104
      %v984 = vpop.permute.xlu0 %983
      %v986 = vsel %vm602, %v982, 0
      %v989 = vsel %vm602, %v984, 0
      %991 = vmatprep.subr.bf16.mxu0 0
      %992 = vmatpush1.bf16.xpose.msra.mxu0 0
      %993 = vmatprep.subr.bf16.mxu0 0
      %994 = vmatpush1.bf16.xpose.msra.mxu0 0
      %995 = vmatprep.subr.bf16.mxu0 0
      %996 = vmatpush1.bf16.xpose.msra.mxu0 0
      %997 = vmatprep.subr.bf16.mxu0 0
      %998 = vmatpush1.bf16.xpose.msra.mxu0 0
      %999 = vmatprep.subr.bf16.mxu0 0
      %1000 = vmatpush1.bf16.xpose.msra.mxu0 0
      %1001 = vmatprep.subr.bf16.mxu0 0
      %1002 = vmatpush1.bf16.xpose.msra.mxu0 0
      %1003 = vmatprep.subr.bf16.mxu0 0
      %1004 = vmatpush1.bf16.xpose.msra.mxu0 0
      %1005 = vmatprep.subr.bf16.mxu0 0
      %1006 = vmatpush1.bf16.xpose.msra.mxu0 %v989
      %1007 = vmatprep.subr.bf16.mxu0 0
      %1008 = vmatpush2.bf16.xpose.msra.mxu0 0
      %1009 = vmatprep.subr.bf16.mxu0 0
      %1010 = vmatpush2.bf16.xpose.msra.mxu0 0
      %1011 = vmatprep.subr.bf16.mxu0 0
      %1012 = vmatpush2.bf16.xpose.msra.mxu0 0
      %1013 = vmatprep.subr.bf16.mxu0 0
      %1014 = vmatpush2.bf16.xpose.msra.mxu0 0
      %1015 = vmatprep.subr.bf16.mxu0 0
      %1016 = vmatpush2.bf16.xpose.msra.mxu0 0
      %1017 = vmatprep.subr.bf16.mxu0 0
      %1018 = vmatpush2.bf16.xpose.msra.mxu0 0
      %1019 = vmatprep.subr.bf16.mxu0 0
      %1020 = vmatpush2.bf16.xpose.msra.mxu0 0
      %1021 = vmatprep.subr.bf16.mxu0 0
      %1022 = vmatpush2.bf16.xpose.msra.mxu0 0
      %1023 = vmatprep.mubr.bf16.mxu0 0
      %1024 = vmatmul.mubr.bf16.gmra.mxu0 %v986
      %v1025 = vpop.f32.mrf.mxu0
      %v1026 = vadd.f32 0.0, %v1025
      %v1027 = vpop.f32.mrf.mxu0
      %v1028 = vpop.f32.mrf.mxu0
      %v1029 = vadd.f32 0.0, %v1028
      %v1030 = vpop.f32.mrf.mxu0
      %1031 = vdwg.mxu0
      %v1032 = vmul.f32 %v1026, 0.35355338
      %v1033 = vmul.f32 %v1029, 0.35355338
      %v1034 = vsel %vm652, %v1032, -inf
      %1035 = vmax.xlane.f32.xlu0 %v1034
      %v1036 = vpop.xlane.xlu0 %1035
      %v1037 = vsel %vm656, %v1033, -inf
      %1038 = vmax.xlane.f32.xlu0 %v1037
      %v1039 = vpop.xlane.xlu0 %1038
      %v1040 = vsub.f32 %v1032, %v1036
      %v1041 = vsub.f32 %v1033, %v1039
      %v1042 = vmul.f32 %v1040, 1.442695
      %v1043 = vpow.pop %v1042
      %v1044 = vmul.f32 %v1041, 1.442695
      %v1045 = vpow.pop %v1044
      %v1046 = vsel %vm652, %v1043, 0.0
      %1047 = vadd.xlane.f32.xlu0 %v1046
      %v1048 = vpop.xlane.xlu0 %1047
      %v1049 = vsel %vm656, %v1045, 0.0
      %1050 = vadd.xlane.f32.xlu0 %v1049
      %v1051 = vpop.xlane.xlu0 %1050
      %v1052 = vrcp.pop %v1048
      %v1053 = vrcp.pop %v1051
      %v1054 = vmul.f32 %v1043, %v1052
      %v1055 = vmul.f32 %v1045, %v1053
      %v1056 = vpack.c.bf16 %v1055, %v1054
      %1057 = vrot.lane.b32.xlu0 %v601, 104
      %v1058 = vpop.permute.xlu0 %1057
      %v1060 = vsel %vm652, %v1056, 0
      %v1063 = vand.u32 %v1058, %v683
      %1065 = vmatprep.subr.bf16.mxu0 0
      %1066 = vmatpush1.bf16.msra.mxu0 0
      %1067 = vmatprep.subr.bf16.mxu0 0
      %1068 = vmatpush1.bf16.msra.mxu0 0
      %1069 = vmatprep.subr.bf16.mxu0 0
      %1070 = vmatpush1.bf16.msra.mxu0 0
      %1071 = vmatprep.subr.bf16.mxu0 0
      %1072 = vmatpush1.bf16.msra.mxu0 0
      %1073 = vmatprep.subr.bf16.mxu0 0
      %1074 = vmatpush1.bf16.msra.mxu0 0
      %1075 = vmatprep.subr.bf16.mxu0 0
      %1076 = vmatpush1.bf16.msra.mxu0 0
      %1077 = vmatprep.subr.bf16.mxu0 0
      %1078 = vmatpush1.bf16.msra.mxu0 0
      %1079 = vmatprep.subr.bf16.mxu0 0
      %1080 = vmatpush1.bf16.msra.mxu0 %v1063
      %1081 = vmatprep.subr.bf16.mxu0 0
      %1082 = vmatpush2.bf16.msra.mxu0 0
      %1083 = vmatprep.subr.bf16.mxu0 0
      %1084 = vmatpush2.bf16.msra.mxu0 0
      %1085 = vmatprep.subr.bf16.mxu0 0
      %1086 = vmatpush2.bf16.msra.mxu0 0
      %1087 = vmatprep.subr.bf16.mxu0 0
      %1088 = vmatpush2.bf16.msra.mxu0 0
      %1089 = vmatprep.subr.bf16.mxu0 0
      %1090 = vmatpush2.bf16.msra.mxu0 0
      %1091 = vmatprep.subr.bf16.mxu0 0
      %1092 = vmatpush2.bf16.msra.mxu0 0
      %1093 = vmatprep.subr.bf16.mxu0 0
      %1094 = vmatpush2.bf16.msra.mxu0 0
      %1095 = vmatprep.subr.bf16.mxu0 0
      %1096 = vmatpush2.bf16.msra.mxu0 0
      %1097 = vmatprep.mubr.bf16.mxu0 0
      %1098 = vmatmul.mubr.bf16.gmra.mxu0 %v1060
      %v1099 = vpop.f32.mrf.mxu0
      %v1100 = vadd.f32 0.0, %v1099
      %v1101 = vpop.f32.mrf.mxu0
      %v1102 = vpop.f32.mrf.mxu0
      %v1103 = vadd.f32 0.0, %v1102
      %v1104 = vpop.f32.mrf.mxu0
      %1105 = vdwg.mxu0
      %1108 = vrot.lane.b32.xlu0 %v850, 8
      %v1109 = vpop.permute.xlu0 %1108
      %1110 = vrot.lane.b32.xlu0 %v853, 8
      %v1111 = vpop.permute.xlu0 %1110
      %1116 = vrot.lane.b32.xlu0 %v975, 16
      %v1117 = vpop.permute.xlu0 %1116
      %1118 = vrot.lane.b32.xlu0 %v978, 16
      %v1119 = vpop.permute.xlu0 %1118
      %1124 = vrot.lane.b32.xlu0 %v1100, 24
      %v1125 = vpop.permute.xlu0 %1124
      %1126 = vrot.lane.b32.xlu0 %v1103, 24
      %v1127 = vpop.permute.xlu0 %1126
      %v1130 = vsel %vm602, %v722, %v1109
      %v1131 = vsel %vm602, %v725, %v1111
      %vm1132 = vcmask 130048
      %v1133 = vsel %vm1132, %v1130, %v1117
      %v1134 = vsel %vm1132, %v1131, %v1119
      %vm1135 = vcmask 195584
      %v1136 = vsel %vm1135, %v1133, %v1125
      %v1137 = vsel %vm1135, %v1134, %v1127
      %s1138 = scalar_lea.vmem %s2, 80
      %v1139 = vld [vmem:[%s1138] sm:$0xf]
      %v1140 = vld [vmem:[%s1138 + $0x4] sm:$0xf]
      %v1141 = vld [vmem:[%s1138 + $0x8] sm:$0xf]
      %v1142 = vld [vmem:[%s1138 + $0xc] sm:$0xf]
      %v1143 = vpack.c.bf16 %v1137, %v1136
      %v1144 = vlaneseq
      %v1145 = vshrl.u32 %v1144, 7
      %v1146 = vsub.s32 5, %v1145
      %v1147 = vrot.slane %v277, %v1146
      %v1152 = vunpack.c.l.b16 %v1139
      %v1153 = vunpack.c.l.b16 %v1140
      %v1154 = vunpack.c.l.b16 %v1141
      %v1155 = vunpack.c.l.b16 %v1142
      %v1156 = vpack.c.b16 %v1153, %v1152
      %v1157 = vpack.c.b16 %v1155, %v1154
      %v1161 = vsel %vm302, %v1143, 0
      %1163 = vmatprep.subr.bf16.mxu0 0
      %1164 = vmatpush1.bf16.msra.mxu0 0
      %1165 = vmatprep.subr.bf16.mxu0 0
      %1166 = vmatpush1.bf16.msra.mxu0 0
      %1167 = vmatprep.subr.bf16.mxu0 0
      %1168 = vmatpush1.bf16.msra.mxu0 0
      %1169 = vmatprep.subr.bf16.mxu0 0
      %1170 = vmatpush1.bf16.msra.mxu0 0
      %1171 = vmatprep.subr.bf16.mxu0 0
      %1172 = vmatpush1.bf16.msra.mxu0 0
      %1173 = vmatprep.subr.bf16.mxu0 0
      %1174 = vmatpush1.bf16.msra.mxu0 0
      %1175 = vmatprep.subr.bf16.mxu0 0
      %1176 = vmatpush1.bf16.msra.mxu0 %v1157
      %1177 = vmatprep.subr.bf16.mxu0 0
      %1178 = vmatpush1.bf16.msra.mxu0 %v1156
      %1179 = vmatprep.subr.bf16.mxu0 0
      %1180 = vmatpush2.bf16.msra.mxu0 0
      %1181 = vmatprep.subr.bf16.mxu0 0
      %1182 = vmatpush2.bf16.msra.mxu0 0
      %1183 = vmatprep.subr.bf16.mxu0 0
      %1184 = vmatpush2.bf16.msra.mxu0 0
      %1185 = vmatprep.subr.bf16.mxu0 0
      %1186 = vmatpush2.bf16.msra.mxu0 0
      %1187 = vmatprep.subr.bf16.mxu0 0
      %1188 = vmatpush2.bf16.msra.mxu0 0
      %1189 = vmatprep.subr.bf16.mxu0 0
      %1190 = vmatpush2.bf16.msra.mxu0 0
      %1191 = vmatprep.subr.bf16.mxu0 0
      %1192 = vmatpush2.bf16.msra.mxu0 0
      %1193 = vmatprep.subr.bf16.mxu0 0
      %1194 = vmatpush2.bf16.msra.mxu0 0
      %1195 = vmatprep.mubr.bf16.mxu0 0
      %1196 = vmatmul.mubr.bf16.gmra.mxu0 %v1161
      %v1197 = vpop.f32.mrf.mxu0
      %v1198 = vadd.f32 %v1147, %v1197
      %v1199 = vpop.f32.mrf.mxu0
      %v1200 = vpop.f32.mrf.mxu0
      %v1201 = vadd.f32 %v1147, %v1200
      %v1202 = vpop.f32.mrf.mxu0
      %1203 = vdwg.mxu0
      %v1204 = vadd.f32 %v273, %v1198
      %v1205 = vadd.f32 %v274, %v1201
      %v1206 = vsel %vm302, %v1204, 0.0
      %1207 = vadd.xlane.f32.xlu0 %v1206
      %v1208 = vpop.xlane.xlu0 %1207
      %vm1209 = vcmask 253952
      %v1210 = vsel %vm1209, %v1205, 0.0
      %1211 = vadd.xlane.f32.xlu0 %v1210
      %v1212 = vpop.xlane.xlu0 %1211
      %v1213 = vrcp.pop 32.0
      %v1214 = vmul.f32 %v1208, %v1213
      %v1215 = vmul.f32 %v1212, %v1213
      %v1216 = vsub.f32 %v1204, %v1214
      %v1217 = vsub.f32 %v1205, %v1215
      %v1218 = vmul.f32 %v1216, %v1216
      %v1219 = vmul.f32 %v1217, %v1217
      %v1220 = vsel %vm302, %v1218, 0.0
      %1221 = vadd.xlane.f32.xlu0 %v1220
      %v1222 = vpop.xlane.xlu0 %1221
      %v1223 = vsel %vm1209, %v1219, 0.0
      %1224 = vadd.xlane.f32.xlu0 %v1223
      %v1225 = vpop.xlane.xlu0 %1224
      %v1226 = vmul.f32 %v1222, %v1213
      %v1227 = vmul.f32 %v1225, %v1213
      %v1228 = vadd.f32 %v1226, 1e-05
      %v1229 = vadd.f32 %v1227, 1e-05
      %v1230 = vrsqrt.pop %v1228
      %v1231 = vrsqrt.pop %v1229
      %v1232 = vmul.f32 %v1216, %v1230
      %v1233 = vmul.f32 %v1217, %v1231
      %v1235 = vlaneseq
      %v1236 = vshrl.u32 %v1235, 7
      %v1237 = vsub.s32 0, %v1236
      %v1238 = vrot.slane %v279, %v1237
      %v1240 = vmul.f32 %v1232, %v1238
      %v1241 = vmul.f32 %v1233, %v1238
      %v1243 = vlaneseq
      %v1244 = vshrl.u32 %v1243, 7
      %v1245 = vsub.s32 0, %v1244
      %v1246 = vrot.slane %v280, %v1245
      %v1248 = vadd.f32 %v1240, %v1246
      %v1249 = vadd.f32 %v1241, %v1246
      %s1250 = scalar_lea.vmem %s2, 96
      %v1251 = vld [vmem:[%s1250] sm:$0xf]
      %v1252 = vld [vmem:[%s1250 + $0x4] sm:$0xf]
      %v1253 = vld [vmem:[%s1250 + $0x8] sm:$0xf]
      %v1254 = vld [vmem:[%s1250 + $0xc] sm:$0xf]
      %v1255 = vpack.c.bf16 %v1249, %v1248
      %v1256 = vlaneseq
      %v1257 = vshrl.u32 %v1256, 7
      %v1258 = vsub.s32 6, %v1257
      %v1259 = vrot.slane %v277, %v1258
      %v1264 = vunpack.c.l.b16 %v1251
      %v1265 = vunpack.c.l.b16 %v1252
      %v1266 = vunpack.c.l.b16 %v1253
      %v1267 = vunpack.c.l.b16 %v1254
      %v1268 = vpack.c.b16 %v1265, %v1264
      %v1269 = vpack.c.b16 %v1267, %v1266
      %v1273 = vsel %vm302, %v1255, 0
      %1275 = vmatprep.subr.bf16.mxu0 0
      %1276 = vmatpush1.bf16.msra.mxu0 0
      %1277 = vmatprep.subr.bf16.mxu0 0
      %1278 = vmatpush1.bf16.msra.mxu0 0
      %1279 = vmatprep.subr.bf16.mxu0 0
      %1280 = vmatpush1.bf16.msra.mxu0 0
      %1281 = vmatprep.subr.bf16.mxu0 0
      %1282 = vmatpush1.bf16.msra.mxu0 0
      %1283 = vmatprep.subr.bf16.mxu0 0
      %1284 = vmatpush1.bf16.msra.mxu0 0
      %1285 = vmatprep.subr.bf16.mxu0 0
      %1286 = vmatpush1.bf16.msra.mxu0 0
      %1287 = vmatprep.subr.bf16.mxu0 0
      %1288 = vmatpush1.bf16.msra.mxu0 %v1269
      %1289 = vmatprep.subr.bf16.mxu0 0
      %1290 = vmatpush1.bf16.msra.mxu0 %v1268
      %1291 = vmatprep.subr.bf16.mxu0 0
      %1292 = vmatpush2.bf16.msra.mxu0 0
      %1293 = vmatprep.subr.bf16.mxu0 0
      %1294 = vmatpush2.bf16.msra.mxu0 0
      %1295 = vmatprep.subr.bf16.mxu0 0
      %1296 = vmatpush2.bf16.msra.mxu0 0
      %1297 = vmatprep.subr.bf16.mxu0 0
      %1298 = vmatpush2.bf16.msra.mxu0 0
      %1299 = vmatprep.subr.bf16.mxu0 0
      %1300 = vmatpush2.bf16.msra.mxu0 0
      %1301 = vmatprep.subr.bf16.mxu0 0
      %1302 = vmatpush2.bf16.msra.mxu0 0
      %1303 = vmatprep.subr.bf16.mxu0 0
      %1304 = vmatpush2.bf16.msra.mxu0 0
      %1305 = vmatprep.subr.bf16.mxu0 0
      %1306 = vmatpush2.bf16.msra.mxu0 0
      %1307 = vmatprep.mubr.bf16.mxu0 0
      %1308 = vmatmul.mubr.bf16.gmra.mxu0 %v1273
      %v1309 = vpop.f32.mrf.mxu0
      %v1310 = vadd.f32 %v1259, %v1309
      %v1311 = vpop.f32.mrf.mxu0
      %v1312 = vpop.f32.mrf.mxu0
      %v1313 = vadd.f32 %v1259, %v1312
      %v1314 = vpop.f32.mrf.mxu0
      %1315 = vdwg.mxu0
      %v1316 = vpack.c.bf16 %v1313, %v1310
      %v1317 = vpack.c.bf16 %v344, %v341
      %v1318 = vpack.c.bf16 %v406, %v403
      %v1320 = vsel %vm602, %v1316, 0
      %v1323 = vsel %vm602, %v1317, 0
      %1325 = vmatprep.subr.bf16.mxu0 0
      %1326 = vmatpush1.bf16.xpose.msra.mxu0 0
      %1327 = vmatprep.subr.bf16.mxu0 0
      %1328 = vmatpush1.bf16.xpose.msra.mxu0 0
      %1329 = vmatprep.subr.bf16.mxu0 0
      %1330 = vmatpush1.bf16.xpose.msra.mxu0 0
      %1331 = vmatprep.subr.bf16.mxu0 0
      %1332 = vmatpush1.bf16.xpose.msra.mxu0 0
      %1333 = vmatprep.subr.bf16.mxu0 0
      %1334 = vmatpush1.bf16.xpose.msra.mxu0 0
      %1335 = vmatprep.subr.bf16.mxu0 0
      %1336 = vmatpush1.bf16.xpose.msra.mxu0 0
      %1337 = vmatprep.subr.bf16.mxu0 0
      %1338 = vmatpush1.bf16.xpose.msra.mxu0 0
      %1339 = vmatprep.subr.bf16.mxu0 0
      %1340 = vmatpush1.bf16.xpose.msra.mxu0 %v1323
      %1341 = vmatprep.subr.bf16.mxu0 0
      %1342 = vmatpush2.bf16.xpose.msra.mxu0 0
      %1343 = vmatprep.subr.bf16.mxu0 0
      %1344 = vmatpush2.bf16.xpose.msra.mxu0 0
      %1345 = vmatprep.subr.bf16.mxu0 0
      %1346 = vmatpush2.bf16.xpose.msra.mxu0 0
      %1347 = vmatprep.subr.bf16.mxu0 0
      %1348 = vmatpush2.bf16.xpose.msra.mxu0 0
      %1349 = vmatprep.subr.bf16.mxu0 0
      %1350 = vmatpush2.bf16.xpose.msra.mxu0 0
      %1351 = vmatprep.subr.bf16.mxu0 0
      %1352 = vmatpush2.bf16.xpose.msra.mxu0 0
      %1353 = vmatprep.subr.bf16.mxu0 0
      %1354 = vmatpush2.bf16.xpose.msra.mxu0 0
      %1355 = vmatprep.subr.bf16.mxu0 0
      %1356 = vmatpush2.bf16.xpose.msra.mxu0 0
      %1357 = vmatprep.mubr.bf16.mxu0 0
      %1358 = vmatmul.mubr.bf16.gmra.mxu0 %v1320
      %v1359 = vpop.f32.mrf.mxu0
      %v1360 = vadd.f32 0.0, %v1359
      %v1361 = vpop.f32.mrf.mxu0
      %v1362 = vpop.f32.mrf.mxu0
      %v1363 = vadd.f32 0.0, %v1362
      %v1364 = vpop.f32.mrf.mxu0
      %1365 = vdwg.mxu0
      %v1366 = vmul.f32 %v1360, 0.35355338
      %v1367 = vmul.f32 %v1363, 0.35355338
      %v1368 = vsel %vm652, %v1366, -inf
      %1369 = vmax.xlane.f32.xlu0 %v1368
      %v1370 = vpop.xlane.xlu0 %1369
      %v1371 = vsel %vm656, %v1367, -inf
      %1372 = vmax.xlane.f32.xlu0 %v1371
      %v1373 = vpop.xlane.xlu0 %1372
      %v1374 = vsub.f32 %v1366, %v1370
      %v1375 = vsub.f32 %v1367, %v1373
      %v1376 = vmul.f32 %v1374, 1.442695
      %v1377 = vpow.pop %v1376
      %v1378 = vmul.f32 %v1375, 1.442695
      %v1379 = vpow.pop %v1378
      %v1380 = vsel %vm652, %v1377, 0.0
      %1381 = vadd.xlane.f32.xlu0 %v1380
      %v1382 = vpop.xlane.xlu0 %1381
      %v1383 = vsel %vm656, %v1379, 0.0
      %1384 = vadd.xlane.f32.xlu0 %v1383
      %v1385 = vpop.xlane.xlu0 %1384
      %v1386 = vrcp.pop %v1382
      %v1387 = vrcp.pop %v1385
      %v1388 = vmul.f32 %v1377, %v1386
      %v1389 = vmul.f32 %v1379, %v1387
      %v1390 = vpack.c.bf16 %v1389, %v1388
      %v1392 = vsel %vm652, %v1390, 0
      %v1395 = vand.u32 %v1318, %v683
      %1397 = vmatprep.subr.bf16.mxu0 0
      %1398 = vmatpush1.bf16.msra.mxu0 0
      %1399 = vmatprep.subr.bf16.mxu0 0
      %1400 = vmatpush1.bf16.msra.mxu0 0
      %1401 = vmatprep.subr.bf16.mxu0 0
      %1402 = vmatpush1.bf16.msra.mxu0 0
      %1403 = vmatprep.subr.bf16.mxu0 0
      %1404 = vmatpush1.bf16.msra.mxu0 0
      %1405 = vmatprep.subr.bf16.mxu0 0
      %1406 = vmatpush1.bf16.msra.mxu0 0
      %1407 = vmatprep.subr.bf16.mxu0 0
      %1408 = vmatpush1.bf16.msra.mxu0 0
      %1409 = vmatprep.subr.bf16.mxu0 0
      %1410 = vmatpush1.bf16.msra.mxu0 0
      %1411 = vmatprep.subr.bf16.mxu0 0
      %1412 = vmatpush1.bf16.msra.mxu0 %v1395
      %1413 = vmatprep.subr.bf16.mxu0 0
      %1414 = vmatpush2.bf16.msra.mxu0 0
      %1415 = vmatprep.subr.bf16.mxu0 0
      %1416 = vmatpush2.bf16.msra.mxu0 0
      %1417 = vmatprep.subr.bf16.mxu0 0
      %1418 = vmatpush2.bf16.msra.mxu0 0
      %1419 = vmatprep.subr.bf16.mxu0 0
      %1420 = vmatpush2.bf16.msra.mxu0 0
      %1421 = vmatprep.subr.bf16.mxu0 0
      %1422 = vmatpush2.bf16.msra.mxu0 0
      %1423 = vmatprep.subr.bf16.mxu0 0
      %1424 = vmatpush2.bf16.msra.mxu0 0
      %1425 = vmatprep.subr.bf16.mxu0 0
      %1426 = vmatpush2.bf16.msra.mxu0 0
      %1427 = vmatprep.subr.bf16.mxu0 0
      %1428 = vmatpush2.bf16.msra.mxu0 0
      %1429 = vmatprep.mubr.bf16.mxu0 0
      %1430 = vmatmul.mubr.bf16.gmra.mxu0 %v1392
      %v1431 = vpop.f32.mrf.mxu0
      %v1432 = vadd.f32 0.0, %v1431
      %v1433 = vpop.f32.mrf.mxu0
      %v1434 = vpop.f32.mrf.mxu0
      %v1435 = vadd.f32 0.0, %v1434
      %v1436 = vpop.f32.mrf.mxu0
      %1437 = vdwg.mxu0
      %1439 = vrot.lane.b32.xlu0 %v1316, 120
      %v1440 = vpop.permute.xlu0 %1439
      %1442 = vrot.lane.b32.xlu0 %v1317, 120
      %v1443 = vpop.permute.xlu0 %1442
      %v1445 = vsel %vm602, %v1440, 0
      %v1448 = vsel %vm602, %v1443, 0
      %1450 = vmatprep.subr.bf16.mxu0 0
      %1451 = vmatpush1.bf16.xpose.msra.mxu0 0
      %1452 = vmatprep.subr.bf16.mxu0 0
      %1453 = vmatpush1.bf16.xpose.msra.mxu0 0
      %1454 = vmatprep.subr.bf16.mxu0 0
      %1455 = vmatpush1.bf16.xpose.msra.mxu0 0
      %1456 = vmatprep.subr.bf16.mxu0 0
      %1457 = vmatpush1.bf16.xpose.msra.mxu0 0
      %1458 = vmatprep.subr.bf16.mxu0 0
      %1459 = vmatpush1.bf16.xpose.msra.mxu0 0
      %1460 = vmatprep.subr.bf16.mxu0 0
      %1461 = vmatpush1.bf16.xpose.msra.mxu0 0
      %1462 = vmatprep.subr.bf16.mxu0 0
      %1463 = vmatpush1.bf16.xpose.msra.mxu0 0
      %1464 = vmatprep.subr.bf16.mxu0 0
      %1465 = vmatpush1.bf16.xpose.msra.mxu0 %v1448
      %1466 = vmatprep.subr.bf16.mxu0 0
      %1467 = vmatpush2.bf16.xpose.msra.mxu0 0
      %1468 = vmatprep.subr.bf16.mxu0 0
      %1469 = vmatpush2.bf16.xpose.msra.mxu0 0
      %1470 = vmatprep.subr.bf16.mxu0 0
      %1471 = vmatpush2.bf16.xpose.msra.mxu0 0
      %1472 = vmatprep.subr.bf16.mxu0 0
      %1473 = vmatpush2.bf16.xpose.msra.mxu0 0
      %1474 = vmatprep.subr.bf16.mxu0 0
      %1475 = vmatpush2.bf16.xpose.msra.mxu0 0
      %1476 = vmatprep.subr.bf16.mxu0 0
      %1477 = vmatpush2.bf16.xpose.msra.mxu0 0
      %1478 = vmatprep.subr.bf16.mxu0 0
      %1479 = vmatpush2.bf16.xpose.msra.mxu0 0
      %1480 = vmatprep.subr.bf16.mxu0 0
      %1481 = vmatpush2.bf16.xpose.msra.mxu0 0
      %1482 = vmatprep.mubr.bf16.mxu0 0
      %1483 = vmatmul.mubr.bf16.gmra.mxu0 %v1445
      %v1484 = vpop.f32.mrf.mxu0
      %v1485 = vadd.f32 0.0, %v1484
      %v1486 = vpop.f32.mrf.mxu0
      %v1487 = vpop.f32.mrf.mxu0
      %v1488 = vadd.f32 0.0, %v1487
      %v1489 = vpop.f32.mrf.mxu0
      %1490 = vdwg.mxu0
      %v1491 = vmul.f32 %v1485, 0.35355338
      %v1492 = vmul.f32 %v1488, 0.35355338
      %v1493 = vsel %vm652, %v1491, -inf
      %1494 = vmax.xlane.f32.xlu0 %v1493
      %v1495 = vpop.xlane.xlu0 %1494
      %v1496 = vsel %vm656, %v1492, -inf
      %1497 = vmax.xlane.f32.xlu0 %v1496
      %v1498 = vpop.xlane.xlu0 %1497
      %v1499 = vsub.f32 %v1491, %v1495
      %v1500 = vsub.f32 %v1492, %v1498
      %v1501 = vmul.f32 %v1499, 1.442695
      %v1502 = vpow.pop %v1501
      %v1503 = vmul.f32 %v1500, 1.442695
      %v1504 = vpow.pop %v1503
      %v1505 = vsel %vm652, %v1502, 0.0
      %1506 = vadd.xlane.f32.xlu0 %v1505
      %v1507 = vpop.xlane.xlu0 %1506
      %v1508 = vsel %vm656, %v1504, 0.0
      %1509 = vadd.xlane.f32.xlu0 %v1508
      %v1510 = vpop.xlane.xlu0 %1509
      %v1511 = vrcp.pop %v1507
      %v1512 = vrcp.pop %v1510
      %v1513 = vmul.f32 %v1502, %v1511
      %v1514 = vmul.f32 %v1504, %v1512
      %v1515 = vpack.c.bf16 %v1514, %v1513
      %1517 = vrot.lane.b32.xlu0 %v1318, 120
      %v1518 = vpop.permute.xlu0 %1517
      %v1520 = vsel %vm652, %v1515, 0
      %v1523 = vand.u32 %v1518, %v683
      %1525 = vmatprep.subr.bf16.mxu0 0
      %1526 = vmatpush1.bf16.msra.mxu0 0
      %1527 = vmatprep.subr.bf16.mxu0 0
      %1528 = vmatpush1.bf16.msra.mxu0 0
      %1529 = vmatprep.subr.bf16.mxu0 0
      %1530 = vmatpush1.bf16.msra.mxu0 0
      %1531 = vmatprep.subr.bf16.mxu0 0
      %1532 = vmatpush1.bf16.msra.mxu0 0
      %1533 = vmatprep.subr.bf16.mxu0 0
      %1534 = vmatpush1.bf16.msra.mxu0 0
      %1535 = vmatprep.subr.bf16.mxu0 0
      %1536 = vmatpush1.bf16.msra.mxu0 0
      %1537 = vmatprep.subr.bf16.mxu0 0
      %1538 = vmatpush1.bf16.msra.mxu0 0
      %1539 = vmatprep.subr.bf16.mxu0 0
      %1540 = vmatpush1.bf16.msra.mxu0 %v1523
      %1541 = vmatprep.subr.bf16.mxu0 0
      %1542 = vmatpush2.bf16.msra.mxu0 0
      %1543 = vmatprep.subr.bf16.mxu0 0
      %1544 = vmatpush2.bf16.msra.mxu0 0
      %1545 = vmatprep.subr.bf16.mxu0 0
      %1546 = vmatpush2.bf16.msra.mxu0 0
      %1547 = vmatprep.subr.bf16.mxu0 0
      %1548 = vmatpush2.bf16.msra.mxu0 0
      %1549 = vmatprep.subr.bf16.mxu0 0
      %1550 = vmatpush2.bf16.msra.mxu0 0
      %1551 = vmatprep.subr.bf16.mxu0 0
      %1552 = vmatpush2.bf16.msra.mxu0 0
      %1553 = vmatprep.subr.bf16.mxu0 0
      %1554 = vmatpush2.bf16.msra.mxu0 0
      %1555 = vmatprep.subr.bf16.mxu0 0
      %1556 = vmatpush2.bf16.msra.mxu0 0
      %1557 = vmatprep.mubr.bf16.mxu0 0
      %1558 = vmatmul.mubr.bf16.gmra.mxu0 %v1520
      %v1559 = vpop.f32.mrf.mxu0
      %v1560 = vadd.f32 0.0, %v1559
      %v1561 = vpop.f32.mrf.mxu0
      %v1562 = vpop.f32.mrf.mxu0
      %v1563 = vadd.f32 0.0, %v1562
      %v1564 = vpop.f32.mrf.mxu0
      %1565 = vdwg.mxu0
      %1566 = vrot.lane.b32.xlu0 %v1316, 112
      %v1567 = vpop.permute.xlu0 %1566
      %1568 = vrot.lane.b32.xlu0 %v1317, 112
      %v1569 = vpop.permute.xlu0 %1568
      %v1571 = vsel %vm602, %v1567, 0
      %v1574 = vsel %vm602, %v1569, 0
      %1576 = vmatprep.subr.bf16.mxu0 0
      %1577 = vmatpush1.bf16.xpose.msra.mxu0 0
      %1578 = vmatprep.subr.bf16.mxu0 0
      %1579 = vmatpush1.bf16.xpose.msra.mxu0 0
      %1580 = vmatprep.subr.bf16.mxu0 0
      %1581 = vmatpush1.bf16.xpose.msra.mxu0 0
      %1582 = vmatprep.subr.bf16.mxu0 0
      %1583 = vmatpush1.bf16.xpose.msra.mxu0 0
      %1584 = vmatprep.subr.bf16.mxu0 0
      %1585 = vmatpush1.bf16.xpose.msra.mxu0 0
      %1586 = vmatprep.subr.bf16.mxu0 0
      %1587 = vmatpush1.bf16.xpose.msra.mxu0 0
      %1588 = vmatprep.subr.bf16.mxu0 0
      %1589 = vmatpush1.bf16.xpose.msra.mxu0 0
      %1590 = vmatprep.subr.bf16.mxu0 0
      %1591 = vmatpush1.bf16.xpose.msra.mxu0 %v1574
      %1592 = vmatprep.subr.bf16.mxu0 0
      %1593 = vmatpush2.bf16.xpose.msra.mxu0 0
      %1594 = vmatprep.subr.bf16.mxu0 0
      %1595 = vmatpush2.bf16.xpose.msra.mxu0 0
      %1596 = vmatprep.subr.bf16.mxu0 0
      %1597 = vmatpush2.bf16.xpose.msra.mxu0 0
      %1598 = vmatprep.subr.bf16.mxu0 0
      %1599 = vmatpush2.bf16.xpose.msra.mxu0 0
      %1600 = vmatprep.subr.bf16.mxu0 0
      %1601 = vmatpush2.bf16.xpose.msra.mxu0 0
      %1602 = vmatprep.subr.bf16.mxu0 0
      %1603 = vmatpush2.bf16.xpose.msra.mxu0 0
      %1604 = vmatprep.subr.bf16.mxu0 0
      %1605 = vmatpush2.bf16.xpose.msra.mxu0 0
      %1606 = vmatprep.subr.bf16.mxu0 0
      %1607 = vmatpush2.bf16.xpose.msra.mxu0 0
      %1608 = vmatprep.mubr.bf16.mxu0 0
      %1609 = vmatmul.mubr.bf16.gmra.mxu0 %v1571
      %v1610 = vpop.f32.mrf.mxu0
      %v1611 = vadd.f32 0.0, %v1610
      %v1612 = vpop.f32.mrf.mxu0
      %v1613 = vpop.f32.mrf.mxu0
      %v1614 = vadd.f32 0.0, %v1613
      %v1615 = vpop.f32.mrf.mxu0
      %1616 = vdwg.mxu0
      %v1617 = vmul.f32 %v1611, 0.35355338
      %v1618 = vmul.f32 %v1614, 0.35355338
      %v1619 = vsel %vm652, %v1617, -inf
      %1620 = vmax.xlane.f32.xlu0 %v1619
      %v1621 = vpop.xlane.xlu0 %1620
      %v1622 = vsel %vm656, %v1618, -inf
      %1623 = vmax.xlane.f32.xlu0 %v1622
      %v1624 = vpop.xlane.xlu0 %1623
      %v1625 = vsub.f32 %v1617, %v1621
      %v1626 = vsub.f32 %v1618, %v1624
      %v1627 = vmul.f32 %v1625, 1.442695
      %v1628 = vpow.pop %v1627
      %v1629 = vmul.f32 %v1626, 1.442695
      %v1630 = vpow.pop %v1629
      %v1631 = vsel %vm652, %v1628, 0.0
      %1632 = vadd.xlane.f32.xlu0 %v1631
      %v1633 = vpop.xlane.xlu0 %1632
      %v1634 = vsel %vm656, %v1630, 0.0
      %1635 = vadd.xlane.f32.xlu0 %v1634
      %v1636 = vpop.xlane.xlu0 %1635
      %v1637 = vrcp.pop %v1633
      %v1638 = vrcp.pop %v1636
      %v1639 = vmul.f32 %v1628, %v1637
      %v1640 = vmul.f32 %v1630, %v1638
      %v1641 = vpack.c.bf16 %v1640, %v1639
      %1642 = vrot.lane.b32.xlu0 %v1318, 112
      %v1643 = vpop.permute.xlu0 %1642
      %v1645 = vsel %vm652, %v1641, 0
      %v1648 = vand.u32 %v1643, %v683
      %1650 = vmatprep.subr.bf16.mxu0 0
      %1651 = vmatpush1.bf16.msra.mxu0 0
      %1652 = vmatprep.subr.bf16.mxu0 0
      %1653 = vmatpush1.bf16.msra.mxu0 0
      %1654 = vmatprep.subr.bf16.mxu0 0
      %1655 = vmatpush1.bf16.msra.mxu0 0
      %1656 = vmatprep.subr.bf16.mxu0 0
      %1657 = vmatpush1.bf16.msra.mxu0 0
      %1658 = vmatprep.subr.bf16.mxu0 0
      %1659 = vmatpush1.bf16.msra.mxu0 0
      %1660 = vmatprep.subr.bf16.mxu0 0
      %1661 = vmatpush1.bf16.msra.mxu0 0
      %1662 = vmatprep.subr.bf16.mxu0 0
      %1663 = vmatpush1.bf16.msra.mxu0 0
      %1664 = vmatprep.subr.bf16.mxu0 0
      %1665 = vmatpush1.bf16.msra.mxu0 %v1648
      %1666 = vmatprep.subr.bf16.mxu0 0
      %1667 = vmatpush2.bf16.msra.mxu0 0
      %1668 = vmatprep.subr.bf16.mxu0 0
      %1669 = vmatpush2.bf16.msra.mxu0 0
      %1670 = vmatprep.subr.bf16.mxu0 0
      %1671 = vmatpush2.bf16.msra.mxu0 0
      %1672 = vmatprep.subr.bf16.mxu0 0
      %1673 = vmatpush2.bf16.msra.mxu0 0
      %1674 = vmatprep.subr.bf16.mxu0 0
      %1675 = vmatpush2.bf16.msra.mxu0 0
      %1676 = vmatprep.subr.bf16.mxu0 0
      %1677 = vmatpush2.bf16.msra.mxu0 0
      %1678 = vmatprep.subr.bf16.mxu0 0
      %1679 = vmatpush2.bf16.msra.mxu0 0
      %1680 = vmatprep.subr.bf16.mxu0 0
      %1681 = vmatpush2.bf16.msra.mxu0 0
      %1682 = vmatprep.mubr.bf16.mxu0 0
      %1683 = vmatmul.mubr.bf16.gmra.mxu0 %v1645
      %v1684 = vpop.f32.mrf.mxu0
      %v1685 = vadd.f32 0.0, %v1684
      %v1686 = vpop.f32.mrf.mxu0
      %v1687 = vpop.f32.mrf.mxu0
      %v1688 = vadd.f32 0.0, %v1687
      %v1689 = vpop.f32.mrf.mxu0
      %1690 = vdwg.mxu0
      %1691 = vrot.lane.b32.xlu0 %v1316, 104
      %v1692 = vpop.permute.xlu0 %1691
      %1693 = vrot.lane.b32.xlu0 %v1317, 104
      %v1694 = vpop.permute.xlu0 %1693
      %v1696 = vsel %vm602, %v1692, 0
      %v1699 = vsel %vm602, %v1694, 0
      %1701 = vmatprep.subr.bf16.mxu0 0
      %1702 = vmatpush1.bf16.xpose.msra.mxu0 0
      %1703 = vmatprep.subr.bf16.mxu0 0
      %1704 = vmatpush1.bf16.xpose.msra.mxu0 0
      %1705 = vmatprep.subr.bf16.mxu0 0
      %1706 = vmatpush1.bf16.xpose.msra.mxu0 0
      %1707 = vmatprep.subr.bf16.mxu0 0
      %1708 = vmatpush1.bf16.xpose.msra.mxu0 0
      %1709 = vmatprep.subr.bf16.mxu0 0
      %1710 = vmatpush1.bf16.xpose.msra.mxu0 0
      %1711 = vmatprep.subr.bf16.mxu0 0
      %1712 = vmatpush1.bf16.xpose.msra.mxu0 0
      %1713 = vmatprep.subr.bf16.mxu0 0
      %1714 = vmatpush1.bf16.xpose.msra.mxu0 0
      %1715 = vmatprep.subr.bf16.mxu0 0
      %1716 = vmatpush1.bf16.xpose.msra.mxu0 %v1699
      %1717 = vmatprep.subr.bf16.mxu0 0
      %1718 = vmatpush2.bf16.xpose.msra.mxu0 0
      %1719 = vmatprep.subr.bf16.mxu0 0
      %1720 = vmatpush2.bf16.xpose.msra.mxu0 0
      %1721 = vmatprep.subr.bf16.mxu0 0
      %1722 = vmatpush2.bf16.xpose.msra.mxu0 0
      %1723 = vmatprep.subr.bf16.mxu0 0
      %1724 = vmatpush2.bf16.xpose.msra.mxu0 0
      %1725 = vmatprep.subr.bf16.mxu0 0
      %1726 = vmatpush2.bf16.xpose.msra.mxu0 0
      %1727 = vmatprep.subr.bf16.mxu0 0
      %1728 = vmatpush2.bf16.xpose.msra.mxu0 0
      %1729 = vmatprep.subr.bf16.mxu0 0
      %1730 = vmatpush2.bf16.xpose.msra.mxu0 0
      %1731 = vmatprep.subr.bf16.mxu0 0
      %1732 = vmatpush2.bf16.xpose.msra.mxu0 0
      %1733 = vmatprep.mubr.bf16.mxu0 0
      %1734 = vmatmul.mubr.bf16.gmra.mxu0 %v1696
      %v1735 = vpop.f32.mrf.mxu0
      %v1736 = vadd.f32 0.0, %v1735
      %v1737 = vpop.f32.mrf.mxu0
      %v1738 = vpop.f32.mrf.mxu0
      %v1739 = vadd.f32 0.0, %v1738
      %v1740 = vpop.f32.mrf.mxu0
      %1741 = vdwg.mxu0
      %v1742 = vmul.f32 %v1736, 0.35355338
      %v1743 = vmul.f32 %v1739, 0.35355338
      %v1744 = vsel %vm652, %v1742, -inf
      %1745 = vmax.xlane.f32.xlu0 %v1744
      %v1746 = vpop.xlane.xlu0 %1745
      %v1747 = vsel %vm656, %v1743, -inf
      %1748 = vmax.xlane.f32.xlu0 %v1747
      %v1749 = vpop.xlane.xlu0 %1748
      %v1750 = vsub.f32 %v1742, %v1746
      %v1751 = vsub.f32 %v1743, %v1749
      %v1752 = vmul.f32 %v1750, 1.442695
      %v1753 = vpow.pop %v1752
      %v1754 = vmul.f32 %v1751, 1.442695
      %v1755 = vpow.pop %v1754
      %v1756 = vsel %vm652, %v1753, 0.0
      %1757 = vadd.xlane.f32.xlu0 %v1756
      %v1758 = vpop.xlane.xlu0 %1757
      %v1759 = vsel %vm656, %v1755, 0.0
      %1760 = vadd.xlane.f32.xlu0 %v1759
      %v1761 = vpop.xlane.xlu0 %1760
      %v1762 = vrcp.pop %v1758
      %v1763 = vrcp.pop %v1761
      %v1764 = vmul.f32 %v1753, %v1762
      %v1765 = vmul.f32 %v1755, %v1763
      %v1766 = vpack.c.bf16 %v1765, %v1764
      %1767 = vrot.lane.b32.xlu0 %v1318, 104
      %v1768 = vpop.permute.xlu0 %1767
      %v1770 = vsel %vm652, %v1766, 0
      %v1773 = vand.u32 %v1768, %v683
      %1775 = vmatprep.subr.bf16.mxu0 0
      %1776 = vmatpush1.bf16.msra.mxu0 0
      %1777 = vmatprep.subr.bf16.mxu0 0
      %1778 = vmatpush1.bf16.msra.mxu0 0
      %1779 = vmatprep.subr.bf16.mxu0 0
      %1780 = vmatpush1.bf16.msra.mxu0 0
      %1781 = vmatprep.subr.bf16.mxu0 0
      %1782 = vmatpush1.bf16.msra.mxu0 0
      %1783 = vmatprep.subr.bf16.mxu0 0
      %1784 = vmatpush1.bf16.msra.mxu0 0
      %1785 = vmatprep.subr.bf16.mxu0 0
      %1786 = vmatpush1.bf16.msra.mxu0 0
      %1787 = vmatprep.subr.bf16.mxu0 0
      %1788 = vmatpush1.bf16.msra.mxu0 0
      %1789 = vmatprep.subr.bf16.mxu0 0
      %1790 = vmatpush1.bf16.msra.mxu0 %v1773
      %1791 = vmatprep.subr.bf16.mxu0 0
      %1792 = vmatpush2.bf16.msra.mxu0 0
      %1793 = vmatprep.subr.bf16.mxu0 0
      %1794 = vmatpush2.bf16.msra.mxu0 0
      %1795 = vmatprep.subr.bf16.mxu0 0
      %1796 = vmatpush2.bf16.msra.mxu0 0
      %1797 = vmatprep.subr.bf16.mxu0 0
      %1798 = vmatpush2.bf16.msra.mxu0 0
      %1799 = vmatprep.subr.bf16.mxu0 0
      %1800 = vmatpush2.bf16.msra.mxu0 0
      %1801 = vmatprep.subr.bf16.mxu0 0
      %1802 = vmatpush2.bf16.msra.mxu0 0
      %1803 = vmatprep.subr.bf16.mxu0 0
      %1804 = vmatpush2.bf16.msra.mxu0 0
      %1805 = vmatprep.subr.bf16.mxu0 0
      %1806 = vmatpush2.bf16.msra.mxu0 0
      %1807 = vmatprep.mubr.bf16.mxu0 0
      %1808 = vmatmul.mubr.bf16.gmra.mxu0 %v1770
      %v1809 = vpop.f32.mrf.mxu0
      %v1810 = vadd.f32 0.0, %v1809
      %v1811 = vpop.f32.mrf.mxu0
      %v1812 = vpop.f32.mrf.mxu0
      %v1813 = vadd.f32 0.0, %v1812
      %v1814 = vpop.f32.mrf.mxu0
      %1815 = vdwg.mxu0
      %1818 = vrot.lane.b32.xlu0 %v1560, 8
      %v1819 = vpop.permute.xlu0 %1818
      %1820 = vrot.lane.b32.xlu0 %v1563, 8
      %v1821 = vpop.permute.xlu0 %1820
      %1826 = vrot.lane.b32.xlu0 %v1685, 16
      %v1827 = vpop.permute.xlu0 %1826
      %1828 = vrot.lane.b32.xlu0 %v1688, 16
      %v1829 = vpop.permute.xlu0 %1828
      %1834 = vrot.lane.b32.xlu0 %v1810, 24
      %v1835 = vpop.permute.xlu0 %1834
      %1836 = vrot.lane.b32.xlu0 %v1813, 24
      %v1837 = vpop.permute.xlu0 %1836
      %v1840 = vsel %vm602, %v1432, %v1819
      %v1841 = vsel %vm602, %v1435, %v1821
      %v1842 = vsel %vm1132, %v1840, %v1827
      %v1843 = vsel %vm1132, %v1841, %v1829
      %v1844 = vsel %vm1135, %v1842, %v1835
      %v1845 = vsel %vm1135, %v1843, %v1837
      %s1846 = scalar_lea.vmem %s2, 112
      %v1847 = vld [vmem:[%s1846] sm:$0xf]
      %v1848 = vld [vmem:[%s1846 + $0x4] sm:$0xf]
      %v1849 = vld [vmem:[%s1846 + $0x8] sm:$0xf]
      %v1850 = vld [vmem:[%s1846 + $0xc] sm:$0xf]
      %v1851 = vpack.c.bf16 %v1845, %v1844
      %v1852 = vlaneseq
      %v1853 = vshrl.u32 %v1852, 7
      %v1854 = vsub.s32 7, %v1853
      %v1855 = vrot.slane %v277, %v1854
      %v1860 = vunpack.c.l.b16 %v1847
      %v1861 = vunpack.c.l.b16 %v1848
      %v1862 = vunpack.c.l.b16 %v1849
      %v1863 = vunpack.c.l.b16 %v1850
      %v1864 = vpack.c.b16 %v1861, %v1860
      %v1865 = vpack.c.b16 %v1863, %v1862
      %v1869 = vsel %vm302, %v1851, 0
      %1871 = vmatprep.subr.bf16.mxu0 0
      %1872 = vmatpush1.bf16.msra.mxu0 0
      %1873 = vmatprep.subr.bf16.mxu0 0
      %1874 = vmatpush1.bf16.msra.mxu0 0
      %1875 = vmatprep.subr.bf16.mxu0 0
      %1876 = vmatpush1.bf16.msra.mxu0 0
      %1877 = vmatprep.subr.bf16.mxu0 0
      %1878 = vmatpush1.bf16.msra.mxu0 0
      %1879 = vmatprep.subr.bf16.mxu0 0
      %1880 = vmatpush1.bf16.msra.mxu0 0
      %1881 = vmatprep.subr.bf16.mxu0 0
      %1882 = vmatpush1.bf16.msra.mxu0 0
      %1883 = vmatprep.subr.bf16.mxu0 0
      %1884 = vmatpush1.bf16.msra.mxu0 %v1865
      %1885 = vmatprep.subr.bf16.mxu0 0
      %1886 = vmatpush1.bf16.msra.mxu0 %v1864
      %1887 = vmatprep.subr.bf16.mxu0 0
      %1888 = vmatpush2.bf16.msra.mxu0 0
      %1889 = vmatprep.subr.bf16.mxu0 0
      %1890 = vmatpush2.bf16.msra.mxu0 0
      %1891 = vmatprep.subr.bf16.mxu0 0
      %1892 = vmatpush2.bf16.msra.mxu0 0
      %1893 = vmatprep.subr.bf16.mxu0 0
      %1894 = vmatpush2.bf16.msra.mxu0 0
      %1895 = vmatprep.subr.bf16.mxu0 0
      %1896 = vmatpush2.bf16.msra.mxu0 0
      %1897 = vmatprep.subr.bf16.mxu0 0
      %1898 = vmatpush2.bf16.msra.mxu0 0
      %1899 = vmatprep.subr.bf16.mxu0 0
      %1900 = vmatpush2.bf16.msra.mxu0 0
      %1901 = vmatprep.subr.bf16.mxu0 0
      %1902 = vmatpush2.bf16.msra.mxu0 0
      %1903 = vmatprep.mubr.bf16.mxu0 0
      %1904 = vmatmul.mubr.bf16.gmra.mxu0 %v1869
      %v1905 = vpop.f32.mrf.mxu0
      %v1906 = vadd.f32 %v1855, %v1905
      %v1907 = vpop.f32.mrf.mxu0
      %v1908 = vpop.f32.mrf.mxu0
      %v1909 = vadd.f32 %v1855, %v1908
      %v1910 = vpop.f32.mrf.mxu0
      %1911 = vdwg.mxu0
      %v1912 = vadd.f32 %v1248, %v1906
      %v1913 = vadd.f32 %v1249, %v1909
      %v1914 = vsel %vm302, %v1912, 0.0
      %1915 = vadd.xlane.f32.xlu0 %v1914
      %v1916 = vpop.xlane.xlu0 %1915
      %v1917 = vsel %vm1209, %v1913, 0.0
      %1918 = vadd.xlane.f32.xlu0 %v1917
      %v1919 = vpop.xlane.xlu0 %1918
      %v1920 = vmul.f32 %v1916, %v1213
      %v1921 = vmul.f32 %v1919, %v1213
      %v1922 = vsub.f32 %v1912, %v1920
      %v1923 = vsub.f32 %v1913, %v1921
      %v1924 = vmul.f32 %v1922, %v1922
      %v1925 = vmul.f32 %v1923, %v1923
      %v1926 = vsel %vm302, %v1924, 0.0
      %1927 = vadd.xlane.f32.xlu0 %v1926
      %v1928 = vpop.xlane.xlu0 %1927
      %v1929 = vsel %vm1209, %v1925, 0.0
      %1930 = vadd.xlane.f32.xlu0 %v1929
      %v1931 = vpop.xlane.xlu0 %1930
      %v1932 = vmul.f32 %v1928, %v1213
      %v1933 = vmul.f32 %v1931, %v1213
      %v1934 = vadd.f32 %v1932, 1e-05
      %v1935 = vadd.f32 %v1933, 1e-05
      %v1936 = vrsqrt.pop %v1934
      %v1937 = vrsqrt.pop %v1935
      %v1938 = vmul.f32 %v1922, %v1936
      %v1939 = vmul.f32 %v1923, %v1937
      %v1940 = vmul.f32 %v1938, %v1238
      %v1941 = vmul.f32 %v1939, %v1238
      %v1942 = vadd.f32 %v1940, %v1246
      %v1943 = vadd.f32 %v1941, %v1246
      %s1944 = scalar_lea.vmem %s2, 128
      %v1945 = vld [vmem:[%s1944] sm:$0xf]
      %v1946 = vld [vmem:[%s1944 + $0x4] sm:$0xf]
      %v1947 = vld [vmem:[%s1944 + $0x8] sm:$0xf]
      %v1948 = vld [vmem:[%s1944 + $0xc] sm:$0xf]
      %v1949 = vpack.c.bf16 %v1943, %v1942
      %v1950 = vlaneseq
      %v1951 = vshrl.u32 %v1950, 7
      %v1952 = vsub.s32 0, %v1951
      %v1953 = vrot.slane %v278, %v1952
      %v1958 = vunpack.c.l.b16 %v1945
      %v1959 = vunpack.c.l.b16 %v1946
      %v1960 = vunpack.c.l.b16 %v1947
      %v1961 = vunpack.c.l.b16 %v1948
      %v1962 = vpack.c.b16 %v1959, %v1958
      %v1963 = vpack.c.b16 %v1961, %v1960
      %v1967 = vsel %vm302, %v1949, 0
      %1969 = vmatprep.subr.bf16.mxu0 0
      %1970 = vmatpush1.bf16.msra.mxu0 0
      %1971 = vmatprep.subr.bf16.mxu0 0
      %1972 = vmatpush1.bf16.msra.mxu0 0
      %1973 = vmatprep.subr.bf16.mxu0 0
      %1974 = vmatpush1.bf16.msra.mxu0 0
      %1975 = vmatprep.subr.bf16.mxu0 0
      %1976 = vmatpush1.bf16.msra.mxu0 0
      %1977 = vmatprep.subr.bf16.mxu0 0
      %1978 = vmatpush1.bf16.msra.mxu0 0
      %1979 = vmatprep.subr.bf16.mxu0 0
      %1980 = vmatpush1.bf16.msra.mxu0 0
      %1981 = vmatprep.subr.bf16.mxu0 0
      %1982 = vmatpush1.bf16.msra.mxu0 %v1963
      %1983 = vmatprep.subr.bf16.mxu0 0
      %1984 = vmatpush1.bf16.msra.mxu0 %v1962
      %1985 = vmatprep.subr.bf16.mxu0 0
      %1986 = vmatpush2.bf16.msra.mxu0 0
      %1987 = vmatprep.subr.bf16.mxu0 0
      %1988 = vmatpush2.bf16.msra.mxu0 0
      %1989 = vmatprep.subr.bf16.mxu0 0
      %1990 = vmatpush2.bf16.msra.mxu0 0
      %1991 = vmatprep.subr.bf16.mxu0 0
      %1992 = vmatpush2.bf16.msra.mxu0 0
      %1993 = vmatprep.subr.bf16.mxu0 0
      %1994 = vmatpush2.bf16.msra.mxu0 0
      %1995 = vmatprep.subr.bf16.mxu0 0
      %1996 = vmatpush2.bf16.msra.mxu0 0
      %1997 = vmatprep.subr.bf16.mxu0 0
      %1998 = vmatpush2.bf16.msra.mxu0 0
      %1999 = vmatprep.subr.bf16.mxu0 0
      %2000 = vmatpush2.bf16.msra.mxu0 0
      %2001 = vmatprep.mubr.bf16.mxu0 0
      %2002 = vmatmul.mubr.bf16.gmra.mxu0 %v1967
      %v2003 = vpop.f32.mrf.mxu0
      %v2004 = vadd.f32 %v1953, %v2003
      %v2005 = vpop.f32.mrf.mxu0
      %v2006 = vpop.f32.mrf.mxu0
      %v2007 = vadd.f32 %v1953, %v2006
      %v2008 = vpop.f32.mrf.mxu0
      %2009 = vdwg.mxu0
      %v2010 = vmax.f32 %v2004, 0.0
      %v2011 = vmax.f32 %v2007, 0.0
      %s2012 = scalar_lea.vmem %s2, 144
      %v2013 = vld [vmem:[%s2012] sm:$0xf]
      %v2014 = vld [vmem:[%s2012 + $0x4] sm:$0xf]
      %v2015 = vld [vmem:[%s2012 + $0x8] sm:$0xf]
      %v2016 = vld [vmem:[%s2012 + $0xc] sm:$0xf]
      %v2017 = vpack.c.bf16 %v2011, %v2010
      %v2018 = vlaneseq
      %v2019 = vshrl.u32 %v2018, 7
      %v2020 = vsub.s32 1, %v2019
      %v2021 = vrot.slane %v278, %v2020
      %v2026 = vunpack.c.l.b16 %v2013
      %v2027 = vunpack.c.l.b16 %v2014
      %v2028 = vunpack.c.l.b16 %v2015
      %v2029 = vunpack.c.l.b16 %v2016
      %v2030 = vpack.c.b16 %v2027, %v2026
      %v2031 = vpack.c.b16 %v2029, %v2028
      %v2035 = vsel %vm302, %v2017, 0
      %2037 = vmatprep.subr.bf16.mxu0 0
      %2038 = vmatpush1.bf16.msra.mxu0 0
      %2039 = vmatprep.subr.bf16.mxu0 0
      %2040 = vmatpush1.bf16.msra.mxu0 0
      %2041 = vmatprep.subr.bf16.mxu0 0
      %2042 = vmatpush1.bf16.msra.mxu0 0
      %2043 = vmatprep.subr.bf16.mxu0 0
      %2044 = vmatpush1.bf16.msra.mxu0 0
      %2045 = vmatprep.subr.bf16.mxu0 0
      %2046 = vmatpush1.bf16.msra.mxu0 0
      %2047 = vmatprep.subr.bf16.mxu0 0
      %2048 = vmatpush1.bf16.msra.mxu0 0
      %2049 = vmatprep.subr.bf16.mxu0 0
      %2050 = vmatpush1.bf16.msra.mxu0 %v2031
      %2051 = vmatprep.subr.bf16.mxu0 0
      %2052 = vmatpush1.bf16.msra.mxu0 %v2030
      %2053 = vmatprep.subr.bf16.mxu0 0
      %2054 = vmatpush2.bf16.msra.mxu0 0
      %2055 = vmatprep.subr.bf16.mxu0 0
      %2056 = vmatpush2.bf16.msra.mxu0 0
      %2057 = vmatprep.subr.bf16.mxu0 0
      %2058 = vmatpush2.bf16.msra.mxu0 0
      %2059 = vmatprep.subr.bf16.mxu0 0
      %2060 = vmatpush2.bf16.msra.mxu0 0
      %2061 = vmatprep.subr.bf16.mxu0 0
      %2062 = vmatpush2.bf16.msra.mxu0 0
      %2063 = vmatprep.subr.bf16.mxu0 0
      %2064 = vmatpush2.bf16.msra.mxu0 0
      %2065 = vmatprep.subr.bf16.mxu0 0
      %2066 = vmatpush2.bf16.msra.mxu0 0
      %2067 = vmatprep.subr.bf16.mxu0 0
      %2068 = vmatpush2.bf16.msra.mxu0 0
      %2069 = vmatprep.mubr.bf16.mxu0 0
      %2070 = vmatmul.mubr.bf16.gmra.mxu0 %v2035
      %v2071 = vpop.f32.mrf.mxu0
      %v2072 = vadd.f32 %v2021, %v2071
      %v2073 = vpop.f32.mrf.mxu0
      %v2074 = vpop.f32.mrf.mxu0
      %v2075 = vadd.f32 %v2021, %v2074
      %v2076 = vpop.f32.mrf.mxu0
      %2077 = vdwg.mxu0
      %v2078 = vadd.f32 %v1942, %v2072
      %v2079 = vadd.f32 %v1943, %v2075
      %v2080 = vsel %vm302, %v2078, 0.0
      %2081 = vadd.xlane.f32.xlu0 %v2080
      %v2082 = vpop.xlane.xlu0 %2081
      %v2083 = vsel %vm1209, %v2079, 0.0
      %2084 = vadd.xlane.f32.xlu0 %v2083
      %v2085 = vpop.xlane.xlu0 %2084
      %v2086 = vmul.f32 %v2082, %v1213
      %v2087 = vmul.f32 %v2085, %v1213
      %v2088 = vsub.f32 %v2078, %v2086
      %v2089 = vsub.f32 %v2079, %v2087
      %v2090 = vmul.f32 %v2088, %v2088
      %v2091 = vmul.f32 %v2089, %v2089
      %v2092 = vsel %vm302, %v2090, 0.0
      %2093 = vadd.xlane.f32.xlu0 %v2092
      %v2094 = vpop.xlane.xlu0 %2093
      %v2095 = vsel %vm1209, %v2091, 0.0
      %2096 = vadd.xlane.f32.xlu0 %v2095
      %v2097 = vpop.xlane.xlu0 %2096
      %v2098 = vmul.f32 %v2094, %v1213
      %v2099 = vmul.f32 %v2097, %v1213
      %v2100 = vadd.f32 %v2098, 1e-05
      %v2101 = vadd.f32 %v2099, 1e-05
      %v2102 = vrsqrt.pop %v2100
      %v2103 = vrsqrt.pop %v2101
      %v2104 = vmul.f32 %v2088, %v2102
      %v2105 = vmul.f32 %v2089, %v2103
      %v2106 = vmul.f32 %v2104, %v1238
      %v2107 = vmul.f32 %v2105, %v1238
      %v2108 = vadd.f32 %v2106, %v1246
      %v2109 = vadd.f32 %v2107, %v1246
      %2110 = vst.msk [vmem:[%s271] sm:$0xff] %vm302, %v2108
      %2111 = vst.msk [vmem:[%s271 + $0x8] sm:$0x1] %vm1209, %v2109
      %p2112 = scmp.lt.s32.totalorder %s17, 1
      %s2113 = scalar_select %p2112, %s17, 1
      %s2114 = smul.addr %s2113, 2
      %s2115 = smul.addr %s2114, 8
      %s2116 = scalar_lea.vmem %s6, %s2115
      // Predicated region
      $region45: #{nar_tsp_net_forward.8} parent=43 // pred_check
        %p2117 = pneg %p171
      $region46: #{nar_tsp_net_forward.8} parent=43 // pred_check_branch
        %2119 = sbr.rel (%p2117) target = $region48
      $region47: #{nar_tsp_net_forward.8} parent=43 // pred_region
        _
      $region48: #{nar_tsp_net_forward.8} parent=43 // pred_fallthru
        _
    $region44: #{nar_tsp_net_forward.8} parent=5 // pred_fallthru
      _
    %p2120 = scmp.le.s32.totalorder 2, %s12
    // Predicated region
    $region49: #{nar_tsp_net_forward.8} parent=5 // pred_check
      %p2121 = pneg %p2120
    $region50: #{nar_tsp_net_forward.8} parent=5 // pred_check_branch
      %2123 = sbr.rel (%p2121) target = $region52
    $region51: #{nar_tsp_net_forward.8} parent=5 // pred_region
      %s2124 = ssub.s32 %s12, 2
      // Predicated region
      $region53: #{nar_tsp_net_forward.8} parent=51 // pred_check
        %p2125 = pneg %p177
      $region54: #{nar_tsp_net_forward.8} parent=51 // pred_check_branch
        %2127 = sbr.rel (%p2125) target = $region56
      $region55: #{nar_tsp_net_forward.8} parent=51 // pred_region
        %p2128 = scmp.lt.s32.totalorder %s18, 1
        %s2129 = scalar_select %p2128, %s18, 1
        %s2130 = smul.addr %s2129, 2
        %s2131 = smul.addr %s2130, 8
        %s2132 = scalar_lea.vmem %s6, %s2131
      $region56: #{nar_tsp_net_forward.8} parent=51 // pred_fallthru
        _
    $region52: #{nar_tsp_net_forward.8} parent=5 // pred_fallthru
      _
  $region6: #{nar_tsp_net_forward.8} parent=0 // loop_footer
    %s16 = sadd.s32 1, %s12
  $region7: #{nar_tsp_net_forward.8} parent=0 // loop_footer_branch
    %11 = sbr.rel target = $region3
  $region8: #{nar_tsp_net_forward.8} parent=0 // loop_exit
    _

// kernel: nar_tsp_net_forward.6
$region0: #{nar_tsp_net_forward.6}
  #allocation0 [shape = 'u32[]', space=smem, size = 0x4, offset = 0x4, fixed_abs, tag = 'smem constant byte address 0x4 - core index']
  #allocation1 [shape = 'u32[144,128]{1,0:T(1,128)}', space=vmem, size = 0x12000, scoped, tag = 'internal scratch']
  %s0 = inlined_call_operand.vmem [shape: f32[2,9,32], index: 0, kind: input, shape index: {}]
  %s1 = inlined_call_operand.vmem [shape: bf16[4,32,32], index: 1, kind: input, shape index: {}]
  %s2 = inlined_call_operand.vmem [shape: f32[4,32], index: 2, kind: input, shape index: {}]
  %s3 = inlined_call_operand.vmem [shape: bf16[32,64], index: 3, kind: input, shape index: {}]
  %s4 = inlined_call_operand.vmem [shape: f32[1,64], index: 4, kind: input, shape index: {}]
  %s5 = inlined_call_operand.vmem [shape: bf16[64,32], index: 5, kind: input, shape index: {}]
  %s6 = inlined_call_operand.vmem [shape: f32[1,32], index: 6, kind: input, shape index: {}]
  %s7 = inlined_call_operand.vmem [shape: f32[4,32], index: 7, kind: input, shape index: {}]
  %s8 = inlined_call_operand.vmem [shape: f32[2,9,32], index: 8, kind: output, shape index: {}]
  %s9 = sld [smem:[#allocation0]]
  $region42: #{nar_tsp_net_forward.6} parent=0
    _
  %s11 = ssub.s32 1, %s9
  %s12 = scalar_select 0, %s11, %s9
  // Predicated region
  $region2: #{nar_tsp_net_forward.6} parent=0 // pred_check
    _
  $region3: #{nar_tsp_net_forward.6} parent=0 // pred_check_branch
    %14 = sbr.rel (0) target = $region5
  $region4: #{nar_tsp_net_forward.6} parent=0 // pred_region
    _
  $region5: #{nar_tsp_net_forward.6} parent=0 // pred_fallthru
    _
  // Predicated region
  $region6: #{nar_tsp_net_forward.6} parent=0 // pred_check
    _
  $region7: #{nar_tsp_net_forward.6} parent=0 // pred_check_branch
    %16 = sbr.rel (0) target = $region9
  $region8: #{nar_tsp_net_forward.6} parent=0 // pred_region
    _
  $region9: #{nar_tsp_net_forward.6} parent=0 // pred_fallthru
    _
  // Predicated region
  $region10: #{nar_tsp_net_forward.6} parent=0 // pred_check
    _
  $region11: #{nar_tsp_net_forward.6} parent=0 // pred_check_branch
    %18 = sbr.rel (0) target = $region13
  $region12: #{nar_tsp_net_forward.6} parent=0 // pred_region
    _
  $region13: #{nar_tsp_net_forward.6} parent=0 // pred_fallthru
    _
  // Predicated region
  $region14: #{nar_tsp_net_forward.6} parent=0 // pred_check
    _
  $region15: #{nar_tsp_net_forward.6} parent=0 // pred_check_branch
    %20 = sbr.rel (0) target = $region17
  $region16: #{nar_tsp_net_forward.6} parent=0 // pred_region
    _
  $region17: #{nar_tsp_net_forward.6} parent=0 // pred_fallthru
    _
  // Predicated region
  $region18: #{nar_tsp_net_forward.6} parent=0 // pred_check
    _
  $region19: #{nar_tsp_net_forward.6} parent=0 // pred_check_branch
    %22 = sbr.rel (0) target = $region21
  $region20: #{nar_tsp_net_forward.6} parent=0 // pred_region
    _
  $region21: #{nar_tsp_net_forward.6} parent=0 // pred_fallthru
    _
  // Predicated region
  $region22: #{nar_tsp_net_forward.6} parent=0 // pred_check
    _
  $region23: #{nar_tsp_net_forward.6} parent=0 // pred_check_branch
    %24 = sbr.rel (0) target = $region25
  $region24: #{nar_tsp_net_forward.6} parent=0 // pred_region
    _
  $region25: #{nar_tsp_net_forward.6} parent=0 // pred_fallthru
    _
  // Predicated region
  $region26: #{nar_tsp_net_forward.6} parent=0 // pred_check
    _
  $region27: #{nar_tsp_net_forward.6} parent=0 // pred_check_branch
    %26 = sbr.rel (0) target = $region29
  $region28: #{nar_tsp_net_forward.6} parent=0 // pred_region
    _
  $region29: #{nar_tsp_net_forward.6} parent=0 // pred_fallthru
    _
  // Predicated region
  $region30: #{nar_tsp_net_forward.6} parent=0 // pred_check
    _
  $region31: #{nar_tsp_net_forward.6} parent=0 // pred_check_branch
    %28 = sbr.rel (0) target = $region33
  $region32: #{nar_tsp_net_forward.6} parent=0 // pred_region
    _
  $region33: #{nar_tsp_net_forward.6} parent=0 // pred_fallthru
    _
  %v30 = vld [vmem:[%s2] sm:$0xf]
  %v31 = vld [vmem:[%s7] sm:$0xf]
  %v32 = vld [vmem:[%s3] sm:$0xf]
  %v33 = vld [vmem:[%s3 + $0x4] sm:$0xf]
  %v34 = vld [vmem:[%s3 + $0x8] sm:$0xf]
  %v35 = vld [vmem:[%s3 + $0xc] sm:$0xf]
  %v36 = vld [vmem:[%s4] sm:$0x1]
  %v37 = vld [vmem:[%s5] sm:$0xf]
  %v38 = vld [vmem:[%s5 + $0x4] sm:$0xf]
  %v39 = vld [vmem:[%s5 + $0x8] sm:$0xf]
  %v40 = vld [vmem:[%s5 + $0xc] sm:$0xf]
  %v41 = vld [vmem:[%s5 + $0x10] sm:$0xf]
  %v42 = vld [vmem:[%s5 + $0x14] sm:$0xf]
  %v43 = vld [vmem:[%s5 + $0x18] sm:$0xf]
  %v44 = vld [vmem:[%s5 + $0x1c] sm:$0xf]
  %v45 = vld [vmem:[%s6] sm:$0x1]
  %v46 = vld [vmem:[%s0] sm:$0xff]
  %v47 = vld [vmem:[%s0 + $0x8] sm:$0x1]
  %v48 = vld [vmem:[%s1] sm:$0xf]
  %v49 = vld [vmem:[%s1 + $0x4] sm:$0xf]
  %v50 = vld [vmem:[%s1 + $0x8] sm:$0xf]
  %v51 = vld [vmem:[%s1 + $0xc] sm:$0xf]
  %v52 = vpack.c.bf16 %v47, %v46
  %v53 = vlaneseq
  %v54 = vshrl.u32 %v53, 7
  %v55 = vsub.s32 0, %v54
  %v56 = vrot.slane %v30, %v55
  %v61 = vunpack.c.l.b16 %v48
  %v62 = vunpack.c.l.b16 %v49
  %v63 = vunpack.c.l.b16 %v50
  %v64 = vunpack.c.l.b16 %v51
  %v65 = vpack.c.b16 %v62, %v61
  %v66 = vpack.c.b16 %v64, %v63
  %vm69 = vcmask 261120
  %v71 = vsel %vm69, %v52, 0
  %73 = vmatprep.subr.bf16.mxu0 0
  %74 = vmatpush1.bf16.msra.mxu0 0
  %75 = vmatprep.subr.bf16.mxu0 0
  %76 = vmatpush1.bf16.msra.mxu0 0
  %77 = vmatprep.subr.bf16.mxu0 0
  %78 = vmatpush1.bf16.msra.mxu0 0
  %79 = vmatprep.subr.bf16.mxu0 0
  %80 = vmatpush1.bf16.msra.mxu0 0
  %81 = vmatprep.subr.bf16.mxu0 0
  %82 = vmatpush1.bf16.msra.mxu0 0
  %83 = vmatprep.subr.bf16.mxu0 0
  %84 = vmatpush1.bf16.msra.mxu0 0
  %85 = vmatprep.subr.bf16.mxu0 0
  %86 = vmatpush1.bf16.msra.mxu0 %v66
  %87 = vmatprep.subr.bf16.mxu0 0
  %88 = vmatpush1.bf16.msra.mxu0 %v65
  %89 = vmatprep.subr.bf16.mxu0 0
  %90 = vmatpush2.bf16.msra.mxu0 0
  %91 = vmatprep.subr.bf16.mxu0 0
  %92 = vmatpush2.bf16.msra.mxu0 0
  %93 = vmatprep.subr.bf16.mxu0 0
  %94 = vmatpush2.bf16.msra.mxu0 0
  %95 = vmatprep.subr.bf16.mxu0 0
  %96 = vmatpush2.bf16.msra.mxu0 0
  %97 = vmatprep.subr.bf16.mxu0 0
  %98 = vmatpush2.bf16.msra.mxu0 0
  %99 = vmatprep.subr.bf16.mxu0 0
  %100 = vmatpush2.bf16.msra.mxu0 0
  %101 = vmatprep.subr.bf16.mxu0 0
  %102 = vmatpush2.bf16.msra.mxu0 0
  %103 = vmatprep.subr.bf16.mxu0 0
  %104 = vmatpush2.bf16.msra.mxu0 0
  %105 = vmatprep.mubr.bf16.mxu0 0
  %106 = vmatmul.mubr.bf16.gmra.mxu0 %v71
  %v107 = vpop.f32.mrf.mxu0
  %v108 = vadd.f32 %v56, %v107
  %v109 = vpop.f32.mrf.mxu0
  %v110 = vpop.f32.mrf.mxu0
  %v111 = vadd.f32 %v56, %v110
  %v112 = vpop.f32.mrf.mxu0
  %113 = vdwg.mxu0
  %s114 = scalar_lea.vmem %s1, 16
  %v115 = vld [vmem:[%s114] sm:$0xf]
  %v116 = vld [vmem:[%s114 + $0x4] sm:$0xf]
  %v117 = vld [vmem:[%s114 + $0x8] sm:$0xf]
  %v118 = vld [vmem:[%s114 + $0xc] sm:$0xf]
  %v119 = vlaneseq
  %v120 = vshrl.u32 %v119, 7
  %v121 = vsub.s32 1, %v120
  %v122 = vrot.slane %v30, %v121
  %v127 = vunpack.c.l.b16 %v115
  %v128 = vunpack.c.l.b16 %v116
  %v129 = vunpack.c.l.b16 %v117
  %v130 = vunpack.c.l.b16 %v118
  %v131 = vpack.c.b16 %v128, %v127
  %v132 = vpack.c.b16 %v130, %v129
  %135 = vmatprep.subr.bf16.mxu0 0
  %136 = vmatpush1.bf16.msra.mxu0 0
  %137 = vmatprep.subr.bf16.mxu0 0
  %138 = vmatpush1.bf16.msra.mxu0 0
  %139 = vmatprep.subr.bf16.mxu0 0
  %140 = vmatpush1.bf16.msra.mxu0 0
  %141 = vmatprep.subr.bf16.mxu0 0
  %142 = vmatpush1.bf16.msra.mxu0 0
  %143 = vmatprep.subr.bf16.mxu0 0
  %144 = vmatpush1.bf16.msra.mxu0 0
  %145 = vmatprep.subr.bf16.mxu0 0
  %146 = vmatpush1.bf16.msra.mxu0 0
  %147 = vmatprep.subr.bf16.mxu0 0
  %148 = vmatpush1.bf16.msra.mxu0 %v132
  %149 = vmatprep.subr.bf16.mxu0 0
  %150 = vmatpush1.bf16.msra.mxu0 %v131
  %151 = vmatprep.subr.bf16.mxu0 0
  %152 = vmatpush2.bf16.msra.mxu0 0
  %153 = vmatprep.subr.bf16.mxu0 0
  %154 = vmatpush2.bf16.msra.mxu0 0
  %155 = vmatprep.subr.bf16.mxu0 0
  %156 = vmatpush2.bf16.msra.mxu0 0
  %157 = vmatprep.subr.bf16.mxu0 0
  %158 = vmatpush2.bf16.msra.mxu0 0
  %159 = vmatprep.subr.bf16.mxu0 0
  %160 = vmatpush2.bf16.msra.mxu0 0
  %161 = vmatprep.subr.bf16.mxu0 0
  %162 = vmatpush2.bf16.msra.mxu0 0
  %163 = vmatprep.subr.bf16.mxu0 0
  %164 = vmatpush2.bf16.msra.mxu0 0
  %165 = vmatprep.subr.bf16.mxu0 0
  %166 = vmatpush2.bf16.msra.mxu0 0
  %167 = vmatprep.mubr.bf16.mxu0 0
  %168 = vmatmul.mubr.bf16.gmra.mxu0 %v71
  %v169 = vpop.f32.mrf.mxu0
  %v170 = vadd.f32 %v122, %v169
  %v171 = vpop.f32.mrf.mxu0
  %v172 = vpop.f32.mrf.mxu0
  %v173 = vadd.f32 %v122, %v172
  %v174 = vpop.f32.mrf.mxu0
  %175 = vdwg.mxu0
  %s176 = scalar_lea.vmem %s1, 32
  %v177 = vld [vmem:[%s176] sm:$0xf]
  %v178 = vld [vmem:[%s176 + $0x4] sm:$0xf]
  %v179 = vld [vmem:[%s176 + $0x8] sm:$0xf]
  %v180 = vld [vmem:[%s176 + $0xc] sm:$0xf]
  %v181 = vlaneseq
  %v182 = vshrl.u32 %v181, 7
  %v183 = vsub.s32 2, %v182
  %v184 = vrot.slane %v30, %v183
  %v189 = vunpack.c.l.b16 %v177
  %v190 = vunpack.c.l.b16 %v178
  %v191 = vunpack.c.l.b16 %v179
  %v192 = vunpack.c.l.b16 %v180
  %v193 = vpack.c.b16 %v190, %v189
  %v194 = vpack.c.b16 %v192, %v191
  %197 = vmatprep.subr.bf16.mxu0 0
  %198 = vmatpush1.bf16.msra.mxu0 0
  %199 = vmatprep.subr.bf16.mxu0 0
  %200 = vmatpush1.bf16.msra.mxu0 0
  %201 = vmatprep.subr.bf16.mxu0 0
  %202 = vmatpush1.bf16.msra.mxu0 0
  %203 = vmatprep.subr.bf16.mxu0 0
  %204 = vmatpush1.bf16.msra.mxu0 0
  %205 = vmatprep.subr.bf16.mxu0 0
  %206 = vmatpush1.bf16.msra.mxu0 0
  %207 = vmatprep.subr.bf16.mxu0 0
  %208 = vmatpush1.bf16.msra.mxu0 0
  %209 = vmatprep.subr.bf16.mxu0 0
  %210 = vmatpush1.bf16.msra.mxu0 %v194
  %211 = vmatprep.subr.bf16.mxu0 0
  %212 = vmatpush1.bf16.msra.mxu0 %v193
  %213 = vmatprep.subr.bf16.mxu0 0
  %214 = vmatpush2.bf16.msra.mxu0 0
  %215 = vmatprep.subr.bf16.mxu0 0
  %216 = vmatpush2.bf16.msra.mxu0 0
  %217 = vmatprep.subr.bf16.mxu0 0
  %218 = vmatpush2.bf16.msra.mxu0 0
  %219 = vmatprep.subr.bf16.mxu0 0
  %220 = vmatpush2.bf16.msra.mxu0 0
  %221 = vmatprep.subr.bf16.mxu0 0
  %222 = vmatpush2.bf16.msra.mxu0 0
  %223 = vmatprep.subr.bf16.mxu0 0
  %224 = vmatpush2.bf16.msra.mxu0 0
  %225 = vmatprep.subr.bf16.mxu0 0
  %226 = vmatpush2.bf16.msra.mxu0 0
  %227 = vmatprep.subr.bf16.mxu0 0
  %228 = vmatpush2.bf16.msra.mxu0 0
  %229 = vmatprep.mubr.bf16.mxu0 0
  %230 = vmatmul.mubr.bf16.gmra.mxu0 %v71
  %v231 = vpop.f32.mrf.mxu0
  %v232 = vadd.f32 %v184, %v231
  %v233 = vpop.f32.mrf.mxu0
  %v234 = vpop.f32.mrf.mxu0
  %v235 = vadd.f32 %v184, %v234
  %v236 = vpop.f32.mrf.mxu0
  %237 = vdwg.mxu0
  %v238 = vpack.c.bf16 %v111, %v108
  %v239 = vpack.c.bf16 %v173, %v170
  %v240 = vpack.c.bf16 %v235, %v232
  %vm241 = vcmask 64512
  %v243 = vsel %vm241, %v238, 0
  %v246 = vsel %vm241, %v239, 0
  %248 = vmatprep.subr.bf16.mxu0 0
  %249 = vmatpush1.bf16.xpose.msra.mxu0 0
  %250 = vmatprep.subr.bf16.mxu0 0
  %251 = vmatpush1.bf16.xpose.msra.mxu0 0
  %252 = vmatprep.subr.bf16.mxu0 0
  %253 = vmatpush1.bf16.xpose.msra.mxu0 0
  %254 = vmatprep.subr.bf16.mxu0 0
  %255 = vmatpush1.bf16.xpose.msra.mxu0 0
  %256 = vmatprep.subr.bf16.mxu0 0
  %257 = vmatpush1.bf16.xpose.msra.mxu0 0
  %258 = vmatprep.subr.bf16.mxu0 0
  %259 = vmatpush1.bf16.xpose.msra.mxu0 0
  %260 = vmatprep.subr.bf16.mxu0 0
  %261 = vmatpush1.bf16.xpose.msra.mxu0 0
  %262 = vmatprep.subr.bf16.mxu0 0
  %263 = vmatpush1.bf16.xpose.msra.mxu0 %v246
  %264 = vmatprep.subr.bf16.mxu0 0
  %265 = vmatpush2.bf16.xpose.msra.mxu0 0
  %266 = vmatprep.subr.bf16.mxu0 0
  %267 = vmatpush2.bf16.xpose.msra.mxu0 0
  %268 = vmatprep.subr.bf16.mxu0 0
  %269 = vmatpush2.bf16.xpose.msra.mxu0 0
  %270 = vmatprep.subr.bf16.mxu0 0
  %271 = vmatpush2.bf16.xpose.msra.mxu0 0
  %272 = vmatprep.subr.bf16.mxu0 0
  %273 = vmatpush2.bf16.xpose.msra.mxu0 0
  %274 = vmatprep.subr.bf16.mxu0 0
  %275 = vmatpush2.bf16.xpose.msra.mxu0 0
  %276 = vmatprep.subr.bf16.mxu0 0
  %277 = vmatpush2.bf16.xpose.msra.mxu0 0
  %278 = vmatprep.subr.bf16.mxu0 0
  %279 = vmatpush2.bf16.xpose.msra.mxu0 0
  %280 = vmatprep.mubr.bf16.mxu0 0
  %281 = vmatmul.mubr.bf16.gmra.mxu0 %v243
  %v282 = vpop.f32.mrf.mxu0
  %v283 = vadd.f32 0.0, %v282
  %v284 = vpop.f32.mrf.mxu0
  %v285 = vpop.f32.mrf.mxu0
  %v286 = vadd.f32 0.0, %v285
  %v287 = vpop.f32.mrf.mxu0
  %288 = vdwg.mxu0
  %v289 = vmul.f32 %v283, 0.35355338
  %v290 = vmul.f32 %v286, 0.35355338
  %vm291 = vcmask 72704
  %v292 = vsel %vm291, %v289, -inf
  %293 = vmax.xlane.f32.xlu0 %v292
  %v294 = vpop.xlane.xlu0 %293
  %vm295 = vcmask 65536
  %v296 = vsel %vm295, %v290, -inf
  %297 = vmax.xlane.f32.xlu0 %v296
  %v298 = vpop.xlane.xlu0 %297
  %v299 = vsub.f32 %v289, %v294
  %v300 = vsub.f32 %v290, %v298
  %v301 = vmul.f32 %v299, 1.442695
  %v302 = vpow.pop %v301
  %v303 = vmul.f32 %v300, 1.442695
  %v304 = vpow.pop %v303
  %v305 = vsel %vm291, %v302, 0.0
  %306 = vadd.xlane.f32.xlu0 %v305
  %v307 = vpop.xlane.xlu0 %306
  %v308 = vsel %vm295, %v304, 0.0
  %309 = vadd.xlane.f32.xlu0 %v308
  %v310 = vpop.xlane.xlu0 %309
  %v311 = vrcp.pop %v307
  %v312 = vrcp.pop %v310
  %v313 = vmul.f32 %v302, %v311
  %v314 = vmul.f32 %v304, %v312
  %v315 = vpack.c.bf16 %v314, %v313
  %v317 = vsel %vm291, %v315, 0
  %vm319 = vcmask 1043456
  %vm320 = vcmask 1044480
  %v321 = vsel %vm319, 4294967295, 65535
  %v322 = vsel %vm320, %v321, 0
  %v324 = vand.u32 %v240, %v322
  %326 = vmatprep.subr.bf16.mxu0 0
  %327 = vmatpush1.bf16.msra.mxu0 0
  %328 = vmatprep.subr.bf16.mxu0 0
  %329 = vmatpush1.bf16.msra.mxu0 0
  %330 = vmatprep.subr.bf16.mxu0 0
  %331 = vmatpush1.bf16.msra.mxu0 0
  %332 = vmatprep.subr.bf16.mxu0 0
  %333 = vmatpush1.bf16.msra.mxu0 0
  %334 = vmatprep.subr.bf16.mxu0 0
  %335 = vmatpush1.bf16.msra.mxu0 0
  %336 = vmatprep.subr.bf16.mxu0 0
  %337 = vmatpush1.bf16.msra.mxu0 0
  %338 = vmatprep.subr.bf16.mxu0 0
  %339 = vmatpush1.bf16.msra.mxu0 0
  %340 = vmatprep.subr.bf16.mxu0 0
  %341 = vmatpush1.bf16.msra.mxu0 %v324
  %342 = vmatprep.subr.bf16.mxu0 0
  %343 = vmatpush2.bf16.msra.mxu0 0
  %344 = vmatprep.subr.bf16.mxu0 0
  %345 = vmatpush2.bf16.msra.mxu0 0
  %346 = vmatprep.subr.bf16.mxu0 0
  %347 = vmatpush2.bf16.msra.mxu0 0
  %348 = vmatprep.subr.bf16.mxu0 0
  %349 = vmatpush2.bf16.msra.mxu0 0
  %350 = vmatprep.subr.bf16.mxu0 0
  %351 = vmatpush2.bf16.msra.mxu0 0
  %352 = vmatprep.subr.bf16.mxu0 0
  %353 = vmatpush2.bf16.msra.mxu0 0
  %354 = vmatprep.subr.bf16.mxu0 0
  %355 = vmatpush2.bf16.msra.mxu0 0
  %356 = vmatprep.subr.bf16.mxu0 0
  %357 = vmatpush2.bf16.msra.mxu0 0
  %358 = vmatprep.mubr.bf16.mxu0 0
  %359 = vmatmul.mubr.bf16.gmra.mxu0 %v317
  %v360 = vpop.f32.mrf.mxu0
  %v361 = vadd.f32 0.0, %v360
  %v362 = vpop.f32.mrf.mxu0
  %v363 = vpop.f32.mrf.mxu0
  %v364 = vadd.f32 0.0, %v363
  %v365 = vpop.f32.mrf.mxu0
  %366 = vdwg.mxu0
  %368 = vrot.lane.b32.xlu0 %v238, 120
  %v369 = vpop.permute.xlu0 %368
  %371 = vrot.lane.b32.xlu0 %v239, 120
  %v372 = vpop.permute.xlu0 %371
  %v374 = vsel %vm241, %v369, 0
  %v377 = vsel %vm241, %v372, 0
  %379 = vmatprep.subr.bf16.mxu0 0
  %380 = vmatpush1.bf16.xpose.msra.mxu0 0
  %381 = vmatprep.subr.bf16.mxu0 0
  %382 = vmatpush1.bf16.xpose.msra.mxu0 0
  %383 = vmatprep.subr.bf16.mxu0 0
  %384 = vmatpush1.bf16.xpose.msra.mxu0 0
  %385 = vmatprep.subr.bf16.mxu0 0
  %386 = vmatpush1.bf16.xpose.msra.mxu0 0
  %387 = vmatprep.subr.bf16.mxu0 0
  %388 = vmatpush1.bf16.xpose.msra.mxu0 0
  %389 = vmatprep.subr.bf16.mxu0 0
  %390 = vmatpush1.bf16.xpose.msra.mxu0 0
  %391 = vmatprep.subr.bf16.mxu0 0
  %392 = vmatpush1.bf16.xpose.msra.mxu0 0
  %393 = vmatprep.subr.bf16.mxu0 0
  %394 = vmatpush1.bf16.xpose.msra.mxu0 %v377
  %395 = vmatprep.subr.bf16.mxu0 0
  %396 = vmatpush2.bf16.xpose.msra.mxu0 0
  %397 = vmatprep.subr.bf16.mxu0 0
  %398 = vmatpush2.bf16.xpose.msra.mxu0 0
  %399 = vmatprep.subr.bf16.mxu0 0
  %400 = vmatpush2.bf16.xpose.msra.mxu0 0
  %401 = vmatprep.subr.bf16.mxu0 0
  %402 = vmatpush2.bf16.xpose.msra.mxu0 0
  %403 = vmatprep.subr.bf16.mxu0 0
  %404 = vmatpush2.bf16.xpose.msra.mxu0 0
  %405 = vmatprep.subr.bf16.mxu0 0
  %406 = vmatpush2.bf16.xpose.msra.mxu0 0
  %407 = vmatprep.subr.bf16.mxu0 0
  %408 = vmatpush2.bf16.xpose.msra.mxu0 0
  %409 = vmatprep.subr.bf16.mxu0 0
  %410 = vmatpush2.bf16.xpose.msra.mxu0 0
  %411 = vmatprep.mubr.bf16.mxu0 0
  %412 = vmatmul.mubr.bf16.gmra.mxu0 %v374
  %v413 = vpop.f32.mrf.mxu0
  %v414 = vadd.f32 0.0, %v413
  %v415 = vpop.f32.mrf.mxu0
  %v416 = vpop.f32.mrf.mxu0
  %v417 = vadd.f32 0.0, %v416
  %v418 = vpop.f32.mrf.mxu0
  %419 = vdwg.mxu0
  %v420 = vmul.f32 %v414, 0.35355338
  %v421 = vmul.f32 %v417, 0.35355338
  %v422 = vsel %vm291, %v420, -inf
  %423 = vmax.xlane.f32.xlu0 %v422
  %v424 = vpop.xlane.xlu0 %423
  %v425 = vsel %vm295, %v421, -inf
  %426 = vmax.xlane.f32.xlu0 %v425
  %v427 = vpop.xlane.xlu0 %426
  %v428 = vsub.f32 %v420, %v424
  %v429 = vsub.f32 %v421, %v427
  %v430 = vmul.f32 %v428, 1.442695
  %v431 = vpow.pop %v430
  %v432 = vmul.f32 %v429, 1.442695
  %v433 = vpow.pop %v432
  %v434 = vsel %vm291, %v431, 0.0
  %435 = vadd.xlane.f32.xlu0 %v434
  %v436 = vpop.xlane.xlu0 %435
  %v437 = vsel %vm295, %v433, 0.0
  %438 = vadd.xlane.f32.xlu0 %v437
  %v439 = vpop.xlane.xlu0 %438
  %v440 = vrcp.pop %v436
  %v441 = vrcp.pop %v439
  %v442 = vmul.f32 %v431, %v440
  %v443 = vmul.f32 %v433, %v441
  %v444 = vpack.c.bf16 %v443, %v442
  %446 = vrot.lane.b32.xlu0 %v240, 120
  %v447 = vpop.permute.xlu0 %446
  %v449 = vsel %vm291, %v444, 0
  %v452 = vand.u32 %v447, %v322
  %454 = vmatprep.subr.bf16.mxu0 0
  %455 = vmatpush1.bf16.msra.mxu0 0
  %456 = vmatprep.subr.bf16.mxu0 0
  %457 = vmatpush1.bf16.msra.mxu0 0
  %458 = vmatprep.subr.bf16.mxu0 0
  %459 = vmatpush1.bf16.msra.mxu0 0
  %460 = vmatprep.subr.bf16.mxu0 0
  %461 = vmatpush1.bf16.msra.mxu0 0
  %462 = vmatprep.subr.bf16.mxu0 0
  %463 = vmatpush1.bf16.msra.mxu0 0
  %464 = vmatprep.subr.bf16.mxu0 0
  %465 = vmatpush1.bf16.msra.mxu0 0
  %466 = vmatprep.subr.bf16.mxu0 0
  %467 = vmatpush1.bf16.msra.mxu0 0
  %468 = vmatprep.subr.bf16.mxu0 0
  %469 = vmatpush1.bf16.msra.mxu0 %v452
  %470 = vmatprep.subr.bf16.mxu0 0
  %471 = vmatpush2.bf16.msra.mxu0 0
  %472 = vmatprep.subr.bf16.mxu0 0
  %473 = vmatpush2.bf16.msra.mxu0 0
  %474 = vmatprep.subr.bf16.mxu0 0
  %475 = vmatpush2.bf16.msra.mxu0 0
  %476 = vmatprep.subr.bf16.mxu0 0
  %477 = vmatpush2.bf16.msra.mxu0 0
  %478 = vmatprep.subr.bf16.mxu0 0
  %479 = vmatpush2.bf16.msra.mxu0 0
  %480 = vmatprep.subr.bf16.mxu0 0
  %481 = vmatpush2.bf16.msra.mxu0 0
  %482 = vmatprep.subr.bf16.mxu0 0
  %483 = vmatpush2.bf16.msra.mxu0 0
  %484 = vmatprep.subr.bf16.mxu0 0
  %485 = vmatpush2.bf16.msra.mxu0 0
  %486 = vmatprep.mubr.bf16.mxu0 0
  %487 = vmatmul.mubr.bf16.gmra.mxu0 %v449
  %v488 = vpop.f32.mrf.mxu0
  %v489 = vadd.f32 0.0, %v488
  %v490 = vpop.f32.mrf.mxu0
  %v491 = vpop.f32.mrf.mxu0
  %v492 = vadd.f32 0.0, %v491
  %v493 = vpop.f32.mrf.mxu0
  %494 = vdwg.mxu0
  %495 = vrot.lane.b32.xlu0 %v238, 112
  %v496 = vpop.permute.xlu0 %495
  %497 = vrot.lane.b32.xlu0 %v239, 112
  %v498 = vpop.permute.xlu0 %497
  %v500 = vsel %vm241, %v496, 0
  %v503 = vsel %vm241, %v498, 0
  %505 = vmatprep.subr.bf16.mxu0 0
  %506 = vmatpush1.bf16.xpose.msra.mxu0 0
  %507 = vmatprep.subr.bf16.mxu0 0
  %508 = vmatpush1.bf16.xpose.msra.mxu0 0
  %509 = vmatprep.subr.bf16.mxu0 0
  %510 = vmatpush1.bf16.xpose.msra.mxu0 0
  %511 = vmatprep.subr.bf16.mxu0 0
  %512 = vmatpush1.bf16.xpose.msra.mxu0 0
  %513 = vmatprep.subr.bf16.mxu0 0
  %514 = vmatpush1.bf16.xpose.msra.mxu0 0
  %515 = vmatprep.subr.bf16.mxu0 0
  %516 = vmatpush1.bf16.xpose.msra.mxu0 0
  %517 = vmatprep.subr.bf16.mxu0 0
  %518 = vmatpush1.bf16.xpose.msra.mxu0 0
  %519 = vmatprep.subr.bf16.mxu0 0
  %520 = vmatpush1.bf16.xpose.msra.mxu0 %v503
  %521 = vmatprep.subr.bf16.mxu0 0
  %522 = vmatpush2.bf16.xpose.msra.mxu0 0
  %523 = vmatprep.subr.bf16.mxu0 0
  %524 = vmatpush2.bf16.xpose.msra.mxu0 0
  %525 = vmatprep.subr.bf16.mxu0 0
  %526 = vmatpush2.bf16.xpose.msra.mxu0 0
  %527 = vmatprep.subr.bf16.mxu0 0
  %528 = vmatpush2.bf16.xpose.msra.mxu0 0
  %529 = vmatprep.subr.bf16.mxu0 0
  %530 = vmatpush2.bf16.xpose.msra.mxu0 0
  %531 = vmatprep.subr.bf16.mxu0 0
  %532 = vmatpush2.bf16.xpose.msra.mxu0 0
  %533 = vmatprep.subr.bf16.mxu0 0
  %534 = vmatpush2.bf16.xpose.msra.mxu0 0
  %535 = vmatprep.subr.bf16.mxu0 0
  %536 = vmatpush2.bf16.xpose.msra.mxu0 0
  %537 = vmatprep.mubr.bf16.mxu0 0
  %538 = vmatmul.mubr.bf16.gmra.mxu0 %v500
  %v539 = vpop.f32.mrf.mxu0
  %v540 = vadd.f32 0.0, %v539
  %v541 = vpop.f32.mrf.mxu0
  %v542 = vpop.f32.mrf.mxu0
  %v543 = vadd.f32 0.0, %v542
  %v544 = vpop.f32.mrf.mxu0
  %545 = vdwg.mxu0
  %v546 = vmul.f32 %v540, 0.35355338
  %v547 = vmul.f32 %v543, 0.35355338
  %v548 = vsel %vm291, %v546, -inf
  %549 = vmax.xlane.f32.xlu0 %v548
  %v550 = vpop.xlane.xlu0 %549
  %v551 = vsel %vm295, %v547, -inf
  %552 = vmax.xlane.f32.xlu0 %v551
  %v553 = vpop.xlane.xlu0 %552
  %v554 = vsub.f32 %v546, %v550
  %v555 = vsub.f32 %v547, %v553
  %v556 = vmul.f32 %v554, 1.442695
  %v557 = vpow.pop %v556
  %v558 = vmul.f32 %v555, 1.442695
  %v559 = vpow.pop %v558
  %v560 = vsel %vm291, %v557, 0.0
  %561 = vadd.xlane.f32.xlu0 %v560
  %v562 = vpop.xlane.xlu0 %561
  %v563 = vsel %vm295, %v559, 0.0
  %564 = vadd.xlane.f32.xlu0 %v563
  %v565 = vpop.xlane.xlu0 %564
  %v566 = vrcp.pop %v562
  %v567 = vrcp.pop %v565
  %v568 = vmul.f32 %v557, %v566
  %v569 = vmul.f32 %v559, %v567
  %v570 = vpack.c.bf16 %v569, %v568
  %571 = vrot.lane.b32.xlu0 %v240, 112
  %v572 = vpop.permute.xlu0 %571
  %v574 = vsel %vm291, %v570, 0
  %v577 = vand.u32 %v572, %v322
  %579 = vmatprep.subr.bf16.mxu0 0
  %580 = vmatpush1.bf16.msra.mxu0 0
  %581 = vmatprep.subr.bf16.mxu0 0
  %582 = vmatpush1.bf16.msra.mxu0 0
  %583 = vmatprep.subr.bf16.mxu0 0
  %584 = vmatpush1.bf16.msra.mxu0 0
  %585 = vmatprep.subr.bf16.mxu0 0
  %586 = vmatpush1.bf16.msra.mxu0 0
  %587 = vmatprep.subr.bf16.mxu0 0
  %588 = vmatpush1.bf16.msra.mxu0 0
  %589 = vmatprep.subr.bf16.mxu0 0
  %590 = vmatpush1.bf16.msra.mxu0 0
  %591 = vmatprep.subr.bf16.mxu0 0
  %592 = vmatpush1.bf16.msra.mxu0 0
  %593 = vmatprep.subr.bf16.mxu0 0
  %594 = vmatpush1.bf16.msra.mxu0 %v577
  %595 = vmatprep.subr.bf16.mxu0 0
  %596 = vmatpush2.bf16.msra.mxu0 0
  %597 = vmatprep.subr.bf16.mxu0 0
  %598 = vmatpush2.bf16.msra.mxu0 0
  %599 = vmatprep.subr.bf16.mxu0 0
  %600 = vmatpush2.bf16.msra.mxu0 0
  %601 = vmatprep.subr.bf16.mxu0 0
  %602 = vmatpush2.bf16.msra.mxu0 0
  %603 = vmatprep.subr.bf16.mxu0 0
  %604 = vmatpush2.bf16.msra.mxu0 0
  %605 = vmatprep.subr.bf16.mxu0 0
  %606 = vmatpush2.bf16.msra.mxu0 0
  %607 = vmatprep.subr.bf16.mxu0 0
  %608 = vmatpush2.bf16.msra.mxu0 0
  %609 = vmatprep.subr.bf16.mxu0 0
  %610 = vmatpush2.bf16.msra.mxu0 0
  %611 = vmatprep.mubr.bf16.mxu0 0
  %612 = vmatmul.mubr.bf16.gmra.mxu0 %v574
  %v613 = vpop.f32.mrf.mxu0
  %v614 = vadd.f32 0.0, %v613
  %v615 = vpop.f32.mrf.mxu0
  %v616 = vpop.f32.mrf.mxu0
  %v617 = vadd.f32 0.0, %v616
  %v618 = vpop.f32.mrf.mxu0
  %619 = vdwg.mxu0
  %620 = vrot.lane.b32.xlu0 %v238, 104
  %v621 = vpop.permute.xlu0 %620
  %622 = vrot.lane.b32.xlu0 %v239, 104
  %v623 = vpop.permute.xlu0 %622
  %v625 = vsel %vm241, %v621, 0
  %v628 = vsel %vm241, %v623, 0
  %630 = vmatprep.subr.bf16.mxu0 0
  %631 = vmatpush1.bf16.xpose.msra.mxu0 0
  %632 = vmatprep.subr.bf16.mxu0 0
  %633 = vmatpush1.bf16.xpose.msra.mxu0 0
  %634 = vmatprep.subr.bf16.mxu0 0
  %635 = vmatpush1.bf16.xpose.msra.mxu0 0
  %636 = vmatprep.subr.bf16.mxu0 0
  %637 = vmatpush1.bf16.xpose.msra.mxu0 0
  %638 = vmatprep.subr.bf16.mxu0 0
  %639 = vmatpush1.bf16.xpose.msra.mxu0 0
  %640 = vmatprep.subr.bf16.mxu0 0
  %641 = vmatpush1.bf16.xpose.msra.mxu0 0
  %642 = vmatprep.subr.bf16.mxu0 0
  %643 = vmatpush1.bf16.xpose.msra.mxu0 0
  %644 = vmatprep.subr.bf16.mxu0 0
  %645 = vmatpush1.bf16.xpose.msra.mxu0 %v628
  %646 = vmatprep.subr.bf16.mxu0 0
  %647 = vmatpush2.bf16.xpose.msra.mxu0 0
  %648 = vmatprep.subr.bf16.mxu0 0
  %649 = vmatpush2.bf16.xpose.msra.mxu0 0
  %650 = vmatprep.subr.bf16.mxu0 0
  %651 = vmatpush2.bf16.xpose.msra.mxu0 0
  %652 = vmatprep.subr.bf16.mxu0 0
  %653 = vmatpush2.bf16.xpose.msra.mxu0 0
  %654 = vmatprep.subr.bf16.mxu0 0
  %655 = vmatpush2.bf16.xpose.msra.mxu0 0
  %656 = vmatprep.subr.bf16.mxu0 0
  %657 = vmatpush2.bf16.xpose.msra.mxu0 0
  %658 = vmatprep.subr.bf16.mxu0 0
  %659 = vmatpush2.bf16.xpose.msra.mxu0 0
  %660 = vmatprep.subr.bf16.mxu0 0
  %661 = vmatpush2.bf16.xpose.msra.mxu0 0
  %662 = vmatprep.mubr.bf16.mxu0 0
  %663 = vmatmul.mubr.bf16.gmra.mxu0 %v625
  %v664 = vpop.f32.mrf.mxu0
  %v665 = vadd.f32 0.0, %v664
  %v666 = vpop.f32.mrf.mxu0
  %v667 = vpop.f32.mrf.mxu0
  %v668 = vadd.f32 0.0, %v667
  %v669 = vpop.f32.mrf.mxu0
  %670 = vdwg.mxu0
  %v671 = vmul.f32 %v665, 0.35355338
  %v672 = vmul.f32 %v668, 0.35355338
  %v673 = vsel %vm291, %v671, -inf
  %674 = vmax.xlane.f32.xlu0 %v673
  %v675 = vpop.xlane.xlu0 %674
  %v676 = vsel %vm295, %v672, -inf
  %677 = vmax.xlane.f32.xlu0 %v676
  %v678 = vpop.xlane.xlu0 %677
  %v679 = vsub.f32 %v671, %v675
  %v680 = vsub.f32 %v672, %v678
  %v681 = vmul.f32 %v679, 1.442695
  %v682 = vpow.pop %v681
  %v683 = vmul.f32 %v680, 1.442695
  %v684 = vpow.pop %v683
  %v685 = vsel %vm291, %v682, 0.0
  %686 = vadd.xlane.f32.xlu0 %v685
  %v687 = vpop.xlane.xlu0 %686
  %v688 = vsel %vm295, %v684, 0.0
  %689 = vadd.xlane.f32.xlu0 %v688
  %v690 = vpop.xlane.xlu0 %689
  %v691 = vrcp.pop %v687
  %v692 = vrcp.pop %v690
  %v693 = vmul.f32 %v682, %v691
  %v694 = vmul.f32 %v684, %v692
  %v695 = vpack.c.bf16 %v694, %v693
  %696 = vrot.lane.b32.xlu0 %v240, 104
  %v697 = vpop.permute.xlu0 %696
  %v699 = vsel %vm291, %v695, 0
  %v702 = vand.u32 %v697, %v322
  %704 = vmatprep.subr.bf16.mxu0 0
  %705 = vmatpush1.bf16.msra.mxu0 0
  %706 = vmatprep.subr.bf16.mxu0 0
  %707 = vmatpush1.bf16.msra.mxu0 0
  %708 = vmatprep.subr.bf16.mxu0 0
  %709 = vmatpush1.bf16.msra.mxu0 0
  %710 = vmatprep.subr.bf16.mxu0 0
  %711 = vmatpush1.bf16.msra.mxu0 0
  %712 = vmatprep.subr.bf16.mxu0 0
  %713 = vmatpush1.bf16.msra.mxu0 0
  %714 = vmatprep.subr.bf16.mxu0 0
  %715 = vmatpush1.bf16.msra.mxu0 0
  %716 = vmatprep.subr.bf16.mxu0 0
  %717 = vmatpush1.bf16.msra.mxu0 0
  %718 = vmatprep.subr.bf16.mxu0 0
  %719 = vmatpush1.bf16.msra.mxu0 %v702
  %720 = vmatprep.subr.bf16.mxu0 0
  %721 = vmatpush2.bf16.msra.mxu0 0
  %722 = vmatprep.subr.bf16.mxu0 0
  %723 = vmatpush2.bf16.msra.mxu0 0
  %724 = vmatprep.subr.bf16.mxu0 0
  %725 = vmatpush2.bf16.msra.mxu0 0
  %726 = vmatprep.subr.bf16.mxu0 0
  %727 = vmatpush2.bf16.msra.mxu0 0
  %728 = vmatprep.subr.bf16.mxu0 0
  %729 = vmatpush2.bf16.msra.mxu0 0
  %730 = vmatprep.subr.bf16.mxu0 0
  %731 = vmatpush2.bf16.msra.mxu0 0
  %732 = vmatprep.subr.bf16.mxu0 0
  %733 = vmatpush2.bf16.msra.mxu0 0
  %734 = vmatprep.subr.bf16.mxu0 0
  %735 = vmatpush2.bf16.msra.mxu0 0
  %736 = vmatprep.mubr.bf16.mxu0 0
  %737 = vmatmul.mubr.bf16.gmra.mxu0 %v699
  %v738 = vpop.f32.mrf.mxu0
  %v739 = vadd.f32 0.0, %v738
  %v740 = vpop.f32.mrf.mxu0
  %v741 = vpop.f32.mrf.mxu0
  %v742 = vadd.f32 0.0, %v741
  %v743 = vpop.f32.mrf.mxu0
  %744 = vdwg.mxu0
  %747 = vrot.lane.b32.xlu0 %v489, 8
  %v748 = vpop.permute.xlu0 %747
  %749 = vrot.lane.b32.xlu0 %v492, 8
  %v750 = vpop.permute.xlu0 %749
  %755 = vrot.lane.b32.xlu0 %v614, 16
  %v756 = vpop.permute.xlu0 %755
  %757 = vrot.lane.b32.xlu0 %v617, 16
  %v758 = vpop.permute.xlu0 %757
  %763 = vrot.lane.b32.xlu0 %v739, 24
  %v764 = vpop.permute.xlu0 %763
  %765 = vrot.lane.b32.xlu0 %v742, 24
  %v766 = vpop.permute.xlu0 %765
  %v769 = vsel %vm241, %v361, %v748
  %v770 = vsel %vm241, %v364, %v750
  %vm771 = vcmask 130048
  %v772 = vsel %vm771, %v769, %v756
  %v773 = vsel %vm771, %v770, %v758
  %vm774 = vcmask 195584
  %v775 = vsel %vm774, %v772, %v764
  %v776 = vsel %vm774, %v773, %v766
  %s777 = scalar_lea.vmem %s1, 48
  %v778 = vld [vmem:[%s777] sm:$0xf]
  %v779 = vld [vmem:[%s777 + $0x4] sm:$0xf]
  %v780 = vld [vmem:[%s777 + $0x8] sm:$0xf]
  %v781 = vld [vmem:[%s777 + $0xc] sm:$0xf]
  %v782 = vpack.c.bf16 %v776, %v775
  %v787 = vunpack.c.l.b16 %v778
  %v788 = vunpack.c.l.b16 %v779
  %v789 = vunpack.c.l.b16 %v780
  %v790 = vunpack.c.l.b16 %v781
  %v791 = vpack.c.b16 %v788, %v787
  %v792 = vpack.c.b16 %v790, %v789
  %v796 = vsel %vm69, %v782, 0
  %798 = vmatprep.subr.bf16.mxu0 0
  %799 = vmatpush1.bf16.msra.mxu0 0
  %800 = vmatprep.subr.bf16.mxu0 0
  %801 = vmatpush1.bf16.msra.mxu0 0
  %802 = vmatprep.subr.bf16.mxu0 0
  %803 = vmatpush1.bf16.msra.mxu0 0
  %804 = vmatprep.subr.bf16.mxu0 0
  %805 = vmatpush1.bf16.msra.mxu0 0
  %806 = vmatprep.subr.bf16.mxu0 0
  %807 = vmatpush1.bf16.msra.mxu0 0
  %808 = vmatprep.subr.bf16.mxu0 0
  %809 = vmatpush1.bf16.msra.mxu0 0
  %810 = vmatprep.subr.bf16.mxu0 0
  %811 = vmatpush1.bf16.msra.mxu0 %v792
  %812 = vmatprep.subr.bf16.mxu0 0
  %813 = vmatpush1.bf16.msra.mxu0 %v791
  %814 = vmatprep.subr.bf16.mxu0 0
  %815 = vmatpush2.bf16.msra.mxu0 0
  %816 = vmatprep.subr.bf16.mxu0 0
  %817 = vmatpush2.bf16.msra.mxu0 0
  %818 = vmatprep.subr.bf16.mxu0 0
  %819 = vmatpush2.bf16.msra.mxu0 0
  %820 = vmatprep.subr.bf16.mxu0 0
  %821 = vmatpush2.bf16.msra.mxu0 0
  %822 = vmatprep.subr.bf16.mxu0 0
  %823 = vmatpush2.bf16.msra.mxu0 0
  %824 = vmatprep.subr.bf16.mxu0 0
  %825 = vmatpush2.bf16.msra.mxu0 0
  %826 = vmatprep.subr.bf16.mxu0 0
  %827 = vmatpush2.bf16.msra.mxu0 0
  %828 = vmatprep.subr.bf16.mxu0 0
  %829 = vmatpush2.bf16.msra.mxu0 0
  %830 = vmatprep.mubr.bf16.mxu0 0
  %831 = vmatmul.mubr.bf16.gmra.mxu0 %v796
  %v832 = vpop.f32.mrf.mxu0
  %v833 = vadd.f32 0.0, %v832
  %v834 = vpop.f32.mrf.mxu0
  %v835 = vpop.f32.mrf.mxu0
  %v836 = vadd.f32 0.0, %v835
  %v837 = vpop.f32.mrf.mxu0
  %838 = vdwg.mxu0
  %v839 = vadd.f32 %v46, %v833
  %v840 = vadd.f32 %v47, %v836
  %v841 = vlaneseq
  %v842 = vshrl.u32 %v841, 7
  %v843 = vsub.s32 3, %v842
  %v844 = vrot.slane %v30, %v843
  %v845 = vadd.f32 %v839, %v844
  %v846 = vadd.f32 %v840, %v844
  %v847 = vsel %vm69, %v845, 0.0
  %vm848 = vcmask 253952
  %v849 = vsel %vm848, %v846, 0.0
  %v850 = vadd.f32 %v847, %v849
  %v851 = vrot.slane %v850, 4
  %v852 = vadd.f32 %v850, %v851
  %v853 = vrot.slane %v852, 2
  %v854 = vadd.f32 %v852, %v853
  %v855 = vrot.slane %v854, 1
  %v856 = vadd.f32 %v854, %v855
  %v857 = vadd.f32 %v856, 0.0
  %v858 = vmul.f32 %v845, %v845
  %v859 = vmul.f32 %v846, %v846
  %v860 = vsel %vm69, %v858, 0.0
  %v861 = vsel %vm848, %v859, 0.0
  %v862 = vadd.f32 %v860, %v861
  %v863 = vrot.slane %v862, 4
  %v864 = vadd.f32 %v862, %v863
  %v865 = vrot.slane %v864, 2
  %v866 = vadd.f32 %v864, %v865
  %v867 = vrot.slane %v866, 1
  %v868 = vadd.f32 %v866, %v867
  %v869 = vadd.f32 %v868, 0.0
  %s870 = scalar_lea.vmem %s0, 16
  %v871 = vld [vmem:[%s870] sm:$0xff]
  %v872 = vld [vmem:[%s870 + $0x8] sm:$0x1]
  %v873 = vpack.c.bf16 %v872, %v871
  %v875 = vsel %vm69, %v873, 0
  %877 = vmatprep.subr.bf16.mxu0 0
  %878 = vmatpush1.bf16.msra.mxu0 0
  %879 = vmatprep.subr.bf16.mxu0 0
  %880 = vmatpush1.bf16.msra.mxu0 0
  %881 = vmatprep.subr.bf16.mxu0 0
  %882 = vmatpush1.bf16.msra.mxu0 0
  %883 = vmatprep.subr.bf16.mxu0 0
  %884 = vmatpush1.bf16.msra.mxu0 0
  %885 = vmatprep.subr.bf16.mxu0 0
  %886 = vmatpush1.bf16.msra.mxu0 0
  %887 = vmatprep.subr.bf16.mxu0 0
  %888 = vmatpush1.bf16.msra.mxu0 0
  %889 = vmatprep.subr.bf16.mxu0 0
  %890 = vmatpush1.bf16.msra.mxu0 %v66
  %891 = vmatprep.subr.bf16.mxu0 0
  %892 = vmatpush1.bf16.msra.mxu0 %v65
  %893 = vmatprep.subr.bf16.mxu0 0
  %894 = vmatpush2.bf16.msra.mxu0 0
  %895 = vmatprep.subr.bf16.mxu0 0
  %896 = vmatpush2.bf16.msra.mxu0 0
  %897 = vmatprep.subr.bf16.mxu0 0
  %898 = vmatpush2.bf16.msra.mxu0 0
  %899 = vmatprep.subr.bf16.mxu0 0
  %900 = vmatpush2.bf16.msra.mxu0 0
  %901 = vmatprep.subr.bf16.mxu0 0
  %902 = vmatpush2.bf16.msra.mxu0 0
  %903 = vmatprep.subr.bf16.mxu0 0
  %904 = vmatpush2.bf16.msra.mxu0 0
  %905 = vmatprep.subr.bf16.mxu0 0
  %906 = vmatpush2.bf16.msra.mxu0 0
  %907 = vmatprep.subr.bf16.mxu0 0
  %908 = vmatpush2.bf16.msra.mxu0 0
  %909 = vmatprep.mubr.bf16.mxu0 0
  %910 = vmatmul.mubr.bf16.gmra.mxu0 %v875
  %v911 = vpop.f32.mrf.mxu0
  %v912 = vadd.f32 %v56, %v911
  %v913 = vpop.f32.mrf.mxu0
  %v914 = vpop.f32.mrf.mxu0
  %v915 = vadd.f32 %v56, %v914
  %v916 = vpop.f32.mrf.mxu0
  %917 = vdwg.mxu0
  %918 = vmatprep.subr.bf16.mxu0 0
  %919 = vmatpush1.bf16.msra.mxu0 0
  %920 = vmatprep.subr.bf16.mxu0 0
  %921 = vmatpush1.bf16.msra.mxu0 0
  %922 = vmatprep.subr.bf16.mxu0 0
  %923 = vmatpush1.bf16.msra.mxu0 0
  %924 = vmatprep.subr.bf16.mxu0 0
  %925 = vmatpush1.bf16.msra.mxu0 0
  %926 = vmatprep.subr.bf16.mxu0 0
  %927 = vmatpush1.bf16.msra.mxu0 0
  %928 = vmatprep.subr.bf16.mxu0 0
  %929 = vmatpush1.bf16.msra.mxu0 0
  %930 = vmatprep.subr.bf16.mxu0 0
  %931 = vmatpush1.bf16.msra.mxu0 %v132
  %932 = vmatprep.subr.bf16.mxu0 0
  %933 = vmatpush1.bf16.msra.mxu0 %v131
  %934 = vmatprep.subr.bf16.mxu0 0
  %935 = vmatpush2.bf16.msra.mxu0 0
  %936 = vmatprep.subr.bf16.mxu0 0
  %937 = vmatpush2.bf16.msra.mxu0 0
  %938 = vmatprep.subr.bf16.mxu0 0
  %939 = vmatpush2.bf16.msra.mxu0 0
  %940 = vmatprep.subr.bf16.mxu0 0
  %941 = vmatpush2.bf16.msra.mxu0 0
  %942 = vmatprep.subr.bf16.mxu0 0
  %943 = vmatpush2.bf16.msra.mxu0 0
  %944 = vmatprep.subr.bf16.mxu0 0
  %945 = vmatpush2.bf16.msra.mxu0 0
  %946 = vmatprep.subr.bf16.mxu0 0
  %947 = vmatpush2.bf16.msra.mxu0 0
  %948 = vmatprep.subr.bf16.mxu0 0
  %949 = vmatpush2.bf16.msra.mxu0 0
  %950 = vmatprep.mubr.bf16.mxu0 0
  %951 = vmatmul.mubr.bf16.gmra.mxu0 %v875
  %v952 = vpop.f32.mrf.mxu0
  %v953 = vadd.f32 %v122, %v952
  %v954 = vpop.f32.mrf.mxu0
  %v955 = vpop.f32.mrf.mxu0
  %v956 = vadd.f32 %v122, %v955
  %v957 = vpop.f32.mrf.mxu0
  %958 = vdwg.mxu0
  %959 = vmatprep.subr.bf16.mxu0 0
  %960 = vmatpush1.bf16.msra.mxu0 0
  %961 = vmatprep.subr.bf16.mxu0 0
  %962 = vmatpush1.bf16.msra.mxu0 0
  %963 = vmatprep.subr.bf16.mxu0 0
  %964 = vmatpush1.bf16.msra.mxu0 0
  %965 = vmatprep.subr.bf16.mxu0 0
  %966 = vmatpush1.bf16.msra.mxu0 0
  %967 = vmatprep.subr.bf16.mxu0 0
  %968 = vmatpush1.bf16.msra.mxu0 0
  %969 = vmatprep.subr.bf16.mxu0 0
  %970 = vmatpush1.bf16.msra.mxu0 0
  %971 = vmatprep.subr.bf16.mxu0 0
  %972 = vmatpush1.bf16.msra.mxu0 %v194
  %973 = vmatprep.subr.bf16.mxu0 0
  %974 = vmatpush1.bf16.msra.mxu0 %v193
  %975 = vmatprep.subr.bf16.mxu0 0
  %976 = vmatpush2.bf16.msra.mxu0 0
  %977 = vmatprep.subr.bf16.mxu0 0
  %978 = vmatpush2.bf16.msra.mxu0 0
  %979 = vmatprep.subr.bf16.mxu0 0
  %980 = vmatpush2.bf16.msra.mxu0 0
  %981 = vmatprep.subr.bf16.mxu0 0
  %982 = vmatpush2.bf16.msra.mxu0 0
  %983 = vmatprep.subr.bf16.mxu0 0
  %984 = vmatpush2.bf16.msra.mxu0 0
  %985 = vmatprep.subr.bf16.mxu0 0
  %986 = vmatpush2.bf16.msra.mxu0 0
  %987 = vmatprep.subr.bf16.mxu0 0
  %988 = vmatpush2.bf16.msra.mxu0 0
  %989 = vmatprep.subr.bf16.mxu0 0
  %990 = vmatpush2.bf16.msra.mxu0 0
  %991 = vmatprep.mubr.bf16.mxu0 0
  %992 = vmatmul.mubr.bf16.gmra.mxu0 %v875
  %v993 = vpop.f32.mrf.mxu0
  %v994 = vadd.f32 %v184, %v993
  %v995 = vpop.f32.mrf.mxu0
  %v996 = vpop.f32.mrf.mxu0
  %v997 = vadd.f32 %v184, %v996
  %v998 = vpop.f32.mrf.mxu0
  %999 = vdwg.mxu0
  %v1000 = vpack.c.bf16 %v915, %v912
  %v1001 = vpack.c.bf16 %v956, %v953
  %v1002 = vpack.c.bf16 %v997, %v994
  %v1004 = vsel %vm241, %v1000, 0
  %v1007 = vsel %vm241, %v1001, 0
  %1009 = vmatprep.subr.bf16.mxu0 0
  %1010 = vmatpush1.bf16.xpose.msra.mxu0 0
  %1011 = vmatprep.subr.bf16.mxu0 0
  %1012 = vmatpush1.bf16.xpose.msra.mxu0 0
  %1013 = vmatprep.subr.bf16.mxu0 0
  %1014 = vmatpush1.bf16.xpose.msra.mxu0 0
  %1015 = vmatprep.subr.bf16.mxu0 0
  %1016 = vmatpush1.bf16.xpose.msra.mxu0 0
  %1017 = vmatprep.subr.bf16.mxu0 0
  %1018 = vmatpush1.bf16.xpose.msra.mxu0 0
  %1019 = vmatprep.subr.bf16.mxu0 0
  %1020 = vmatpush1.bf16.xpose.msra.mxu0 0
  %1021 = vmatprep.subr.bf16.mxu0 0
  %1022 = vmatpush1.bf16.xpose.msra.mxu0 0
  %1023 = vmatprep.subr.bf16.mxu0 0
  %1024 = vmatpush1.bf16.xpose.msra.mxu0 %v1007
  %1025 = vmatprep.subr.bf16.mxu0 0
  %1026 = vmatpush2.bf16.xpose.msra.mxu0 0
  %1027 = vmatprep.subr.bf16.mxu0 0
  %1028 = vmatpush2.bf16.xpose.msra.mxu0 0
  %1029 = vmatprep.subr.bf16.mxu0 0
  %1030 = vmatpush2.bf16.xpose.msra.mxu0 0
  %1031 = vmatprep.subr.bf16.mxu0 0
  %1032 = vmatpush2.bf16.xpose.msra.mxu0 0
  %1033 = vmatprep.subr.bf16.mxu0 0
  %1034 = vmatpush2.bf16.xpose.msra.mxu0 0
  %1035 = vmatprep.subr.bf16.mxu0 0
  %1036 = vmatpush2.bf16.xpose.msra.mxu0 0
  %1037 = vmatprep.subr.bf16.mxu0 0
  %1038 = vmatpush2.bf16.xpose.msra.mxu0 0
  %1039 = vmatprep.subr.bf16.mxu0 0
  %1040 = vmatpush2.bf16.xpose.msra.mxu0 0
  %1041 = vmatprep.mubr.bf16.mxu0 0
  %1042 = vmatmul.mubr.bf16.gmra.mxu0 %v1004
  %v1043 = vpop.f32.mrf.mxu0
  %v1044 = vadd.f32 0.0, %v1043
  %v1045 = vpop.f32.mrf.mxu0
  %v1046 = vpop.f32.mrf.mxu0
  %v1047 = vadd.f32 0.0, %v1046
  %v1048 = vpop.f32.mrf.mxu0
  %1049 = vdwg.mxu0
  %v1050 = vmul.f32 %v1044, 0.35355338
  %v1051 = vmul.f32 %v1047, 0.35355338
  %v1052 = vsel %vm291, %v1050, -inf
  %1053 = vmax.xlane.f32.xlu0 %v1052
  %v1054 = vpop.xlane.xlu0 %1053
  %v1055 = vsel %vm295, %v1051, -inf
  %1056 = vmax.xlane.f32.xlu0 %v1055
  %v1057 = vpop.xlane.xlu0 %1056
  %v1058 = vsub.f32 %v1050, %v1054
  %v1059 = vsub.f32 %v1051, %v1057
  %v1060 = vmul.f32 %v1058, 1.442695
  %v1061 = vpow.pop %v1060
  %v1062 = vmul.f32 %v1059, 1.442695
  %v1063 = vpow.pop %v1062
  %v1064 = vsel %vm291, %v1061, 0.0
  %1065 = vadd.xlane.f32.xlu0 %v1064
  %v1066 = vpop.xlane.xlu0 %1065
  %v1067 = vsel %vm295, %v1063, 0.0
  %1068 = vadd.xlane.f32.xlu0 %v1067
  %v1069 = vpop.xlane.xlu0 %1068
  %v1070 = vrcp.pop %v1066
  %v1071 = vrcp.pop %v1069
  %v1072 = vmul.f32 %v1061, %v1070
  %v1073 = vmul.f32 %v1063, %v1071
  %v1074 = vpack.c.bf16 %v1073, %v1072
  %v1076 = vsel %vm291, %v1074, 0
  %v1079 = vand.u32 %v1002, %v322
  %1081 = vmatprep.subr.bf16.mxu0 0
  %1082 = vmatpush1.bf16.msra.mxu0 0
  %1083 = vmatprep.subr.bf16.mxu0 0
  %1084 = vmatpush1.bf16.msra.mxu0 0
  %1085 = vmatprep.subr.bf16.mxu0 0
  %1086 = vmatpush1.bf16.msra.mxu0 0
  %1087 = vmatprep.subr.bf16.mxu0 0
  %1088 = vmatpush1.bf16.msra.mxu0 0
  %1089 = vmatprep.subr.bf16.mxu0 0
  %1090 = vmatpush1.bf16.msra.mxu0 0
  %1091 = vmatprep.subr.bf16.mxu0 0
  %1092 = vmatpush1.bf16.msra.mxu0 0
  %1093 = vmatprep.subr.bf16.mxu0 0
  %1094 = vmatpush1.bf16.msra.mxu0 0
  %1095 = vmatprep.subr.bf16.mxu0 0
  %1096 = vmatpush1.bf16.msra.mxu0 %v1079
  %1097 = vmatprep.subr.bf16.mxu0 0
  %1098 = vmatpush2.bf16.msra.mxu0 0
  %1099 = vmatprep.subr.bf16.mxu0 0
  %1100 = vmatpush2.bf16.msra.mxu0 0
  %1101 = vmatprep.subr.bf16.mxu0 0
  %1102 = vmatpush2.bf16.msra.mxu0 0
  %1103 = vmatprep.subr.bf16.mxu0 0
  %1104 = vmatpush2.bf16.msra.mxu0 0
  %1105 = vmatprep.subr.bf16.mxu0 0
  %1106 = vmatpush2.bf16.msra.mxu0 0
  %1107 = vmatprep.subr.bf16.mxu0 0
  %1108 = vmatpush2.bf16.msra.mxu0 0
  %1109 = vmatprep.subr.bf16.mxu0 0
  %1110 = vmatpush2.bf16.msra.mxu0 0
  %1111 = vmatprep.subr.bf16.mxu0 0
  %1112 = vmatpush2.bf16.msra.mxu0 0
  %1113 = vmatprep.mubr.bf16.mxu0 0
  %1114 = vmatmul.mubr.bf16.gmra.mxu0 %v1076
  %v1115 = vpop.f32.mrf.mxu0
  %v1116 = vadd.f32 0.0, %v1115
  %v1117 = vpop.f32.mrf.mxu0
  %v1118 = vpop.f32.mrf.mxu0
  %v1119 = vadd.f32 0.0, %v1118
  %v1120 = vpop.f32.mrf.mxu0
  %1121 = vdwg.mxu0
  %1123 = vrot.lane.b32.xlu0 %v1000, 120
  %v1124 = vpop.permute.xlu0 %1123
  %1126 = vrot.lane.b32.xlu0 %v1001, 120
  %v1127 = vpop.permute.xlu0 %1126
  %v1129 = vsel %vm241, %v1124, 0
  %v1132 = vsel %vm241, %v1127, 0
  %1134 = vmatprep.subr.bf16.mxu0 0
  %1135 = vmatpush1.bf16.xpose.msra.mxu0 0
  %1136 = vmatprep.subr.bf16.mxu0 0
  %1137 = vmatpush1.bf16.xpose.msra.mxu0 0
  %1138 = vmatprep.subr.bf16.mxu0 0
  %1139 = vmatpush1.bf16.xpose.msra.mxu0 0
  %1140 = vmatprep.subr.bf16.mxu0 0
  %1141 = vmatpush1.bf16.xpose.msra.mxu0 0
  %1142 = vmatprep.subr.bf16.mxu0 0
  %1143 = vmatpush1.bf16.xpose.msra.mxu0 0
  %1144 = vmatprep.subr.bf16.mxu0 0
  %1145 = vmatpush1.bf16.xpose.msra.mxu0 0
  %1146 = vmatprep.subr.bf16.mxu0 0
  %1147 = vmatpush1.bf16.xpose.msra.mxu0 0
  %1148 = vmatprep.subr.bf16.mxu0 0
  %1149 = vmatpush1.bf16.xpose.msra.mxu0 %v1132
  %1150 = vmatprep.subr.bf16.mxu0 0
  %1151 = vmatpush2.bf16.xpose.msra.mxu0 0
  %1152 = vmatprep.subr.bf16.mxu0 0
  %1153 = vmatpush2.bf16.xpose.msra.mxu0 0
  %1154 = vmatprep.subr.bf16.mxu0 0
  %1155 = vmatpush2.bf16.xpose.msra.mxu0 0
  %1156 = vmatprep.subr.bf16.mxu0 0
  %1157 = vmatpush2.bf16.xpose.msra.mxu0 0
  %1158 = vmatprep.subr.bf16.mxu0 0
  %1159 = vmatpush2.bf16.xpose.msra.mxu0 0
  %1160 = vmatprep.subr.bf16.mxu0 0
  %1161 = vmatpush2.bf16.xpose.msra.mxu0 0
  %1162 = vmatprep.subr.bf16.mxu0 0
  %1163 = vmatpush2.bf16.xpose.msra.mxu0 0
  %1164 = vmatprep.subr.bf16.mxu0 0
  %1165 = vmatpush2.bf16.xpose.msra.mxu0 0
  %1166 = vmatprep.mubr.bf16.mxu0 0
  %1167 = vmatmul.mubr.bf16.gmra.mxu0 %v1129
  %v1168 = vpop.f32.mrf.mxu0
  %v1169 = vadd.f32 0.0, %v1168
  %v1170 = vpop.f32.mrf.mxu0
  %v1171 = vpop.f32.mrf.mxu0
  %v1172 = vadd.f32 0.0, %v1171
  %v1173 = vpop.f32.mrf.mxu0
  %1174 = vdwg.mxu0
  %v1175 = vmul.f32 %v1169, 0.35355338
  %v1176 = vmul.f32 %v1172, 0.35355338
  %v1177 = vsel %vm291, %v1175, -inf
  %1178 = vmax.xlane.f32.xlu0 %v1177
  %v1179 = vpop.xlane.xlu0 %1178
  %v1180 = vsel %vm295, %v1176, -inf
  %1181 = vmax.xlane.f32.xlu0 %v1180
  %v1182 = vpop.xlane.xlu0 %1181
  %v1183 = vsub.f32 %v1175, %v1179
  %v1184 = vsub.f32 %v1176, %v1182
  %v1185 = vmul.f32 %v1183, 1.442695
  %v1186 = vpow.pop %v1185
  %v1187 = vmul.f32 %v1184, 1.442695
  %v1188 = vpow.pop %v1187
  %v1189 = vsel %vm291, %v1186, 0.0
  %1190 = vadd.xlane.f32.xlu0 %v1189
  %v1191 = vpop.xlane.xlu0 %1190
  %v1192 = vsel %vm295, %v1188, 0.0
  %1193 = vadd.xlane.f32.xlu0 %v1192
  %v1194 = vpop.xlane.xlu0 %1193
  %v1195 = vrcp.pop %v1191
  %v1196 = vrcp.pop %v1194
  %v1197 = vmul.f32 %v1186, %v1195
  %v1198 = vmul.f32 %v1188, %v1196
  %v1199 = vpack.c.bf16 %v1198, %v1197
  %1201 = vrot.lane.b32.xlu0 %v1002, 120
  %v1202 = vpop.permute.xlu0 %1201
  %v1204 = vsel %vm291, %v1199, 0
  %v1207 = vand.u32 %v1202, %v322
  %1209 = vmatprep.subr.bf16.mxu0 0
  %1210 = vmatpush1.bf16.msra.mxu0 0
  %1211 = vmatprep.subr.bf16.mxu0 0
  %1212 = vmatpush1.bf16.msra.mxu0 0
  %1213 = vmatprep.subr.bf16.mxu0 0
  %1214 = vmatpush1.bf16.msra.mxu0 0
  %1215 = vmatprep.subr.bf16.mxu0 0
  %1216 = vmatpush1.bf16.msra.mxu0 0
  %1217 = vmatprep.subr.bf16.mxu0 0
  %1218 = vmatpush1.bf16.msra.mxu0 0
  %1219 = vmatprep.subr.bf16.mxu0 0
  %1220 = vmatpush1.bf16.msra.mxu0 0
  %1221 = vmatprep.subr.bf16.mxu0 0
  %1222 = vmatpush1.bf16.msra.mxu0 0
  %1223 = vmatprep.subr.bf16.mxu0 0
  %1224 = vmatpush1.bf16.msra.mxu0 %v1207
  %1225 = vmatprep.subr.bf16.mxu0 0
  %1226 = vmatpush2.bf16.msra.mxu0 0
  %1227 = vmatprep.subr.bf16.mxu0 0
  %1228 = vmatpush2.bf16.msra.mxu0 0
  %1229 = vmatprep.subr.bf16.mxu0 0
  %1230 = vmatpush2.bf16.msra.mxu0 0
  %1231 = vmatprep.subr.bf16.mxu0 0
  %1232 = vmatpush2.bf16.msra.mxu0 0
  %1233 = vmatprep.subr.bf16.mxu0 0
  %1234 = vmatpush2.bf16.msra.mxu0 0
  %1235 = vmatprep.subr.bf16.mxu0 0
  %1236 = vmatpush2.bf16.msra.mxu0 0
  %1237 = vmatprep.subr.bf16.mxu0 0
  %1238 = vmatpush2.bf16.msra.mxu0 0
  %1239 = vmatprep.subr.bf16.mxu0 0
  %1240 = vmatpush2.bf16.msra.mxu0 0
  %1241 = vmatprep.mubr.bf16.mxu0 0
  %1242 = vmatmul.mubr.bf16.gmra.mxu0 %v1204
  %v1243 = vpop.f32.mrf.mxu0
  %v1244 = vadd.f32 0.0, %v1243
  %v1245 = vpop.f32.mrf.mxu0
  %v1246 = vpop.f32.mrf.mxu0
  %v1247 = vadd.f32 0.0, %v1246
  %v1248 = vpop.f32.mrf.mxu0
  %1249 = vdwg.mxu0
  %1250 = vrot.lane.b32.xlu0 %v1000, 112
  %v1251 = vpop.permute.xlu0 %1250
  %1252 = vrot.lane.b32.xlu0 %v1001, 112
  %v1253 = vpop.permute.xlu0 %1252
  %v1255 = vsel %vm241, %v1251, 0
  %v1258 = vsel %vm241, %v1253, 0
  %1260 = vmatprep.subr.bf16.mxu0 0
  %1261 = vmatpush1.bf16.xpose.msra.mxu0 0
  %1262 = vmatprep.subr.bf16.mxu0 0
  %1263 = vmatpush1.bf16.xpose.msra.mxu0 0
  %1264 = vmatprep.subr.bf16.mxu0 0
  %1265 = vmatpush1.bf16.xpose.msra.mxu0 0
  %1266 = vmatprep.subr.bf16.mxu0 0
  %1267 = vmatpush1.bf16.xpose.msra.mxu0 0
  %1268 = vmatprep.subr.bf16.mxu0 0
  %1269 = vmatpush1.bf16.xpose.msra.mxu0 0
  %1270 = vmatprep.subr.bf16.mxu0 0
  %1271 = vmatpush1.bf16.xpose.msra.mxu0 0
  %1272 = vmatprep.subr.bf16.mxu0 0
  %1273 = vmatpush1.bf16.xpose.msra.mxu0 0
  %1274 = vmatprep.subr.bf16.mxu0 0
  %1275 = vmatpush1.bf16.xpose.msra.mxu0 %v1258
  %1276 = vmatprep.subr.bf16.mxu0 0
  %1277 = vmatpush2.bf16.xpose.msra.mxu0 0
  %1278 = vmatprep.subr.bf16.mxu0 0
  %1279 = vmatpush2.bf16.xpose.msra.mxu0 0
  %1280 = vmatprep.subr.bf16.mxu0 0
  %1281 = vmatpush2.bf16.xpose.msra.mxu0 0
  %1282 = vmatprep.subr.bf16.mxu0 0
  %1283 = vmatpush2.bf16.xpose.msra.mxu0 0
  %1284 = vmatprep.subr.bf16.mxu0 0
  %1285 = vmatpush2.bf16.xpose.msra.mxu0 0
  %1286 = vmatprep.subr.bf16.mxu0 0
  %1287 = vmatpush2.bf16.xpose.msra.mxu0 0
  %1288 = vmatprep.subr.bf16.mxu0 0
  %1289 = vmatpush2.bf16.xpose.msra.mxu0 0
  %1290 = vmatprep.subr.bf16.mxu0 0
  %1291 = vmatpush2.bf16.xpose.msra.mxu0 0
  %1292 = vmatprep.mubr.bf16.mxu0 0
  %1293 = vmatmul.mubr.bf16.gmra.mxu0 %v1255
  %v1294 = vpop.f32.mrf.mxu0
  %v1295 = vadd.f32 0.0, %v1294
  %v1296 = vpop.f32.mrf.mxu0
  %v1297 = vpop.f32.mrf.mxu0
  %v1298 = vadd.f32 0.0, %v1297
  %v1299 = vpop.f32.mrf.mxu0
  %1300 = vdwg.mxu0
  %v1301 = vmul.f32 %v1295, 0.35355338
  %v1302 = vmul.f32 %v1298, 0.35355338
  %v1303 = vsel %vm291, %v1301, -inf
  %1304 = vmax.xlane.f32.xlu0 %v1303
  %v1305 = vpop.xlane.xlu0 %1304
  %v1306 = vsel %vm295, %v1302, -inf
  %1307 = vmax.xlane.f32.xlu0 %v1306
  %v1308 = vpop.xlane.xlu0 %1307
  %v1309 = vsub.f32 %v1301, %v1305
  %v1310 = vsub.f32 %v1302, %v1308
  %v1311 = vmul.f32 %v1309, 1.442695
  %v1312 = vpow.pop %v1311
  %v1313 = vmul.f32 %v1310, 1.442695
  %v1314 = vpow.pop %v1313
  %v1315 = vsel %vm291, %v1312, 0.0
  %1316 = vadd.xlane.f32.xlu0 %v1315
  %v1317 = vpop.xlane.xlu0 %1316
  %v1318 = vsel %vm295, %v1314, 0.0
  %1319 = vadd.xlane.f32.xlu0 %v1318
  %v1320 = vpop.xlane.xlu0 %1319
  %v1321 = vrcp.pop %v1317
  %v1322 = vrcp.pop %v1320
  %v1323 = vmul.f32 %v1312, %v1321
  %v1324 = vmul.f32 %v1314, %v1322
  %v1325 = vpack.c.bf16 %v1324, %v1323
  %1326 = vrot.lane.b32.xlu0 %v1002, 112
  %v1327 = vpop.permute.xlu0 %1326
  %v1329 = vsel %vm291, %v1325, 0
  %v1332 = vand.u32 %v1327, %v322
  %1334 = vmatprep.subr.bf16.mxu0 0
  %1335 = vmatpush1.bf16.msra.mxu0 0
  %1336 = vmatprep.subr.bf16.mxu0 0
  %1337 = vmatpush1.bf16.msra.mxu0 0
  %1338 = vmatprep.subr.bf16.mxu0 0
  %1339 = vmatpush1.bf16.msra.mxu0 0
  %1340 = vmatprep.subr.bf16.mxu0 0
  %1341 = vmatpush1.bf16.msra.mxu0 0
  %1342 = vmatprep.subr.bf16.mxu0 0
  %1343 = vmatpush1.bf16.msra.mxu0 0
  %1344 = vmatprep.subr.bf16.mxu0 0
  %1345 = vmatpush1.bf16.msra.mxu0 0
  %1346 = vmatprep.subr.bf16.mxu0 0
  %1347 = vmatpush1.bf16.msra.mxu0 0
  %1348 = vmatprep.subr.bf16.mxu0 0
  %1349 = vmatpush1.bf16.msra.mxu0 %v1332
  %1350 = vmatprep.subr.bf16.mxu0 0
  %1351 = vmatpush2.bf16.msra.mxu0 0
  %1352 = vmatprep.subr.bf16.mxu0 0
  %1353 = vmatpush2.bf16.msra.mxu0 0
  %1354 = vmatprep.subr.bf16.mxu0 0
  %1355 = vmatpush2.bf16.msra.mxu0 0
  %1356 = vmatprep.subr.bf16.mxu0 0
  %1357 = vmatpush2.bf16.msra.mxu0 0
  %1358 = vmatprep.subr.bf16.mxu0 0
  %1359 = vmatpush2.bf16.msra.mxu0 0
  %1360 = vmatprep.subr.bf16.mxu0 0
  %1361 = vmatpush2.bf16.msra.mxu0 0
  %1362 = vmatprep.subr.bf16.mxu0 0
  %1363 = vmatpush2.bf16.msra.mxu0 0
  %1364 = vmatprep.subr.bf16.mxu0 0
  %1365 = vmatpush2.bf16.msra.mxu0 0
  %1366 = vmatprep.mubr.bf16.mxu0 0
  %1367 = vmatmul.mubr.bf16.gmra.mxu0 %v1329
  %v1368 = vpop.f32.mrf.mxu0
  %v1369 = vadd.f32 0.0, %v1368
  %v1370 = vpop.f32.mrf.mxu0
  %v1371 = vpop.f32.mrf.mxu0
  %v1372 = vadd.f32 0.0, %v1371
  %v1373 = vpop.f32.mrf.mxu0
  %1374 = vdwg.mxu0
  %1375 = vrot.lane.b32.xlu0 %v1000, 104
  %v1376 = vpop.permute.xlu0 %1375
  %1377 = vrot.lane.b32.xlu0 %v1001, 104
  %v1378 = vpop.permute.xlu0 %1377
  %v1380 = vsel %vm241, %v1376, 0
  %v1383 = vsel %vm241, %v1378, 0
  %1385 = vmatprep.subr.bf16.mxu0 0
  %1386 = vmatpush1.bf16.xpose.msra.mxu0 0
  %1387 = vmatprep.subr.bf16.mxu0 0
  %1388 = vmatpush1.bf16.xpose.msra.mxu0 0
  %1389 = vmatprep.subr.bf16.mxu0 0
  %1390 = vmatpush1.bf16.xpose.msra.mxu0 0
  %1391 = vmatprep.subr.bf16.mxu0 0
  %1392 = vmatpush1.bf16.xpose.msra.mxu0 0
  %1393 = vmatprep.subr.bf16.mxu0 0
  %1394 = vmatpush1.bf16.xpose.msra.mxu0 0
  %1395 = vmatprep.subr.bf16.mxu0 0
  %1396 = vmatpush1.bf16.xpose.msra.mxu0 0
  %1397 = vmatprep.subr.bf16.mxu0 0
  %1398 = vmatpush1.bf16.xpose.msra.mxu0 0
  %1399 = vmatprep.subr.bf16.mxu0 0
  %1400 = vmatpush1.bf16.xpose.msra.mxu0 %v1383
  %1401 = vmatprep.subr.bf16.mxu0 0
  %1402 = vmatpush2.bf16.xpose.msra.mxu0 0
  %1403 = vmatprep.subr.bf16.mxu0 0
  %1404 = vmatpush2.bf16.xpose.msra.mxu0 0
  %1405 = vmatprep.subr.bf16.mxu0 0
  %1406 = vmatpush2.bf16.xpose.msra.mxu0 0
  %1407 = vmatprep.subr.bf16.mxu0 0
  %1408 = vmatpush2.bf16.xpose.msra.mxu0 0
  %1409 = vmatprep.subr.bf16.mxu0 0
  %1410 = vmatpush2.bf16.xpose.msra.mxu0 0
  %1411 = vmatprep.subr.bf16.mxu0 0
  %1412 = vmatpush2.bf16.xpose.msra.mxu0 0
  %1413 = vmatprep.subr.bf16.mxu0 0
  %1414 = vmatpush2.bf16.xpose.msra.mxu0 0
  %1415 = vmatprep.subr.bf16.mxu0 0
  %1416 = vmatpush2.bf16.xpose.msra.mxu0 0
  %1417 = vmatprep.mubr.bf16.mxu0 0
  %1418 = vmatmul.mubr.bf16.gmra.mxu0 %v1380
  %v1419 = vpop.f32.mrf.mxu0
  %v1420 = vadd.f32 0.0, %v1419
  %v1421 = vpop.f32.mrf.mxu0
  %v1422 = vpop.f32.mrf.mxu0
  %v1423 = vadd.f32 0.0, %v1422
  %v1424 = vpop.f32.mrf.mxu0
  %1425 = vdwg.mxu0
  %v1426 = vmul.f32 %v1420, 0.35355338
  %v1427 = vmul.f32 %v1423, 0.35355338
  %v1428 = vsel %vm291, %v1426, -inf
  %1429 = vmax.xlane.f32.xlu0 %v1428
  %v1430 = vpop.xlane.xlu0 %1429
  %v1431 = vsel %vm295, %v1427, -inf
  %1432 = vmax.xlane.f32.xlu0 %v1431
  %v1433 = vpop.xlane.xlu0 %1432
  %v1434 = vsub.f32 %v1426, %v1430
  %v1435 = vsub.f32 %v1427, %v1433
  %v1436 = vmul.f32 %v1434, 1.442695
  %v1437 = vpow.pop %v1436
  %v1438 = vmul.f32 %v1435, 1.442695
  %v1439 = vpow.pop %v1438
  %v1440 = vsel %vm291, %v1437, 0.0
  %1441 = vadd.xlane.f32.xlu0 %v1440
  %v1442 = vpop.xlane.xlu0 %1441
  %v1443 = vsel %vm295, %v1439, 0.0
  %1444 = vadd.xlane.f32.xlu0 %v1443
  %v1445 = vpop.xlane.xlu0 %1444
  %v1446 = vrcp.pop %v1442
  %v1447 = vrcp.pop %v1445
  %v1448 = vmul.f32 %v1437, %v1446
  %v1449 = vmul.f32 %v1439, %v1447
  %v1450 = vpack.c.bf16 %v1449, %v1448
  %1451 = vrot.lane.b32.xlu0 %v1002, 104
  %v1452 = vpop.permute.xlu0 %1451
  %v1454 = vsel %vm291, %v1450, 0
  %v1457 = vand.u32 %v1452, %v322
  %1459 = vmatprep.subr.bf16.mxu0 0
  %1460 = vmatpush1.bf16.msra.mxu0 0
  %1461 = vmatprep.subr.bf16.mxu0 0
  %1462 = vmatpush1.bf16.msra.mxu0 0
  %1463 = vmatprep.subr.bf16.mxu0 0
  %1464 = vmatpush1.bf16.msra.mxu0 0
  %1465 = vmatprep.subr.bf16.mxu0 0
  %1466 = vmatpush1.bf16.msra.mxu0 0
  %1467 = vmatprep.subr.bf16.mxu0 0
  %1468 = vmatpush1.bf16.msra.mxu0 0
  %1469 = vmatprep.subr.bf16.mxu0 0
  %1470 = vmatpush1.bf16.msra.mxu0 0
  %1471 = vmatprep.subr.bf16.mxu0 0
  %1472 = vmatpush1.bf16.msra.mxu0 0
  %1473 = vmatprep.subr.bf16.mxu0 0
  %1474 = vmatpush1.bf16.msra.mxu0 %v1457
  %1475 = vmatprep.subr.bf16.mxu0 0
  %1476 = vmatpush2.bf16.msra.mxu0 0
  %1477 = vmatprep.subr.bf16.mxu0 0
  %1478 = vmatpush2.bf16.msra.mxu0 0
  %1479 = vmatprep.subr.bf16.mxu0 0
  %1480 = vmatpush2.bf16.msra.mxu0 0
  %1481 = vmatprep.subr.bf16.mxu0 0
  %1482 = vmatpush2.bf16.msra.mxu0 0
  %1483 = vmatprep.subr.bf16.mxu0 0
  %1484 = vmatpush2.bf16.msra.mxu0 0
  %1485 = vmatprep.subr.bf16.mxu0 0
  %1486 = vmatpush2.bf16.msra.mxu0 0
  %1487 = vmatprep.subr.bf16.mxu0 0
  %1488 = vmatpush2.bf16.msra.mxu0 0
  %1489 = vmatprep.subr.bf16.mxu0 0
  %1490 = vmatpush2.bf16.msra.mxu0 0
  %1491 = vmatprep.mubr.bf16.mxu0 0
  %1492 = vmatmul.mubr.bf16.gmra.mxu0 %v1454
  %v1493 = vpop.f32.mrf.mxu0
  %v1494 = vadd.f32 0.0, %v1493
  %v1495 = vpop.f32.mrf.mxu0
  %v1496 = vpop.f32.mrf.mxu0
  %v1497 = vadd.f32 0.0, %v1496
  %v1498 = vpop.f32.mrf.mxu0
  %1499 = vdwg.mxu0
  %1502 = vrot.lane.b32.xlu0 %v1244, 8
  %v1503 = vpop.permute.xlu0 %1502
  %1504 = vrot.lane.b32.xlu0 %v1247, 8
  %v1505 = vpop.permute.xlu0 %1504
  %1510 = vrot.lane.b32.xlu0 %v1369, 16
  %v1511 = vpop.permute.xlu0 %1510
  %1512 = vrot.lane.b32.xlu0 %v1372, 16
  %v1513 = vpop.permute.xlu0 %1512
  %1518 = vrot.lane.b32.xlu0 %v1494, 24
  %v1519 = vpop.permute.xlu0 %1518
  %1520 = vrot.lane.b32.xlu0 %v1497, 24
  %v1521 = vpop.permute.xlu0 %1520
  %v1524 = vsel %vm241, %v1116, %v1503
  %v1525 = vsel %vm241, %v1119, %v1505
  %v1526 = vsel %vm771, %v1524, %v1511
  %v1527 = vsel %vm771, %v1525, %v1513
  %v1528 = vsel %vm774, %v1526, %v1519
  %v1529 = vsel %vm774, %v1527, %v1521
  %v1530 = vpack.c.bf16 %v1529, %v1528
  %v1532 = vsel %vm69, %v1530, 0
  %1534 = vmatprep.subr.bf16.mxu0 0
  %1535 = vmatpush1.bf16.msra.mxu0 0
  %1536 = vmatprep.subr.bf16.mxu0 0
  %1537 = vmatpush1.bf16.msra.mxu0 0
  %1538 = vmatprep.subr.bf16.mxu0 0
  %1539 = vmatpush1.bf16.msra.mxu0 0
  %1540 = vmatprep.subr.bf16.mxu0 0
  %1541 = vmatpush1.bf16.msra.mxu0 0
  %1542 = vmatprep.subr.bf16.mxu0 0
  %1543 = vmatpush1.bf16.msra.mxu0 0
  %1544 = vmatprep.subr.bf16.mxu0 0
  %1545 = vmatpush1.bf16.msra.mxu0 0
  %1546 = vmatprep.subr.bf16.mxu0 0
  %1547 = vmatpush1.bf16.msra.mxu0 %v792
  %1548 = vmatprep.subr.bf16.mxu0 0
  %1549 = vmatpush1.bf16.msra.mxu0 %v791
  %1550 = vmatprep.subr.bf16.mxu0 0
  %1551 = vmatpush2.bf16.msra.mxu0 0
  %1552 = vmatprep.subr.bf16.mxu0 0
  %1553 = vmatpush2.bf16.msra.mxu0 0
  %1554 = vmatprep.subr.bf16.mxu0 0
  %1555 = vmatpush2.bf16.msra.mxu0 0
  %1556 = vmatprep.subr.bf16.mxu0 0
  %1557 = vmatpush2.bf16.msra.mxu0 0
  %1558 = vmatprep.subr.bf16.mxu0 0
  %1559 = vmatpush2.bf16.msra.mxu0 0
  %1560 = vmatprep.subr.bf16.mxu0 0
  %1561 = vmatpush2.bf16.msra.mxu0 0
  %1562 = vmatprep.subr.bf16.mxu0 0
  %1563 = vmatpush2.bf16.msra.mxu0 0
  %1564 = vmatprep.subr.bf16.mxu0 0
  %1565 = vmatpush2.bf16.msra.mxu0 0
  %1566 = vmatprep.mubr.bf16.mxu0 0
  %1567 = vmatmul.mubr.bf16.gmra.mxu0 %v1532
  %v1568 = vpop.f32.mrf.mxu0
  %v1569 = vadd.f32 0.0, %v1568
  %v1570 = vpop.f32.mrf.mxu0
  %v1571 = vpop.f32.mrf.mxu0
  %v1572 = vadd.f32 0.0, %v1571
  %v1573 = vpop.f32.mrf.mxu0
  %1574 = vdwg.mxu0
  %v1575 = vadd.f32 %v871, %v1569
  %v1576 = vadd.f32 %v872, %v1572
  %v1577 = vadd.f32 %v1575, %v844
  %v1578 = vadd.f32 %v1576, %v844
  %v1579 = vsel %vm69, %v1577, 0.0
  %v1580 = vsel %vm848, %v1578, 0.0
  %v1581 = vadd.f32 %v1579, %v1580
  %v1582 = vrot.slane %v1581, 4
  %v1583 = vadd.f32 %v1581, %v1582
  %v1584 = vrot.slane %v1583, 2
  %v1585 = vadd.f32 %v1583, %v1584
  %v1586 = vrot.slane %v1585, 1
  %v1587 = vadd.f32 %v1585, %v1586
  %v1588 = vadd.f32 %v857, %v1587
  %v1589 = vmul.f32 %v1577, %v1577
  %v1590 = vmul.f32 %v1578, %v1578
  %v1591 = vsel %vm69, %v1589, 0.0
  %v1592 = vsel %vm848, %v1590, 0.0
  %v1593 = vadd.f32 %v1591, %v1592
  %v1594 = vrot.slane %v1593, 4
  %v1595 = vadd.f32 %v1593, %v1594
  %v1596 = vrot.slane %v1595, 2
  %v1597 = vadd.f32 %v1595, %v1596
  %v1598 = vrot.slane %v1597, 1
  %v1599 = vadd.f32 %v1597, %v1598
  %v1600 = vadd.f32 %v869, %v1599
  %v1601 = vmul.f32 %v1588, 0.055555556
  %v1602 = vmul.f32 %v1600, 0.055555556
  %v1603 = vmul.f32 %v1601, %v1601
  %v1604 = vsub.f32 %v1602, %v1603
  %v1605 = vmax.f32 %v1604, 0.0
  %v1606 = vadd.f32 %v1605, 1e-05
  %v1607 = vrsqrt.pop %v1606
  %v1608 = vmul.f32 %v31, %v1607
  %v1609 = vmul.f32 %v1601, %v1608
  %v1611 = vrot.slane %v1609, 7
  %v1613 = vsub.f32 %v31, %v1611
  %v1614 = vlaneseq
  %v1615 = vshrl.u32 %v1614, 7
  %v1616 = vsub.s32 0, %v1615
  %v1617 = vrot.slane %v1608, %v1616
  %v1618 = vmul.f32 %v845, %v1617
  %v1619 = vmul.f32 %v846, %v1617
  %v1620 = vlaneseq
  %v1621 = vshrl.u32 %v1620, 7
  %v1622 = vsub.s32 1, %v1621
  %v1623 = vrot.slane %v1613, %v1622
  %v1624 = vadd.f32 %v1618, %v1623
  %v1625 = vadd.f32 %v1619, %v1623
  %v1626 = vpack.c.bf16 %v1625, %v1624
  %v1628 = vlaneseq
  %v1629 = vshrl.u32 %v1628, 7
  %v1630 = vsub.s32 0, %v1629
  %v1631 = vrot.slane %v36, %v1630
  %v1637 = vunpack.c.l.b16 %v32
  %v1638 = vunpack.c.l.b16 %v33
  %v1639 = vunpack.c.l.b16 %v34
  %v1640 = vunpack.c.l.b16 %v35
  %v1641 = vpack.c.b16 %v1638, %v1637
  %v1642 = vpack.c.b16 %v1640, %v1639
  %v1646 = vsel %vm69, %v1626, 0
  %1648 = vmatprep.subr.bf16.mxu0 0
  %1649 = vmatpush1.bf16.msra.mxu0 0
  %1650 = vmatprep.subr.bf16.mxu0 0
  %1651 = vmatpush1.bf16.msra.mxu0 0
  %1652 = vmatprep.subr.bf16.mxu0 0
  %1653 = vmatpush1.bf16.msra.mxu0 0
  %1654 = vmatprep.subr.bf16.mxu0 0
  %1655 = vmatpush1.bf16.msra.mxu0 0
  %1656 = vmatprep.subr.bf16.mxu0 0
  %1657 = vmatpush1.bf16.msra.mxu0 0
  %1658 = vmatprep.subr.bf16.mxu0 0
  %1659 = vmatpush1.bf16.msra.mxu0 0
  %1660 = vmatprep.subr.bf16.mxu0 0
  %1661 = vmatpush1.bf16.msra.mxu0 %v1642
  %1662 = vmatprep.subr.bf16.mxu0 0
  %1663 = vmatpush1.bf16.msra.mxu0 %v1641
  %1664 = vmatprep.subr.bf16.mxu0 0
  %1665 = vmatpush2.bf16.msra.mxu0 0
  %1666 = vmatprep.subr.bf16.mxu0 0
  %1667 = vmatpush2.bf16.msra.mxu0 0
  %1668 = vmatprep.subr.bf16.mxu0 0
  %1669 = vmatpush2.bf16.msra.mxu0 0
  %1670 = vmatprep.subr.bf16.mxu0 0
  %1671 = vmatpush2.bf16.msra.mxu0 0
  %1672 = vmatprep.subr.bf16.mxu0 0
  %1673 = vmatpush2.bf16.msra.mxu0 0
  %1674 = vmatprep.subr.bf16.mxu0 0
  %1675 = vmatpush2.bf16.msra.mxu0 0
  %1676 = vmatprep.subr.bf16.mxu0 0
  %1677 = vmatpush2.bf16.msra.mxu0 0
  %1678 = vmatprep.subr.bf16.mxu0 0
  %1679 = vmatpush2.bf16.msra.mxu0 0
  %1680 = vmatprep.mubr.bf16.mxu0 0
  %1681 = vmatmul.mubr.bf16.gmra.mxu0 %v1646
  %v1682 = vpop.f32.mrf.mxu0
  %v1683 = vadd.f32 %v1631, %v1682
  %v1684 = vpop.f32.mrf.mxu0
  %v1685 = vpop.f32.mrf.mxu0
  %v1686 = vadd.f32 %v1631, %v1685
  %v1687 = vpop.f32.mrf.mxu0
  %1688 = vdwg.mxu0
  %v1689 = vmax.f32 %v1683, 0.0
  %v1690 = vmax.f32 %v1686, 0.0
  %v1691 = vpack.c.bf16 %v1690, %v1689
  %v1700 = vunpack.c.l.b16 %v37
  %v1701 = vunpack.c.l.b16 %v38
  %v1702 = vunpack.c.l.b16 %v39
  %v1703 = vunpack.c.l.b16 %v40
  %v1704 = vunpack.c.l.b16 %v41
  %v1705 = vunpack.c.l.b16 %v42
  %v1706 = vunpack.c.l.b16 %v43
  %v1707 = vunpack.c.l.b16 %v44
  %v1708 = vpack.c.b16 %v1701, %v1700
  %v1709 = vpack.c.b16 %v1703, %v1702
  %v1710 = vpack.c.b16 %v1705, %v1704
  %v1711 = vpack.c.b16 %v1707, %v1706
  %vm1716 = vcmask 523264
  %v1718 = vsel %vm1716, %v1691, 0
  %1720 = vmatprep.subr.bf16.mxu0 0
  %1721 = vmatpush1.bf16.msra.mxu0 0
  %1722 = vmatprep.subr.bf16.mxu0 0
  %1723 = vmatpush1.bf16.msra.mxu0 0
  %1724 = vmatprep.subr.bf16.mxu0 0
  %1725 = vmatpush1.bf16.msra.mxu0 0
  %1726 = vmatprep.subr.bf16.mxu0 0
  %1727 = vmatpush1.bf16.msra.mxu0 0
  %1728 = vmatprep.subr.bf16.mxu0 0
  %1729 = vmatpush1.bf16.msra.mxu0 %v1711
  %1730 = vmatprep.subr.bf16.mxu0 0
  %1731 = vmatpush1.bf16.msra.mxu0 %v1710
  %1732 = vmatprep.subr.bf16.mxu0 0
  %1733 = vmatpush1.bf16.msra.mxu0 %v1709
  %1734 = vmatprep.subr.bf16.mxu0 0
  %1735 = vmatpush1.bf16.msra.mxu0 %v1708
  %1736 = vmatprep.subr.bf16.mxu0 0
  %1737 = vmatpush2.bf16.msra.mxu0 0
  %1738 = vmatprep.subr.bf16.mxu0 0
  %1739 = vmatpush2.bf16.msra.mxu0 0
  %1740 = vmatprep.subr.bf16.mxu0 0
  %1741 = vmatpush2.bf16.msra.mxu0 0
  %1742 = vmatprep.subr.bf16.mxu0 0
  %1743 = vmatpush2.bf16.msra.mxu0 0
  %1744 = vmatprep.subr.bf16.mxu0 0
  %1745 = vmatpush2.bf16.msra.mxu0 0
  %1746 = vmatprep.subr.bf16.mxu0 0
  %1747 = vmatpush2.bf16.msra.mxu0 0
  %1748 = vmatprep.subr.bf16.mxu0 0
  %1749 = vmatpush2.bf16.msra.mxu0 0
  %1750 = vmatprep.subr.bf16.mxu0 0
  %1751 = vmatpush2.bf16.msra.mxu0 0
  %1752 = vmatprep.mubr.bf16.mxu0 0
  %1753 = vmatmul.mubr.bf16.gmra.mxu0 %v1718
  %v1754 = vpop.f32.mrf.mxu0
  %v1755 = vadd.f32 0.0, %v1754
  %v1756 = vpop.f32.mrf.mxu0
  %v1757 = vpop.f32.mrf.mxu0
  %v1758 = vadd.f32 0.0, %v1757
  %v1759 = vpop.f32.mrf.mxu0
  %1760 = vdwg.mxu0
  %v1761 = vadd.f32 %v1624, %v1755
  %v1762 = vadd.f32 %v1625, %v1758
  %v1764 = vlaneseq
  %v1765 = vshrl.u32 %v1764, 7
  %v1766 = vsub.s32 0, %v1765
  %v1767 = vrot.slane %v45, %v1766
  %v1769 = vadd.f32 %v1761, %v1767
  %v1770 = vadd.f32 %v1762, %v1767
  %v1771 = vsel %vm69, %v1769, 0.0
  %v1772 = vsel %vm848, %v1770, 0.0
  %v1773 = vadd.f32 %v1771, %v1772
  %v1774 = vrot.slane %v1773, 4
  %v1775 = vadd.f32 %v1773, %v1774
  %v1776 = vrot.slane %v1775, 2
  %v1777 = vadd.f32 %v1775, %v1776
  %v1778 = vrot.slane %v1777, 1
  %v1779 = vadd.f32 %v1777, %v1778
  %v1780 = vadd.f32 %v1779, 0.0
  %v1781 = vmul.f32 %v1769, %v1769
  %v1782 = vmul.f32 %v1770, %v1770
  %v1783 = vsel %vm69, %v1781, 0.0
  %v1784 = vsel %vm848, %v1782, 0.0
  %v1785 = vadd.f32 %v1783, %v1784
  %v1786 = vrot.slane %v1785, 4
  %v1787 = vadd.f32 %v1785, %v1786
  %v1788 = vrot.slane %v1787, 2
  %v1789 = vadd.f32 %v1787, %v1788
  %v1790 = vrot.slane %v1789, 1
  %v1791 = vadd.f32 %v1789, %v1790
  %v1792 = vadd.f32 %v1791, 0.0
  %v1793 = vmul.f32 %v1577, %v1617
  %v1794 = vmul.f32 %v1578, %v1617
  %v1795 = vadd.f32 %v1793, %v1623
  %v1796 = vadd.f32 %v1794, %v1623
  %v1797 = vpack.c.bf16 %v1796, %v1795
  %v1799 = vsel %vm69, %v1797, 0
  %1801 = vmatprep.subr.bf16.mxu0 0
  %1802 = vmatpush1.bf16.msra.mxu0 0
  %1803 = vmatprep.subr.bf16.mxu0 0
  %1804 = vmatpush1.bf16.msra.mxu0 0
  %1805 = vmatprep.subr.bf16.mxu0 0
  %1806 = vmatpush1.bf16.msra.mxu0 0
  %1807 = vmatprep.subr.bf16.mxu0 0
  %1808 = vmatpush1.bf16.msra.mxu0 0
  %1809 = vmatprep.subr.bf16.mxu0 0
  %1810 = vmatpush1.bf16.msra.mxu0 0
  %1811 = vmatprep.subr.bf16.mxu0 0
  %1812 = vmatpush1.bf16.msra.mxu0 0
  %1813 = vmatprep.subr.bf16.mxu0 0
  %1814 = vmatpush1.bf16.msra.mxu0 %v1642
  %1815 = vmatprep.subr.bf16.mxu0 0
  %1816 = vmatpush1.bf16.msra.mxu0 %v1641
  %1817 = vmatprep.subr.bf16.mxu0 0
  %1818 = vmatpush2.bf16.msra.mxu0 0
  %1819 = vmatprep.subr.bf16.mxu0 0
  %1820 = vmatpush2.bf16.msra.mxu0 0
  %1821 = vmatprep.subr.bf16.mxu0 0
  %1822 = vmatpush2.bf16.msra.mxu0 0
  %1823 = vmatprep.subr.bf16.mxu0 0
  %1824 = vmatpush2.bf16.msra.mxu0 0
  %1825 = vmatprep.subr.bf16.mxu0 0
  %1826 = vmatpush2.bf16.msra.mxu0 0
  %1827 = vmatprep.subr.bf16.mxu0 0
  %1828 = vmatpush2.bf16.msra.mxu0 0
  %1829 = vmatprep.subr.bf16.mxu0 0
  %1830 = vmatpush2.bf16.msra.mxu0 0
  %1831 = vmatprep.subr.bf16.mxu0 0
  %1832 = vmatpush2.bf16.msra.mxu0 0
  %1833 = vmatprep.mubr.bf16.mxu0 0
  %1834 = vmatmul.mubr.bf16.gmra.mxu0 %v1799
  %v1835 = vpop.f32.mrf.mxu0
  %v1836 = vadd.f32 %v1631, %v1835
  %v1837 = vpop.f32.mrf.mxu0
  %v1838 = vpop.f32.mrf.mxu0
  %v1839 = vadd.f32 %v1631, %v1838
  %v1840 = vpop.f32.mrf.mxu0
  %1841 = vdwg.mxu0
  %v1842 = vmax.f32 %v1836, 0.0
  %v1843 = vmax.f32 %v1839, 0.0
  %v1844 = vpack.c.bf16 %v1843, %v1842
  %v1846 = vsel %vm1716, %v1844, 0
  %1848 = vmatprep.subr.bf16.mxu0 0
  %1849 = vmatpush1.bf16.msra.mxu0 0
  %1850 = vmatprep.subr.bf16.mxu0 0
  %1851 = vmatpush1.bf16.msra.mxu0 0
  %1852 = vmatprep.subr.bf16.mxu0 0
  %1853 = vmatpush1.bf16.msra.mxu0 0
  %1854 = vmatprep.subr.bf16.mxu0 0
  %1855 = vmatpush1.bf16.msra.mxu0 0
  %1856 = vmatprep.subr.bf16.mxu0 0
  %1857 = vmatpush1.bf16.msra.mxu0 %v1711
  %1858 = vmatprep.subr.bf16.mxu0 0
  %1859 = vmatpush1.bf16.msra.mxu0 %v1710
  %1860 = vmatprep.subr.bf16.mxu0 0
  %1861 = vmatpush1.bf16.msra.mxu0 %v1709
  %1862 = vmatprep.subr.bf16.mxu0 0
  %1863 = vmatpush1.bf16.msra.mxu0 %v1708
  %1864 = vmatprep.subr.bf16.mxu0 0
  %1865 = vmatpush2.bf16.msra.mxu0 0
  %1866 = vmatprep.subr.bf16.mxu0 0
  %1867 = vmatpush2.bf16.msra.mxu0 0
  %1868 = vmatprep.subr.bf16.mxu0 0
  %1869 = vmatpush2.bf16.msra.mxu0 0
  %1870 = vmatprep.subr.bf16.mxu0 0
  %1871 = vmatpush2.bf16.msra.mxu0 0
  %1872 = vmatprep.subr.bf16.mxu0 0
  %1873 = vmatpush2.bf16.msra.mxu0 0
  %1874 = vmatprep.subr.bf16.mxu0 0
  %1875 = vmatpush2.bf16.msra.mxu0 0
  %1876 = vmatprep.subr.bf16.mxu0 0
  %1877 = vmatpush2.bf16.msra.mxu0 0
  %1878 = vmatprep.subr.bf16.mxu0 0
  %1879 = vmatpush2.bf16.msra.mxu0 0
  %1880 = vmatprep.mubr.bf16.mxu0 0
  %1881 = vmatmul.mubr.bf16.gmra.mxu0 %v1846
  %v1882 = vpop.f32.mrf.mxu0
  %v1883 = vadd.f32 0.0, %v1882
  %v1884 = vpop.f32.mrf.mxu0
  %v1885 = vpop.f32.mrf.mxu0
  %v1886 = vadd.f32 0.0, %v1885
  %v1887 = vpop.f32.mrf.mxu0
  %1888 = vdwg.mxu0
  %v1889 = vadd.f32 %v1795, %v1883
  %v1890 = vadd.f32 %v1796, %v1886
  %v1891 = vadd.f32 %v1889, %v1767
  %v1892 = vadd.f32 %v1890, %v1767
  %v1893 = vsel %vm69, %v1891, 0.0
  %v1894 = vsel %vm848, %v1892, 0.0
  %v1895 = vadd.f32 %v1893, %v1894
  %v1896 = vrot.slane %v1895, 4
  %v1897 = vadd.f32 %v1895, %v1896
  %v1898 = vrot.slane %v1897, 2
  %v1899 = vadd.f32 %v1897, %v1898
  %v1900 = vrot.slane %v1899, 1
  %v1901 = vadd.f32 %v1899, %v1900
  %v1902 = vadd.f32 %v1780, %v1901
  %v1903 = vmul.f32 %v1891, %v1891
  %v1904 = vmul.f32 %v1892, %v1892
  %v1905 = vsel %vm69, %v1903, 0.0
  %v1906 = vsel %vm848, %v1904, 0.0
  %v1907 = vadd.f32 %v1905, %v1906
  %v1908 = vrot.slane %v1907, 4
  %v1909 = vadd.f32 %v1907, %v1908
  %v1910 = vrot.slane %v1909, 2
  %v1911 = vadd.f32 %v1909, %v1910
  %v1912 = vrot.slane %v1911, 1
  %v1913 = vadd.f32 %v1911, %v1912
  %v1914 = vadd.f32 %v1792, %v1913
  %v1915 = vmul.f32 %v1902, 0.055555556
  %v1916 = vmul.f32 %v1914, 0.055555556
  %v1917 = vmul.f32 %v1915, %v1915
  %v1918 = vsub.f32 %v1916, %v1917
  %v1919 = vmax.f32 %v1918, 0.0
  %v1920 = vadd.f32 %v1919, 1e-05
  %v1921 = vrsqrt.pop %v1920
  %v1922 = vmul.f32 %v31, %v1921
  %v1923 = vmul.f32 %v1915, %v1922
  %v1925 = vrot.slane %v1923, 7
  %v1927 = vsub.f32 %v31, %v1925
  %v1928 = vlaneseq
  %v1929 = vshrl.u32 %v1928, 7
  %v1930 = vsub.s32 2, %v1929
  %v1931 = vrot.slane %v1922, %v1930
  %v1932 = vmul.f32 %v1769, %v1931
  %v1933 = vmul.f32 %v1770, %v1931
  %v1934 = vlaneseq
  %v1935 = vshrl.u32 %v1934, 7
  %v1936 = vsub.s32 3, %v1935
  %v1937 = vrot.slane %v1927, %v1936
  %v1938 = vadd.f32 %v1932, %v1937
  %v1939 = vadd.f32 %v1933, %v1937
  %1940 = vst.msk [vmem:[%s8] sm:$0xff] %vm69, %v1938
  %1941 = vst.msk [vmem:[%s8 + $0x8] sm:$0x1] %vm848, %v1939
  %v1942 = vmul.f32 %v1891, %v1931
  %v1943 = vmul.f32 %v1892, %v1931
  %v1944 = vadd.f32 %v1942, %v1937
  %v1945 = vadd.f32 %v1943, %v1937
  %s1946 = scalar_lea.vmem %s8, 16
  %1947 = vst.msk [vmem:[%s1946] sm:$0xff] %vm69, %v1944
  %1948 = vst.msk [vmem:[%s1946 + $0x8] sm:$0x1] %vm848, %v1945
  // Predicated region
  $region34: #{nar_tsp_net_forward.6} parent=0 // pred_check
    _
  $region35: #{nar_tsp_net_forward.6} parent=0 // pred_check_branch
    %1950 = sbr.rel (0) target = $region37
  $region36: #{nar_tsp_net_forward.6} parent=0 // pred_region
    _
  $region37: #{nar_tsp_net_forward.6} parent=0 // pred_fallthru
    _
  // Predicated region
  $region38: #{nar_tsp_net_forward.6} parent=0 // pred_check
    _
  $region39: #{nar_tsp_net_forward.6} parent=0 // pred_check_branch
    %1952 = sbr.rel (0) target = $region41
  $region40: #{nar_tsp_net_forward.6} parent=0 // pred_region
    _
  $region41: #{nar_tsp_net_forward.6} parent=0 // pred_fallthru
    _

</llo_original>
